<compile_context>
chip_gen: v6e
topology: v6e:2x2x1
jax: 0.10.0
libtpu: 0.0.40
codegen_flags: <defaults>
</compile_context>

<pallas_src>
import math
from functools import partial

import numpy as np
import jax
import jax.numpy as jnp
from jax.experimental import pallas as pl
from jax.experimental.pallas import tpu as pltpu


# ----------------------------------------------------------------------------
# helpers
# ----------------------------------------------------------------------------
_GELU_C = 0.7978845608028654  # sqrt(2/pi)


def _tpu_defaults():
    """Per-generation VMEM budget and GEMM tile targets.
    v5e/v6e (128 MiB VMEM): large K/N panels + raised limit.
    v7x (64 MiB VMEM): conservative 512 panels + 32 MiB limit."""
    vmem_bytes = 64 * 1024 * 1024
    try:
        vmem_bytes = int(getattr(pltpu.get_tpu_info(), "vmem_capacity_bytes",
                                 vmem_bytes))
    except Exception:
        pass
    if vmem_bytes >= 128 * 1024 * 1024:
        return {"vmem_limit": 96 * 1024 * 1024, "tm": 256, "tn": 1024, "tk": 1024}
    return {"vmem_limit": 32 * 1024 * 1024, "tm": 256, "tn": 512, "tk": 512}


_DEF = _tpu_defaults()


def _gelu_tanh_f32(x):
    return 0.5 * x * (1.0 + jnp.tanh(_GELU_C * (x + 0.044715 * x * x * x)))


def _block_pad(dim, align, target):
    """Return (block, padded_dim).  Small dims become a single full-dim block
    (always legal); large dims get an `align`-multiple tile with the dim
    zero-padded up to a multiple of it (output is sliced back)."""
    if dim <= target:
        return dim, dim
    blk = max(align, (target // align) * align)
    return blk, ((dim + blk - 1) // blk) * blk


def _tile_div(dim, align, target):
    """Largest tile <= target that is a multiple of align and divides dim;
    falls back to the full dim (always legal)."""
    if dim <= target:
        return dim
    t = (target // align) * align
    while t >= align:
        if dim % t == 0:
            return t
        t -= align
    return dim


# ----------------------------------------------------------------------------
# Standalone norm kernels (fallback only, used when K is tiled so the norm
# cannot be fused into the following matmul's prologue)
# ----------------------------------------------------------------------------
def _rmsnorm_kernel(x_ref, w_ref, o_ref, *, eps):
    x = x_ref[...].astype(jnp.float32)
    ms = jnp.mean(x * x, axis=-1, keepdims=True)
    y = x * jax.lax.rsqrt(ms + eps)
    o_ref[...] = (y * (1.0 + w_ref[...].astype(jnp.float32))).astype(o_ref.dtype)


def _rmsnorm2d(x2, w, eps):
    M, D = x2.shape
    tm = _tile_div(M, 8, 512)
    return pl.pallas_call(
        partial(_rmsnorm_kernel, eps=eps),
        out_shape=jax.ShapeDtypeStruct((M, D), x2.dtype),
        grid=(M // tm,),
        in_specs=[pl.BlockSpec((tm, D), lambda i: (i, 0)),
                  pl.BlockSpec((1, D), lambda i: (0, 0))],
        out_specs=pl.BlockSpec((tm, D), lambda i: (i, 0)),
        compiler_params=pltpu.CompilerParams(dimension_semantics=("parallel",)),
    )(x2, w.reshape(1, D))


def _layernorm_kernel(x_ref, g_ref, b_ref, o_ref, *, eps):
    x = x_ref[...].astype(jnp.float32)
    mu = jnp.mean(x, axis=-1, keepdims=True)
    var = jnp.mean((x - mu) * (x - mu), axis=-1, keepdims=True)
    y = (x - mu) * jax.lax.rsqrt(var + eps)
    o_ref[...] = (y * g_ref[...].astype(jnp.float32)
                  + b_ref[...].astype(jnp.float32)).astype(o_ref.dtype)


def _layernorm2d(x2, g, b, eps):
    M, D = x2.shape
    tm = _tile_div(M, 8, 512)
    return pl.pallas_call(
        partial(_layernorm_kernel, eps=eps),
        out_shape=jax.ShapeDtypeStruct((M, D), x2.dtype),
        grid=(M // tm,),
        in_specs=[pl.BlockSpec((tm, D), lambda i: (i, 0)),
                  pl.BlockSpec((1, D), lambda i: (0, 0)),
                  pl.BlockSpec((1, D), lambda i: (0, 0))],
        out_specs=pl.BlockSpec((tm, D), lambda i: (i, 0)),
        compiler_params=pltpu.CompilerParams(dimension_semantics=("parallel",)),
    )(x2, g.reshape(1, D), b.reshape(1, D))


# ----------------------------------------------------------------------------
# Tiled matmul kernel with fused norm prologue + bias / gelu / residual epilogue
# ----------------------------------------------------------------------------
def _make_linear_kernel(norm, has_bias, has_res, activation, eps):
    has_norm_b = (norm == "layer")

    def kernel(*refs):
        idx = 0
        x_ref = refs[idx]; idx += 1
        w_ref = refs[idx]; idx += 1
        nw_ref = nb_ref = None
        if norm is not None:
            nw_ref = refs[idx]; idx += 1
            if has_norm_b:
                nb_ref = refs[idx]; idx += 1
        b_ref = refs[idx] if has_bias else None
        idx += int(has_bias)
        r_ref = refs[idx] if has_res else None
        idx += int(has_res)
        o_ref, acc_ref = refs[idx], refs[idx + 1]

        @pl.when(pl.program_id(2) == 0)
        def _():
            acc_ref[...] = jnp.zeros_like(acc_ref)

        x = x_ref[...]
        if norm is not None:            # full K resident -> exact row statistics
            xf = x.astype(jnp.float32)
            if norm == "rms":
                ms = jnp.mean(xf * xf, axis=-1, keepdims=True)
                xf = xf * jax.lax.rsqrt(ms + eps)
                xf = xf * (1.0 + nw_ref[...].astype(jnp.float32))
            else:                       # "layer"
                mu = jnp.mean(xf, axis=-1, keepdims=True)
                var = jnp.mean((xf - mu) * (xf - mu), axis=-1, keepdims=True)
                xf = (xf - mu) * jax.lax.rsqrt(var + eps)
                xf = (xf * nw_ref[...].astype(jnp.float32)
                      + nb_ref[...].astype(jnp.float32))
            x = xf.astype(x_ref.dtype)

        acc_ref[...] += jnp.dot(x, w_ref[...], preferred_element_type=jnp.float32)

        @pl.when(pl.program_id(2) == pl.num_programs(2) - 1)
        def _():
            acc = acc_ref[...]
            if has_bias:
                acc = acc + b_ref[...].astype(jnp.float32)
            if activation == "gelu_tanh":
                acc = _gelu_tanh_f32(acc)
            if has_res:
                acc = acc + r_ref[...].astype(jnp.float32)
            o_ref[...] = acc.astype(o_ref.dtype)

    return kernel


def pallas_linear(x, w, b=None, res=None, activation=None,
                  norm=None, norm_w=None, norm_b=None, norm_eps=1e-6,
                  out_dtype=None, tm=None, tn=None, tk=None):
    """y = act(norm(x) @ w + b) + res.  x: (..., K) bf16; w: (K, N) bf16
    (pre-cast at load time).  bf16 MXU inputs, f32 accumulation, tiled 3-D grid
    with K-accumulation and optional fused RMS/LayerNorm prologue."""
    tm = _DEF["tm"] if tm is None else tm
    tn = _DEF["tn"] if tn is None else tn
    tk = _DEF["tk"] if tk is None else tk

    *lead, K = x.shape
    N = w.shape[-1]
    M = int(np.prod(lead)) if lead else 1
    out_dtype = x.dtype if out_dtype is None else out_dtype

    x2 = x.reshape(M, K)

    btm, Mp = _block_pad(M, 8, tm)
    btn, Np = _block_pad(N, 128, tn)
    btk, Kp = _block_pad(K, 128, tk)

    # Norm fusion needs the whole K row resident in one block.
    if norm is not None and btk != K:
        x2 = (_rmsnorm2d(x2, norm_w, norm_eps) if norm == "rms"
              else _layernorm2d(x2, norm_w, norm_b, norm_eps))
        norm = None

    if (Mp, Kp) != (M, K):
        x2 = jnp.pad(x2, ((0, Mp - M), (0, Kp - K)))
    w2 = w if (Kp, Np) == (K, N) else jnp.pad(w, ((0, Kp - K), (0, Np - N)))
    # TODO(synk): at real PaliGemma sizes (vocab 257152) pad weights once at
    # load time rather than per forward pass.

    grid = (Mp // btm, Np // btn, Kp // btk)

    in_specs = [pl.BlockSpec((btm, btk), lambda i, j, k: (i, k)),
                pl.BlockSpec((btk, btn), lambda i, j, k: (k, j))]
    args = [x2, w2]
    if norm is not None:
        in_specs.append(pl.BlockSpec((1, btk), lambda i, j, k: (0, 0)))
        args.append(norm_w.reshape(1, K))
        if norm == "layer":
            in_specs.append(pl.BlockSpec((1, btk), lambda i, j, k: (0, 0)))
            args.append(norm_b.reshape(1, K))
    if b is not None:
        bb = b.reshape(1, N)
        if Np != N:
            bb = jnp.pad(bb, ((0, 0), (0, Np - N)))
        in_specs.append(pl.BlockSpec((1, btn), lambda i, j, k: (0, j)))
        args.append(bb)
    if res is not None:
        rr = res.reshape(M, N)
        if (Mp, Np) != (M, N):
            rr = jnp.pad(rr, ((0, Mp - M), (0, Np - N)))
        in_specs.append(pl.BlockSpec((btm, btn), lambda i, j, k: (i, j)))
        args.append(rr)

    out = pl.pallas_call(
        _make_linear_kernel(norm, b is not None, res is not None, activation,
                            norm_eps),
        out_shape=jax.ShapeDtypeStruct((Mp, Np), out_dtype),
        grid=grid,
        in_specs=in_specs,
        out_specs=pl.BlockSpec((btm, btn), lambda i, j, k: (i, j)),
        scratch_shapes=[pltpu.VMEM((btm, btn), jnp.float32)],
        compiler_params=pltpu.CompilerParams(
            dimension_semantics=("parallel", "parallel", "arbitrary"),
            vmem_limit_bytes=_DEF["vmem_limit"]),
    )(*args)
    if (Mp, Np) != (M, N):
        out = out[:M, :N]
    return out.reshape(*lead, N)


# ----------------------------------------------------------------------------
# Fused gate/up projection with RMSNorm prologue and GeGLU epilogue (GemmaMLP)
# ----------------------------------------------------------------------------
def _make_gateup_kernel(fuse_norm, eps):
    def kernel(*refs):
        idx = 0
        x_ref = refs[idx]; idx += 1
        wg_ref = refs[idx]; idx += 1
        wu_ref = refs[idx]; idx += 1
        nw_ref = None
        if fuse_norm:
            nw_ref = refs[idx]; idx += 1
        o_ref, accg_ref, accu_ref = refs[idx], refs[idx + 1], refs[idx + 2]

        @pl.when(pl.program_id(2) == 0)
        def _():
            accg_ref[...] = jnp.zeros_like(accg_ref)
            accu_ref[...] = jnp.zeros_like(accu_ref)

        x = x_ref[...]
        if fuse_norm:
            xf = x.astype(jnp.float32)
            ms = jnp.mean(xf * xf, axis=-1, keepdims=True)
            xf = xf * jax.lax.rsqrt(ms + eps)
            xf = xf * (1.0 + nw_ref[...].astype(jnp.float32))
            x = xf.astype(x_ref.dtype)

        accg_ref[...] += jnp.dot(x, wg_ref[...], preferred_element_type=jnp.float32)
        accu_ref[...] += jnp.dot(x, wu_ref[...], preferred_element_type=jnp.float32)

        @pl.when(pl.program_id(2) == pl.num_programs(2) - 1)
        def _():
            o_ref[...] = (_gelu_tanh_f32(accg_ref[...]) * accu_ref[...]
                          ).astype(o_ref.dtype)

    return kernel


def pallas_gateup_geglu(x, wg, wu, norm_w=None, norm_eps=1e-6,
                        tm=None, tn=None, tk=None):
    tm = _DEF["tm"] if tm is None else tm
    tn = _DEF["tn"] if tn is None else tn
    tk = _DEF["tk"] if tk is None else tk

    *lead, K = x.shape
    N = wg.shape[-1]
    M = int(np.prod(lead)) if lead else 1
    x2 = x.reshape(M, K)

    btm, Mp = _block_pad(M, 8, tm)
    btn, Np = _block_pad(N, 128, tn)
    btk, Kp = _block_pad(K, 128, tk)

    fuse = norm_w is not None and btk == K
    if norm_w is not None and not fuse:
        x2 = _rmsnorm2d(x2, norm_w, norm_eps)

    if (Mp, Kp) != (M, K):
        x2 = jnp.pad(x2, ((0, Mp - M), (0, Kp - K)))
    wg2 = wg if (Kp, Np) == (K, N) else jnp.pad(wg, ((0, Kp - K), (0, Np - N)))
    wu2 = wu if (Kp, Np) == (K, N) else jnp.pad(wu, ((0, Kp - K), (0, Np - N)))

    grid = (Mp // btm, Np // btn, Kp // btk)
    in_specs = [pl.BlockSpec((btm, btk), lambda i, j, k: (i, k)),
                pl.BlockSpec((btk, btn), lambda i, j, k: (k, j)),
                pl.BlockSpec((btk, btn), lambda i, j, k: (k, j))]
    args = [x2, wg2, wu2]
    if fuse:
        in_specs.append(pl.BlockSpec((1, btk), lambda i, j, k: (0, 0)))
        args.append(norm_w.reshape(1, K))

    out = pl.pallas_call(
        _make_gateup_kernel(fuse, norm_eps),
        out_shape=jax.ShapeDtypeStruct((Mp, Np), x.dtype),
        grid=grid,
        in_specs=in_specs,
        out_specs=pl.BlockSpec((btm, btn), lambda i, j, k: (i, j)),
        scratch_shapes=[pltpu.VMEM((btm, btn), jnp.float32),
                        pltpu.VMEM((btm, btn), jnp.float32)],
        compiler_params=pltpu.CompilerParams(
            dimension_semantics=("parallel", "parallel", "arbitrary"),
            vmem_limit_bytes=_DEF["vmem_limit"]),
    )(*args)
    if (Mp, Np) != (M, N):
        out = out[:M, :N]
    return out.reshape(*lead, N)


# ----------------------------------------------------------------------------
# Flash-style attention: grid=(B*KV_heads, q_tiles, kv_tiles), online softmax,
# bf16 MXU matmuls, K contracted on head_dim (no pre-transposed K), Q is
# pre-scaled by 1/sqrt(head_dim) outside.  Prefill additive mask is all zeros
# (asserted) and is therefore dropped exactly.
# ----------------------------------------------------------------------------
def _flash_attn_kernel(q_ref, k_ref, v_ref, o_ref, m_sc, l_sc, acc_sc):
    kv = pl.program_id(2)

    @pl.when(kv == 0)
    def _():
        m_sc[...] = jnp.full_like(m_sc, -jnp.inf)
        l_sc[...] = jnp.zeros_like(l_sc)
        acc_sc[...] = jnp.zeros_like(acc_sc)

    q = q_ref[0]                     # (tq, D)  bf16, pre-scaled
    k = k_ref[0]                     # (tkv, D) bf16
    v = v_ref[0]                     # (tkv, D) bf16
    s = jax.lax.dot_general(q, k, (((1,), (1,)), ((), ())),
                            preferred_element_type=jnp.float32)   # (tq, tkv)
    m_prev = m_sc[...]
    m_new = jnp.maximum(m_prev, jnp.max(s, axis=-1, keepdims=True))
    alpha = jnp.exp(m_prev - m_new)
    p = jnp.exp(s - m_new)
    l_sc[...] = alpha * l_sc[...] + jnp.sum(p, axis=-1, keepdims=True)
    acc_sc[...] = alpha * acc_sc[...] + jnp.dot(
        p.astype(v.dtype), v, preferred_element_type=jnp.float32)
    m_sc[...] = m_new

    @pl.when(kv == pl.num_programs(2) - 1)
    def _():
        o_ref[0] = (acc_sc[...] * pl.reciprocal(l_sc[...], approx=True)
                    ).astype(o_ref.dtype)


def pallas_flash_attention(q, k, v, tq_target=256, tkv_target=512):
    """q: (BH, Q, D); k, v: (BH, Skv, D).  All bf16; q already scaled."""
    BH, Q, D = q.shape
    Skv = k.shape[1]
    tq, Qp = _block_pad(Q, 8, tq_target)
    if Qp != Q:
        q = jnp.pad(q, ((0, 0), (0, Qp - Q), (0, 0)))
    # KV tiles must divide Skv exactly (zero-padded keys would corrupt softmax).
    # TODO(synk): masked KV tail (broadcasted_iota) for ragged Skv / decode path.
    tkv = _tile_div(Skv, 8, tkv_target)
    grid = (BH, Qp // tq, Skv // tkv)

    out = pl.pallas_call(
        _flash_attn_kernel,
        out_shape=jax.ShapeDtypeStruct((BH, Qp, D), q.dtype),
        grid=grid,
        in_specs=[pl.BlockSpec((1, tq, D), lambda b, qi, ki: (b, qi, 0)),
                  pl.BlockSpec((1, tkv, D), lambda b, qi, ki: (b, ki, 0)),
                  pl.BlockSpec((1, tkv, D), lambda b, qi, ki: (b, ki, 0))],
        out_specs=pl.BlockSpec((1, tq, D), lambda b, qi, ki: (b, qi, 0)),
        scratch_shapes=[pltpu.VMEM((tq, 1), jnp.float32),
                        pltpu.VMEM((tq, 1), jnp.float32),
                        pltpu.VMEM((tq, D), jnp.float32)],
        compiler_params=pltpu.CompilerParams(
            dimension_semantics=("parallel", "parallel", "arbitrary"),
            vmem_limit_bytes=_DEF["vmem_limit"]),
    )(q, k, v)
    if Qp != Q:
        out = out[:, :Q, :]
    return out


# ----------------------------------------------------------------------------
# Config (small synthetic shapes)
# ----------------------------------------------------------------------------
class Cfg:
    # vision (SigLIP-style tower)
    channels = 3
    image_size = 16
    patch_size = 8
    num_image_tokens = (16 // 8) ** 2          # 4
    v_hidden = 32
    v_intermediate = 64
    v_layers = 2
    v_heads = 4
    v_head_dim = 8
    layer_norm_eps = 1e-6
    # text (Gemma)
    vocab_size = 256
    hidden = 64
    intermediate = 128
    layers = 2
    heads = 4
    kv_heads = 2
    head_dim = 16
    rms_eps = 1e-6
    rope_theta = 10000.0
    # PaliGemma top-level
    projection_dim = 64
    pg_hidden = 64
    image_token_index = 255
    pad_token_id = -1
    seq_len = 8                                 # 4 image tokens + 4 text tokens


# ----------------------------------------------------------------------------
# RoPE helpers (glue, elementwise)
# ----------------------------------------------------------------------------
def rope_cos_sin(position_ids, head_dim, base, dtype):
    inv_freq = 1.0 / (base ** (jnp.arange(0, head_dim, 2, dtype=jnp.float32) / head_dim))
    freqs = position_ids.astype(jnp.float32)[:, :, None] * inv_freq[None, None, :]
    emb = jnp.concatenate([freqs, freqs], axis=-1)
    return jnp.cos(emb).astype(dtype), jnp.sin(emb).astype(dtype)


def rotate_half(x):
    h = x.shape[-1] // 2
    return jnp.concatenate([-x[..., h:], x[..., :h]], axis=-1)


def apply_rotary_pos_emb(q, k, cos, sin):
    cos = cos[:, None, :, :]   # unsqueeze head dim
    sin = sin[:, None, :, :]
    return q * cos + rotate_half(q) * sin, k * cos + rotate_half(k) * sin


# ----------------------------------------------------------------------------
# Vision tower (SigLIP-style; source of SiglipVisionModel was not provided)
# TODO(synk): SiglipVisionModel source not given in the reference module; this is a
# standard SigLIP ViT (patch-conv + pos-embed + pre-LN encoder + post-LN).
# ----------------------------------------------------------------------------
def siglip_attention(x, p, cfg):
    B, S, D = x.shape
    H, hd = cfg.v_heads, cfg.v_head_dim
    # ln1 fused into the QKV projection prologue; residual = pre-norm x.
    qkv = pallas_linear(x, p['qkv_w'], p['qkv_b'],
                        norm="layer", norm_w=p['ln1_g'], norm_b=p['ln1_b'],
                        norm_eps=cfg.layer_norm_eps)
    q, k, v = jnp.split(qkv, 3, axis=-1)
    scale = jnp.asarray(1.0 / math.sqrt(hd), q.dtype)
    q = (q * scale).reshape(B, S, H, hd).transpose(0, 2, 1, 3).reshape(B * H, S, hd)
    k = k.reshape(B, S, H, hd).transpose(0, 2, 1, 3).reshape(B * H, S, hd)
    v = v.reshape(B, S, H, hd).transpose(0, 2, 1, 3).reshape(B * H, S, hd)
    out = pallas_flash_attention(q, k, v)
    out = out.reshape(B, H, S, hd).transpose(0, 2, 1, 3).reshape(B, S, D)
    # residual add fused into the output-projection epilogue
    return pallas_linear(out, p['o_w'], p['o_b'], res=x)


def siglip_layer(x, p, cfg):
    x = siglip_attention(x, p, cfg)
    # ln2 fused into fc1; gelu(tanh) fused into the fc1 epilogue
    h = pallas_linear(x, p['fc1_w'], p['fc1_b'], activation="gelu_tanh",
                      norm="layer", norm_w=p['ln2_g'], norm_b=p['ln2_b'],
                      norm_eps=cfg.layer_norm_eps)
    x = pallas_linear(h, p['fc2_w'], p['fc2_b'], res=x)
    return x


def vision_tower(pixel_values, p, cfg):
    B, C, H, W = pixel_values.shape
    P = cfg.patch_size
    nH, nW = H // P, W // P
    # Conv2d(kernel=P, stride=P, padding='valid') == patch extraction + matmul.
    patches = (pixel_values.reshape(B, C, nH, P, nW, P)
               .transpose(0, 2, 4, 1, 3, 5)
               .reshape(B, nH * nW, C * P * P))
    x = pallas_linear(patches, p['patch_w'], p['patch_b'])
    x = x + p['pos_emb'][None]
    for lp in p['layers']:
        x = siglip_layer(x, lp, cfg)
    return x   # post_layernorm fused into the multimodal projector downstream


# ----------------------------------------------------------------------------
# Gemma language model
# ----------------------------------------------------------------------------
def gemma_attention(x, position_ids, p, cfg):
    B, S, _ = x.shape
    H, KH, hd = cfg.heads, cfg.kv_heads, cfg.head_dim
    G = H // KH
    # input RMSNorm fused into the QKV projection prologue (no bias)
    qkv = pallas_linear(x, p['qkv_w'],
                        norm="rms", norm_w=p['input_ln'], norm_eps=cfg.rms_eps)
    q = qkv[..., :H * hd].reshape(B, S, H, hd).transpose(0, 2, 1, 3)
    k = qkv[..., H * hd:(H + KH) * hd].reshape(B, S, KH, hd).transpose(0, 2, 1, 3)
    v = qkv[..., (H + KH) * hd:].reshape(B, S, KH, hd).transpose(0, 2, 1, 3)
    cos, sin = rope_cos_sin(position_ids, hd, cfg.rope_theta, x.dtype)
    q, k = apply_rotary_pos_emb(q, k, cos, sin)
    # pre-scale Q (Q*D work, fused by XLA into the preceding transpose)
    q = q * jnp.asarray(1.0 / math.sqrt(hd), q.dtype)
    # GQA: fold the query group into rows instead of repeating K/V
    # (head h = kh*G + g attends with kv head kh, exactly as repeat_kv).
    q = q.reshape(B * KH, G * S, hd)
    k = k.reshape(B * KH, S, hd)
    v = v.reshape(B * KH, S, hd)
    out = pallas_flash_attention(q, k, v)
    out = out.reshape(B, H, S, hd).transpose(0, 2, 1, 3).reshape(B, S, H * hd)
    return pallas_linear(out, p['o_w'], res=x)


def gemma_mlp(x, p, cfg):
    # post-attention RMSNorm fused into the gate|up GeGLU kernel prologue
    h = pallas_gateup_geglu(x, p['gate_w'], p['up_w'],
                            norm_w=p['post_ln'], norm_eps=cfg.rms_eps)
    return pallas_linear(h, p['down_w'], res=x)


def gemma_model(inputs_embeds, position_ids, params, cfg):
    hidden = inputs_embeds * jnp.asarray(cfg.hidden ** 0.5, inputs_embeds.dtype)
    for lp in params['text_layers']:
        hidden = gemma_attention(hidden, position_ids, lp, cfg)
        hidden = gemma_mlp(hidden, lp, cfg)
    return hidden   # final RMSNorm fused into the lm_head matmul


# ----------------------------------------------------------------------------
# PaliGemma forward (prefill path; kv_cache=None)
# TODO(synk): KVCache single-token decode path (q_len == 1) not exercised here;
# once padding/decode is added, the additive attention mask must be rebuilt
# in-kernel (broadcasted_iota) instead of being dropped.
# ----------------------------------------------------------------------------
def merge_input_ids_with_image_embeds(image_embeds, input_embeds, input_ids,
                                      attention_mask, cfg):
    B, S = input_ids.shape
    D = input_embeds.shape[-1]
    dtype = input_embeds.dtype
    scaled_image_embeds = image_embeds / jnp.asarray(cfg.pg_hidden ** 0.5, dtype)

    text_mask = (input_ids != cfg.image_token_index) & (input_ids != cfg.pad_token_id)
    image_mask = input_ids == cfg.image_token_index
    padding_mask = input_ids == cfg.pad_token_id

    final = jnp.where(text_mask[..., None], input_embeds, jnp.zeros((), dtype))
    # masked_scatter equivalent: each row carries exactly num_image_tokens image
    # tokens, so a per-row running count indexes the image embeds in order.
    img_pos = jnp.clip(jnp.cumsum(image_mask.astype(jnp.int32), axis=-1) - 1,
                       0, cfg.num_image_tokens - 1)
    gathered = jnp.take_along_axis(
        scaled_image_embeds,
        jnp.broadcast_to(img_pos[..., None], (B, S, D)), axis=1)
    final = jnp.where(image_mask[..., None], gathered, final)
    final = jnp.where(padding_mask[..., None], jnp.zeros((), dtype), final)

    # prefill (no KV cache): the reference additive mask is all zeros, so it is
    # dropped entirely from the attention kernel (no DMA, exact semantics).
    am = attention_mask.astype(jnp.int32)
    position_ids = jnp.where(am == 0, 1, jnp.cumsum(am, axis=-1))
    return final, position_ids


def paligemma_forward(params, input_ids, pixel_values, attention_mask, cfg):
    input_embeds = params['embed_tokens'][input_ids]                 # (B,S,hid) bf16
    image_feats = vision_tower(pixel_values.astype(input_embeds.dtype),
                               params['vision'], cfg)                # (B,nP,v_hid)
    # vision post-LN fused into the multimodal projector matmul
    image_embeds = pallas_linear(image_feats, params['proj_w'], params['proj_b'],
                                 norm="layer",
                                 norm_w=params['vision']['post_ln_g'],
                                 norm_b=params['vision']['post_ln_b'],
                                 norm_eps=cfg.layer_norm_eps)
    final, position_ids = merge_input_ids_with_image_embeds(
        image_embeds, input_embeds, input_ids, attention_mask, cfg)
    hidden = gemma_model(final, position_ids, params, cfg)
    # final RMSNorm fused into lm_head; logits emitted directly in f32
    logits = pallas_linear(hidden, params['lm_head_w'],
                           norm="rms", norm_w=params['final_norm'],
                           norm_eps=cfg.rms_eps, out_dtype=jnp.float32)
    return {'logits': logits}


# ----------------------------------------------------------------------------
# Deterministic parameter init: bf16 once at load time (no per-forward casts);
# Q|K|V weights pre-fused along N.
# ----------------------------------------------------------------------------
def init_params(key, cfg):
    keys = iter(jax.random.split(key, 64))
    bf16 = jnp.bfloat16

    def nrm(*shape):
        return (jax.random.normal(next(keys), shape, jnp.float32) * 0.02).astype(bf16)

    def zeros(*shape):
        return jnp.zeros(shape, bf16)

    def ones(*shape):
        return jnp.ones(shape, bf16)

    vis_layers = []
    for _ in range(cfg.v_layers):
        qkv_w = jnp.concatenate([nrm(cfg.v_hidden, cfg.v_hidden),
                                 nrm(cfg.v_hidden, cfg.v_hidden),
                                 nrm(cfg.v_hidden, cfg.v_hidden)], axis=1)
        vis_layers.append(dict(
            ln1_g=ones(cfg.v_hidden), ln1_b=zeros(cfg.v_hidden),
            qkv_w=qkv_w, qkv_b=zeros(3 * cfg.v_hidden),
            o_w=nrm(cfg.v_hidden, cfg.v_hidden), o_b=zeros(cfg.v_hidden),
            ln2_g=ones(cfg.v_hidden), ln2_b=zeros(cfg.v_hidden),
            fc1_w=nrm(cfg.v_hidden, cfg.v_intermediate),
            fc1_b=zeros(cfg.v_intermediate),
            fc2_w=nrm(cfg.v_intermediate, cfg.v_hidden),
            fc2_b=zeros(cfg.v_hidden),
        ))
    vision = dict(
        patch_w=nrm(cfg.channels * cfg.patch_size ** 2, cfg.v_hidden),
        patch_b=zeros(cfg.v_hidden),
        pos_emb=nrm(cfg.num_image_tokens, cfg.v_hidden),
        layers=vis_layers,
        post_ln_g=ones(cfg.v_hidden), post_ln_b=zeros(cfg.v_hidden),
    )

    text_layers = []
    for _ in range(cfg.layers):
        qkv_w = jnp.concatenate([nrm(cfg.hidden, cfg.heads * cfg.head_dim),
                                 nrm(cfg.hidden, cfg.kv_heads * cfg.head_dim),
                                 nrm(cfg.hidden, cfg.kv_heads * cfg.head_dim)],
                                axis=1)
        text_layers.append(dict(
            input_ln=zeros(cfg.hidden),          # GemmaRMSNorm init = zeros
            qkv_w=qkv_w,
            o_w=nrm(cfg.heads * cfg.head_dim, cfg.hidden),
            post_ln=zeros(cfg.hidden),
            gate_w=nrm(cfg.hidden, cfg.intermediate),
            up_w=nrm(cfg.hidden, cfg.intermediate),
            down_w=nrm(cfg.intermediate, cfg.hidden),
        ))

    return dict(
        embed_tokens=nrm(cfg.vocab_size, cfg.hidden),
        vision=vision,
        proj_w=nrm(cfg.v_hidden, cfg.projection_dim),
        proj_b=zeros(cfg.projection_dim),
        text_layers=text_layers,
        final_norm=zeros(cfg.hidden),
        lm_head_w=nrm(cfg.hidden, cfg.vocab_size),
    )


# ----------------------------------------------------------------------------
if __name__ == "__main__":
    cfg = Cfg()
    key = jax.random.PRNGKey(0)
    kp, kpix, ktok = jax.random.split(key, 3)

    params = init_params(kp, cfg)

    B = 2
    pixel_values = jax.random.normal(
        kpix, (B, cfg.channels, cfg.image_size, cfg.image_size), jnp.float32)
    text_ids = jax.random.randint(
        ktok, (B, cfg.seq_len - cfg.num_image_tokens), 0, 200, dtype=jnp.int32)
    image_ids = jnp.full((B, cfg.num_image_tokens), cfg.image_token_index, jnp.int32)
    input_ids = jnp.concatenate([image_ids, text_ids], axis=1)       # (B, 8)
    attention_mask = jnp.ones((B, cfg.seq_len), jnp.int32)

    # mirrors `assert torch.all(attention_mask == 1)`
    assert bool(jnp.all(attention_mask == 1)), "I will add padding later"

    @jax.jit
    def run(params, input_ids, pixel_values, attention_mask):
        return paligemma_forward(params, input_ids, pixel_values, attention_mask, cfg)

    out = run(params, input_ids, pixel_values, attention_mask)
    logits = jax.block_until_ready(out['logits'])
    assert logits.shape == (B, cfg.seq_len, cfg.vocab_size)
    assert logits.dtype == jnp.float32
    assert bool(jnp.all(jnp.isfinite(logits)))
    print("KERNEL_OK")
</pallas_src>

<mosaic_0001>
module attributes {stable_mosaic.version = 11 : i64} {
  func.func @kernel(%arg0: i32, %arg1: i32, %arg2: i32, %arg3: memref<8x192xbf16, #tpu.memory_space<vmem>>, %arg4: memref<192x32xbf16, #tpu.memory_space<vmem>>, %arg5: memref<1x32xbf16, #tpu.memory_space<vmem>>, %arg6: memref<8x32xbf16, #tpu.memory_space<vmem>>, %arg7: memref<8x32xf32, #tpu.memory_space<vmem>>) attributes {dimension_semantics = [#tpu.dimension_semantics<parallel>, #tpu.dimension_semantics<parallel>, #tpu.dimension_semantics<arbitrary>], iteration_bounds = array<i64: 1, 1, 1>, scalar_prefetch = 0 : i64, scratch_operands = 1 : i64, tpu.core_type = #tpu.core_type<tc>, window_params = [{transform_indices = @transform_0, window_bounds = array<i64: 8, 192>}, {transform_indices = @transform_1, window_bounds = array<i64: 192, 32>}, {transform_indices = @transform_2, window_bounds = array<i64: 1, 32>}, {transform_indices = @transform_3, window_bounds = array<i64: 8, 32>}]} {
    %c0_i32 = arith.constant 0 : i32
    %0 = arith.cmpi eq, %arg2, %c0_i32 : i32
    %1 = arith.extui %0 : i1 to i32
    %c0_i32_0 = arith.constant 0 : i32
    %2 = arith.cmpi ne, %1, %c0_i32_0 : i32
    scf.if %2 {
      %cst_10 = arith.constant 0.000000e+00 : f32
      %12 = vector.broadcast %cst_10 : f32 to vector<8x32xf32>
      %c0_11 = arith.constant 0 : index
      %c0_12 = arith.constant 0 : index
      %13 = vector.load %arg7[%c0_11, %c0_12] : memref<8x32xf32, #tpu.memory_space<vmem>>, vector<8x32xf32>
      tpu.vector_store %arg7[%c0_11, %c0_12], %12 {strides = array<i32>} : memref<8x32xf32, #tpu.memory_space<vmem>>, vector<8x32xf32>,
    } else {
    }
    %c0 = arith.constant 0 : index
    %c0_1 = arith.constant 0 : index
    %3 = vector.load %arg3[%c0, %c0_1] : memref<8x192xbf16, #tpu.memory_space<vmem>>, vector<8x192xbf16>
    %c0_2 = arith.constant 0 : index
    %c0_3 = arith.constant 0 : index
    %4 = vector.load %arg7[%c0_2, %c0_3] : memref<8x32xf32, #tpu.memory_space<vmem>>, vector<8x32xf32>
    %c0_4 = arith.constant 0 : index
    %c0_5 = arith.constant 0 : index
    %5 = vector.load %arg4[%c0_4, %c0_5] : memref<192x32xbf16, #tpu.memory_space<vmem>>, vector<192x32xbf16>
    %cst = arith.constant dense<0.000000e+00> : vector<8x32xf32>
    %6 = tpu.matmul %3, %5, %cst {dimension_numbers = #tpu.dot_dimension_numbers<[1], [0], [0], [1], [0, 0, 1, 1], [], []>} : vector<8x192xbf16>, vector<192x32xbf16>, vector<8x32xf32> -> vector<8x32xf32>
    %7 = arith.addf %4, %6 : vector<8x32xf32>
    %c0_6 = arith.constant 0 : index
    %c0_7 = arith.constant 0 : index
    %8 = vector.load %arg7[%c0_6, %c0_7] : memref<8x32xf32, #tpu.memory_space<vmem>>, vector<8x32xf32>
    tpu.vector_store %arg7[%c0_6, %c0_7], %7 {strides = array<i32>} : memref<8x32xf32, #tpu.memory_space<vmem>>, vector<8x32xf32>,
    %c0_i32_8 = arith.constant 0 : i32
    %9 = arith.cmpi eq, %arg2, %c0_i32_8 : i32
    %10 = arith.extui %9 : i1 to i32
    %c0_i32_9 = arith.constant 0 : i32
    %11 = arith.cmpi ne, %10, %c0_i32_9 : i32
    scf.if %11 {
      %c0_10 = arith.constant 0 : index
      %c0_11 = arith.constant 0 : index
      %12 = vector.load %arg7[%c0_10, %c0_11] : memref<8x32xf32, #tpu.memory_space<vmem>>, vector<8x32xf32>
      %c0_12 = arith.constant 0 : index
      %c0_13 = arith.constant 0 : index
      %13 = vector.load %arg5[%c0_12, %c0_13] : memref<1x32xbf16, #tpu.memory_space<vmem>>, vector<1x32xbf16>
      %14 = arith.extf %13 : vector<1x32xbf16> to vector<1x32xf32>
      %15 = vector.broadcast %14 : vector<1x32xf32> to vector<8x32xf32>
      %16 = arith.addf %12, %15 : vector<8x32xf32>
      %17 = arith.truncf %16 : vector<8x32xf32> to vector<8x32xbf16>
      %c0_14 = arith.constant 0 : index
      %c0_15 = arith.constant 0 : index
      %18 = vector.load %arg6[%c0_14, %c0_15] : memref<8x32xbf16, #tpu.memory_space<vmem>>, vector<8x32xbf16>
      tpu.vector_store %arg6[%c0_14, %c0_15], %17 {strides = array<i32>} : memref<8x32xbf16, #tpu.memory_space<vmem>>, vector<8x32xbf16>,
    } else {
    }
    return
  }
  func.func @transform_0(%arg0: i32, %arg1: i32, %arg2: i32) -> (i32, i32) {
    %c0_i32 = arith.constant 0 : i32
    return %arg0, %arg2 : i32, i32
  }
  func.func @transform_1(%arg0: i32, %arg1: i32, %arg2: i32) -> (i32, i32) {
    %c0_i32 = arith.constant 0 : i32
    return %arg2, %arg1 : i32, i32
  }
  func.func @transform_2(%arg0: i32, %arg1: i32, %arg2: i32) -> (i32, i32) {
    %c0_i32 = arith.constant 0 : i32
    %c0_i32_0 = arith.constant 0 : i32
    return %c0_i32, %arg1 : i32, i32
  }
  func.func @transform_3(%arg0: i32, %arg1: i32, %arg2: i32) -> (i32, i32) {
    %c0_i32 = arith.constant 0 : i32
    return %arg0, %arg1 : i32, i32
  }
}

module attributes {stable_mosaic.version = 11 : i64} {
  func.func @kernel(%arg0: i32, %arg1: i32, %arg2: i32, %arg3: memref<8x32xbf16, #tpu.memory_space<vmem>>, %arg4: memref<32x96xbf16, #tpu.memory_space<vmem>>, %arg5: memref<1x32xbf16, #tpu.memory_space<vmem>>, %arg6: memref<1x32xbf16, #tpu.memory_space<vmem>>, %arg7: memref<1x96xbf16, #tpu.memory_space<vmem>>, %arg8: memref<8x96xbf16, #tpu.memory_space<vmem>>, %arg9: memref<8x96xf32, #tpu.memory_space<vmem>>) attributes {dimension_semantics = [#tpu.dimension_semantics<parallel>, #tpu.dimension_semantics<parallel>, #tpu.dimension_semantics<arbitrary>], iteration_bounds = array<i64: 1, 1, 1>, scalar_prefetch = 0 : i64, scratch_operands = 1 : i64, tpu.core_type = #tpu.core_type<tc>, window_params = [{transform_indices = @transform_0, window_bounds = array<i64: 8, 32>}, {transform_indices = @transform_1, window_bounds = array<i64: 32, 96>}, {pipeline_mode = #tpu.pipeline_mode<synchronous>, transform_indices = @transform_2, window_bounds = array<i64: 1, 32>}, {pipeline_mode = #tpu.pipeline_mode<synchronous>, transform_indices = @transform_3, window_bounds = array<i64: 1, 32>}, {transform_indices = @transform_4, window_bounds = array<i64: 1, 96>}, {transform_indices = @transform_5, window_bounds = array<i64: 8, 96>}]} {
    %c0_i32 = arith.constant 0 : i32
    %0 = arith.cmpi eq, %arg2, %c0_i32 : i32
    %1 = arith.extui %0 : i1 to i32
    %c0_i32_0 = arith.constant 0 : i32
    %2 = arith.cmpi ne, %1, %c0_i32_0 : i32
    scf.if %2 {
      %cst_19 = arith.constant 0.000000e+00 : f32
      %42 = vector.broadcast %cst_19 : f32 to vector<8x96xf32>
      %c0_20 = arith.constant 0 : index
      %c0_21 = arith.constant 0 : index
      %43 = vector.load %arg9[%c0_20, %c0_21] : memref<8x96xf32, #tpu.memory_space<vmem>>, vector<8x96xf32>
      tpu.vector_store %arg9[%c0_20, %c0_21], %42 {strides = array<i32>} : memref<8x96xf32, #tpu.memory_space<vmem>>, vector<8x96xf32>,
    } else {
    }
    %c0 = arith.constant 0 : index
    %c0_1 = arith.constant 0 : index
    %3 = vector.load %arg3[%c0, %c0_1] : memref<8x32xbf16, #tpu.memory_space<vmem>>, vector<8x32xbf16>
    %4 = arith.extf %3 : vector<8x32xbf16> to vector<8x32xf32>
    %cst = arith.constant dense<0.000000e+00> : vector<8xf32>
    %5 = vector.multi_reduction <add>, %4, %cst [1] : vector<8x32xf32> to vector<8xf32>
    %6 = vector.shape_cast %5 : vector<8xf32> to vector<8x1xf32>
    %cst_2 = arith.constant 3.200000e+01 : f32
    %7 = vector.broadcast %cst_2 : f32 to vector<8x1xf32>
    %8 = arith.divf %6, %7 : vector<8x1xf32>
    %9 = vector.broadcast %8 : vector<8x1xf32> to vector<8x32xf32>
    %10 = arith.subf %4, %9 : vector<8x32xf32>
    %11 = vector.broadcast %8 : vector<8x1xf32> to vector<8x32xf32>
    %12 = arith.subf %4, %11 : vector<8x32xf32>
    %13 = arith.mulf %10, %12 : vector<8x32xf32>
    %cst_3 = arith.constant dense<0.000000e+00> : vector<8xf32>
    %14 = vector.multi_reduction <add>, %13, %cst_3 [1] : vector<8x32xf32> to vector<8xf32>
    %15 = vector.shape_cast %14 : vector<8xf32> to vector<8x1xf32>
    %cst_4 = arith.constant 3.200000e+01 : f32
    %16 = vector.broadcast %cst_4 : f32 to vector<8x1xf32>
    %17 = arith.divf %15, %16 : vector<8x1xf32>
    %18 = vector.broadcast %8 : vector<8x1xf32> to vector<8x32xf32>
    %19 = arith.subf %4, %18 : vector<8x32xf32>
    %cst_5 = arith.constant 9.99999997E-7 : f32
    %20 = vector.broadcast %cst_5 : f32 to vector<8x1xf32>
    %21 = arith.addf %17, %20 : vector<8x1xf32>
    %22 = math.rsqrt %21 : vector<8x1xf32>
    %23 = vector.broadcast %22 : vector<8x1xf32> to vector<8x32xf32>
    %24 = arith.mulf %19, %23 : vector<8x32xf32>
    %c0_6 = arith.constant 0 : index
    %c0_7 = arith.constant 0 : index
    %25 = vector.load %arg5[%c0_6, %c0_7] : memref<1x32xbf16, #tpu.memory_space<vmem>>, vector<1x32xbf16>
    %26 = arith.extf %25 : vector<1x32xbf16> to vector<1x32xf32>
    %27 = vector.broadcast %26 : vector<1x32xf32> to vector<8x32xf32>
    %28 = arith.mulf %24, %27 : vector<8x32xf32>
    %c0_8 = arith.constant 0 : index
    %c0_9 = arith.constant 0 : index
    %29 = vector.load %arg6[%c0_8, %c0_9] : memref<1x32xbf16, #tpu.memory_space<vmem>>, vector<1x32xbf16>
    %30 = arith.extf %29 : vector<1x32xbf16> to vector<1x32xf32>
    %31 = vector.broadcast %30 : vector<1x32xf32> to vector<8x32xf32>
    %32 = arith.addf %28, %31 : vector<8x32xf32>
    %33 = arith.truncf %32 : vector<8x32xf32> to vector<8x32xbf16>
    %c0_10 = arith.constant 0 : index
    %c0_11 = arith.constant 0 : index
    %34 = vector.load %arg9[%c0_10, %c0_11] : memref<8x96xf32, #tpu.memory_space<vmem>>, vector<8x96xf32>
    %c0_12 = arith.constant 0 : index
    %c0_13 = arith.constant 0 : index
    %35 = vector.load %arg4[%c0_12, %c0_13] : memref<32x96xbf16, #tpu.memory_space<vmem>>, vector<32x96xbf16>
    %cst_14 = arith.constant dense<0.000000e+00> : vector<8x96xf32>
    %36 = tpu.matmul %33, %35, %cst_14 {dimension_numbers = #tpu.dot_dimension_numbers<[1], [0], [0], [1], [0, 0, 1, 1], [], []>} : vector<8x32xbf16>, vector<32x96xbf16>, vector<8x96xf32> -> vector<8x96xf32>
    %37 = arith.addf %34, %36 : vector<8x96xf32>
    %c0_15 = arith.constant 0 : index
    %c0_16 = arith.constant 0 : index
    %38 = vector.load %arg9[%c0_15, %c0_16] : memref<8x96xf32, #tpu.memory_space<vmem>>, vector<8x96xf32>
    tpu.vector_store %arg9[%c0_15, %c0_16], %37 {strides = array<i32>} : memref<8x96xf32, #tpu.memory_space<vmem>>, vector<8x96xf32>,
    %c0_i32_17 = arith.constant 0 : i32
    %39 = arith.cmpi eq, %arg2, %c0_i32_17 : i32
    %40 = arith.extui %39 : i1 to i32
    %c0_i32_18 = arith.constant 0 : i32
    %41 = arith.cmpi ne, %40, %c0_i32_18 : i32
    scf.if %41 {
      %c0_19 = arith.constant 0 : index
      %c0_20 = arith.constant 0 : index
      %42 = vector.load %arg9[%c0_19, %c0_20] : memref<8x96xf32, #tpu.memory_space<vmem>>, vector<8x96xf32>
      %c0_21 = arith.constant 0 : index
      %c0_22 = arith.constant 0 : index
      %43 = vector.load %arg7[%c0_21, %c0_22] : memref<1x96xbf16, #tpu.memory_space<vmem>>, vector<1x96xbf16>
      %44 = arith.extf %43 : vector<1x96xbf16> to vector<1x96xf32>
      %45 = vector.broadcast %44 : vector<1x96xf32> to vector<8x96xf32>
      %46 = arith.addf %42, %45 : vector<8x96xf32>
      %47 = arith.truncf %46 : vector<8x96xf32> to vector<8x96xbf16>
      %c0_23 = arith.constant 0 : index
      %c0_24 = arith.constant 0 : index
      %48 = vector.load %arg8[%c0_23, %c0_24] : memref<8x96xbf16, #tpu.memory_space<vmem>>, vector<8x96xbf16>
      tpu.vector_store %arg8[%c0_23, %c0_24], %47 {strides = array<i32>} : memref<8x96xbf16, #tpu.memory_space<vmem>>, vector<8x96xbf16>,
    } else {
    }
    return
  }
  func.func @transform_0(%arg0: i32, %arg1: i32, %arg2: i32) -> (i32, i32) {
    %c0_i32 = arith.constant 0 : i32
    return %arg0, %arg2 : i32, i32
  }
  func.func @transform_1(%arg0: i32, %arg1: i32, %arg2: i32) -> (i32, i32) {
    %c0_i32 = arith.constant 0 : i32
    return %arg2, %arg1 : i32, i32
  }
  func.func @transform_2(%arg0: i32, %arg1: i32, %arg2: i32) -> (i32, i32) {
    %c0_i32 = arith.constant 0 : i32
    %c0_i32_0 = arith.constant 0 : i32
    %c0_i32_1 = arith.constant 0 : i32
    return %c0_i32, %c0_i32_0 : i32, i32
  }
  func.func @transform_3(%arg0: i32, %arg1: i32, %arg2: i32) -> (i32, i32) {
    %c0_i32 = arith.constant 0 : i32
    %c0_i32_0 = arith.constant 0 : i32
    %c0_i32_1 = arith.constant 0 : i32
    return %c0_i32, %c0_i32_0 : i32, i32
  }
  func.func @transform_4(%arg0: i32, %arg1: i32, %arg2: i32) -> (i32, i32) {
    %c0_i32 = arith.constant 0 : i32
    %c0_i32_0 = arith.constant 0 : i32
    return %c0_i32, %arg1 : i32, i32
  }
  func.func @transform_5(%arg0: i32, %arg1: i32, %arg2: i32) -> (i32, i32) {
    %c0_i32 = arith.constant 0 : i32
    return %arg0, %arg1 : i32, i32
  }
}

module attributes {stable_mosaic.version = 11 : i64} {
  func.func @_flash_attn_kernel(%arg0: i32, %arg1: i32, %arg2: i32, %arg3: memref<1x4x8xbf16, #tpu.memory_space<vmem>>, %arg4: memref<1x4x8xbf16, #tpu.memory_space<vmem>>, %arg5: memref<1x4x8xbf16, #tpu.memory_space<vmem>>, %arg6: memref<1x4x8xbf16, #tpu.memory_space<vmem>>, %arg7: memref<4x1xf32, #tpu.memory_space<vmem>>, %arg8: memref<4x1xf32, #tpu.memory_space<vmem>>, %arg9: memref<4x8xf32, #tpu.memory_space<vmem>>) attributes {dimension_semantics = [#tpu.dimension_semantics<parallel>, #tpu.dimension_semantics<parallel>, #tpu.dimension_semantics<arbitrary>], iteration_bounds = array<i64: 8, 1, 1>, scalar_prefetch = 0 : i64, scratch_operands = 3 : i64, tpu.core_type = #tpu.core_type<tc>, window_params = [{transform_indices = @transform_0, window_bounds = array<i64: 1, 4, 8>}, {transform_indices = @transform_1, window_bounds = array<i64: 1, 4, 8>}, {transform_indices = @transform_2, window_bounds = array<i64: 1, 4, 8>}, {transform_indices = @transform_3, window_bounds = array<i64: 1, 4, 8>}]} {
    %c0_i32 = arith.constant 0 : i32
    %0 = arith.cmpi eq, %arg2, %c0_i32 : i32
    %1 = arith.extui %0 : i1 to i32
    %c0_i32_0 = arith.constant 0 : i32
    %2 = arith.cmpi ne, %1, %c0_i32_0 : i32
    scf.if %2 {
      %cst_26 = arith.constant 0xFF800000 : f32
      %36 = vector.broadcast %cst_26 : f32 to vector<4x1xf32>
      %c0_27 = arith.constant 0 : index
      %c0_28 = arith.constant 0 : index
      %37 = vector.load %arg7[%c0_27, %c0_28] : memref<4x1xf32, #tpu.memory_space<vmem>>, vector<4x1xf32>
      tpu.vector_store %arg7[%c0_27, %c0_28], %36 {strides = array<i32>} : memref<4x1xf32, #tpu.memory_space<vmem>>, vector<4x1xf32>,
      %cst_29 = arith.constant 0.000000e+00 : f32
      %38 = vector.broadcast %cst_29 : f32 to vector<4x1xf32>
      %c0_30 = arith.constant 0 : index
      %c0_31 = arith.constant 0 : index
      %39 = vector.load %arg8[%c0_30, %c0_31] : memref<4x1xf32, #tpu.memory_space<vmem>>, vector<4x1xf32>
      tpu.vector_store %arg8[%c0_30, %c0_31], %38 {strides = array<i32>} : memref<4x1xf32, #tpu.memory_space<vmem>>, vector<4x1xf32>,
      %cst_32 = arith.constant 0.000000e+00 : f32
      %40 = vector.broadcast %cst_32 : f32 to vector<4x8xf32>
      %c0_33 = arith.constant 0 : index
      %c0_34 = arith.constant 0 : index
      %41 = vector.load %arg9[%c0_33, %c0_34] : memref<4x8xf32, #tpu.memory_space<vmem>>, vector<4x8xf32>
      tpu.vector_store %arg9[%c0_33, %c0_34], %40 {strides = array<i32>} : memref<4x8xf32, #tpu.memory_space<vmem>>, vector<4x8xf32>,
    } else {
    }
    %c0 = arith.constant 0 : index
    %c0_1 = arith.constant 0 : index
    %c0_2 = arith.constant 0 : index
    %3 = vector.load %arg3[%c0, %c0_1, %c0_2] : memref<1x4x8xbf16, #tpu.memory_space<vmem>>, vector<1x4x8xbf16>
    %4 = vector.shape_cast %3 : vector<1x4x8xbf16> to vector<4x8xbf16>
    %c0_3 = arith.constant 0 : index
    %c0_4 = arith.constant 0 : index
    %c0_5 = arith.constant 0 : index
    %5 = vector.load %arg4[%c0_3, %c0_4, %c0_5] : memref<1x4x8xbf16, #tpu.memory_space<vmem>>, vector<1x4x8xbf16>
    %6 = vector.shape_cast %5 : vector<1x4x8xbf16> to vector<4x8xbf16>
    %c0_6 = arith.constant 0 : index
    %c0_7 = arith.constant 0 : index
    %c0_8 = arith.constant 0 : index
    %7 = vector.load %arg5[%c0_6, %c0_7, %c0_8] : memref<1x4x8xbf16, #tpu.memory_space<vmem>>, vector<1x4x8xbf16>
    %8 = vector.shape_cast %7 : vector<1x4x8xbf16> to vector<4x8xbf16>
    %cst = arith.constant dense<0.000000e+00> : vector<4x4xf32>
    %9 = tpu.matmul %4, %6, %cst {dimension_numbers = #tpu.dot_dimension_numbers<[1], [1], [0], [0], [0, 0, 1, 0], [], []>} : vector<4x8xbf16>, vector<4x8xbf16>, vector<4x4xf32> -> vector<4x4xf32>
    %c0_9 = arith.constant 0 : index
    %c0_10 = arith.constant 0 : index
    %10 = vector.load %arg7[%c0_9, %c0_10] : memref<4x1xf32, #tpu.memory_space<vmem>>, vector<4x1xf32>
    %cst_11 = arith.constant dense<0xFF800000> : vector<4xf32>
    %11 = vector.multi_reduction <maximumf>, %9, %cst_11 [1] : vector<4x4xf32> to vector<4xf32>
    %12 = vector.shape_cast %11 : vector<4xf32> to vector<4x1xf32>
    %13 = arith.maximumf %10, %12 : vector<4x1xf32>
    %14 = arith.subf %10, %13 : vector<4x1xf32>
    %15 = math.exp %14 : vector<4x1xf32>
    %16 = vector.broadcast %13 : vector<4x1xf32> to vector<4x4xf32>
    %17 = arith.subf %9, %16 : vector<4x4xf32>
    %18 = math.exp %17 : vector<4x4xf32>
    %c0_12 = arith.constant 0 : index
    %c0_13 = arith.constant 0 : index
    %19 = vector.load %arg8[%c0_12, %c0_13] : memref<4x1xf32, #tpu.memory_space<vmem>>, vector<4x1xf32>
    %20 = arith.mulf %15, %19 : vector<4x1xf32>
    %cst_14 = arith.constant dense<0.000000e+00> : vector<4xf32>
    %21 = vector.multi_reduction <add>, %18, %cst_14 [1] : vector<4x4xf32> to vector<4xf32>
    %22 = vector.shape_cast %21 : vector<4xf32> to vector<4x1xf32>
    %23 = arith.addf %20, %22 : vector<4x1xf32>
    %c0_15 = arith.constant 0 : index
    %c0_16 = arith.constant 0 : index
    %24 = vector.load %arg8[%c0_15, %c0_16] : memref<4x1xf32, #tpu.memory_space<vmem>>, vector<4x1xf32>
    tpu.vector_store %arg8[%c0_15, %c0_16], %23 {strides = array<i32>} : memref<4x1xf32, #tpu.memory_space<vmem>>, vector<4x1xf32>,
    %c0_17 = arith.constant 0 : index
    %c0_18 = arith.constant 0 : index
    %25 = vector.load %arg9[%c0_17, %c0_18] : memref<4x8xf32, #tpu.memory_space<vmem>>, vector<4x8xf32>
    %26 = vector.broadcast %15 : vector<4x1xf32> to vector<4x8xf32>
    %27 = arith.mulf %26, %25 : vector<4x8xf32>
    %28 = arith.truncf %18 : vector<4x4xf32> to vector<4x4xbf16>
    %cst_19 = arith.constant dense<0.000000e+00> : vector<4x8xf32>
    %29 = tpu.matmul %28, %8, %cst_19 {dimension_numbers = #tpu.dot_dimension_numbers<[1], [0], [0], [1], [0, 0, 1, 1], [], []>} : vector<4x4xbf16>, vector<4x8xbf16>, vector<4x8xf32> -> vector<4x8xf32>
    %30 = arith.addf %27, %29 : vector<4x8xf32>
    %c0_20 = arith.constant 0 : index
    %c0_21 = arith.constant 0 : index
    %31 = vector.load %arg9[%c0_20, %c0_21] : memref<4x8xf32, #tpu.memory_space<vmem>>, vector<4x8xf32>
    tpu.vector_store %arg9[%c0_20, %c0_21], %30 {strides = array<i32>} : memref<4x8xf32, #tpu.memory_space<vmem>>, vector<4x8xf32>,
    %c0_22 = arith.constant 0 : index
    %c0_23 = arith.constant 0 : index
    %32 = vector.load %arg7[%c0_22, %c0_23] : memref<4x1xf32, #tpu.memory_space<vmem>>, vector<4x1xf32>
    tpu.vector_store %arg7[%c0_22, %c0_23], %13 {strides = array<i32>} : memref<4x1xf32, #tpu.memory_space<vmem>>, vector<4x1xf32>,
    %c0_i32_24 = arith.constant 0 : i32
    %33 = arith.cmpi eq, %arg2, %c0_i32_24 : i32
    %34 = arith.extui %33 : i1 to i32
    %c0_i32_25 = arith.constant 0 : i32
    %35 = arith.cmpi ne, %34, %c0_i32_25 : i32
    scf.if %35 {
      %c0_26 = arith.constant 0 : index
      %c0_27 = arith.constant 0 : index
      %36 = vector.load %arg9[%c0_26, %c0_27] : memref<4x8xf32, #tpu.memory_space<vmem>>, vector<4x8xf32>
      %c0_28 = arith.constant 0 : index
      %c0_29 = arith.constant 0 : index
      %37 = vector.load %arg8[%c0_28, %c0_29] : memref<4x1xf32, #tpu.memory_space<vmem>>, vector<4x1xf32>
      %38 = tpu.reciprocal %37 {approx = true} : vector<4x1xf32> -> vector<4x1xf32>
      %39 = vector.broadcast %38 : vector<4x1xf32> to vector<4x8xf32>
      %40 = arith.mulf %36, %39 : vector<4x8xf32>
      %41 = arith.truncf %40 : vector<4x8xf32> to vector<4x8xbf16>
      %c0_30 = arith.constant 0 : index
      %c0_31 = arith.constant 0 : index
      %c0_32 = arith.constant 0 : index
      %42 = vector.load %arg6[%c0_30, %c0_31, %c0_32] : memref<1x4x8xbf16, #tpu.memory_space<vmem>>, vector<1x4x8xbf16>
      %43 = vector.shape_cast %42 : vector<1x4x8xbf16> to vector<4x8xbf16>
      %44 = vector.shape_cast %41 : vector<4x8xbf16> to vector<1x4x8xbf16>
      tpu.vector_store %arg6[%c0_30, %c0_31, %c0_32], %44 {strides = array<i32>} : memref<1x4x8xbf16, #tpu.memory_space<vmem>>, vector<1x4x8xbf16>,
    } else {
    }
    return
  }
  func.func @transform_0(%arg0: i32, %arg1: i32, %arg2: i32) -> (i32, i32, i32) {
    %c0_i32 = arith.constant 0 : i32
    %c0_i32_0 = arith.constant 0 : i32
    return %arg0, %arg1, %c0_i32 : i32, i32, i32
  }
  func.func @transform_1(%arg0: i32, %arg1: i32, %arg2: i32) -> (i32, i32, i32) {
    %c0_i32 = arith.constant 0 : i32
    %c0_i32_0 = arith.constant 0 : i32
    return %arg0, %arg2, %c0_i32 : i32, i32, i32
  }
  func.func @transform_2(%arg0: i32, %arg1: i32, %arg2: i32) -> (i32, i32, i32) {
    %c0_i32 = arith.constant 0 : i32
    %c0_i32_0 = arith.constant 0 : i32
    return %arg0, %arg2, %c0_i32 : i32, i32, i32
  }
  func.func @transform_3(%arg0: i32, %arg1: i32, %arg2: i32) -> (i32, i32, i32) {
    %c0_i32 = arith.constant 0 : i32
    %c0_i32_0 = arith.constant 0 : i32
    return %arg0, %arg1, %c0_i32 : i32, i32, i32
  }
}

module attributes {stable_mosaic.version = 11 : i64} {
  func.func @kernel(%arg0: i32, %arg1: i32, %arg2: i32, %arg3: memref<8x32xbf16, #tpu.memory_space<vmem>>, %arg4: memref<32x32xbf16, #tpu.memory_space<vmem>>, %arg5: memref<1x32xbf16, #tpu.memory_space<vmem>>, %arg6: memref<8x32xbf16, #tpu.memory_space<vmem>>, %arg7: memref<8x32xbf16, #tpu.memory_space<vmem>>, %arg8: memref<8x32xf32, #tpu.memory_space<vmem>>) attributes {dimension_semantics = [#tpu.dimension_semantics<parallel>, #tpu.dimension_semantics<parallel>, #tpu.dimension_semantics<arbitrary>], iteration_bounds = array<i64: 1, 1, 1>, scalar_prefetch = 0 : i64, scratch_operands = 1 : i64, tpu.core_type = #tpu.core_type<tc>, window_params = [{transform_indices = @transform_0, window_bounds = array<i64: 8, 32>}, {transform_indices = @transform_1, window_bounds = array<i64: 32, 32>}, {transform_indices = @transform_2, window_bounds = array<i64: 1, 32>}, {transform_indices = @transform_3, window_bounds = array<i64: 8, 32>}, {transform_indices = @transform_4, window_bounds = array<i64: 8, 32>}]} {
    %c0_i32 = arith.constant 0 : i32
    %0 = arith.cmpi eq, %arg2, %c0_i32 : i32
    %1 = arith.extui %0 : i1 to i32
    %c0_i32_0 = arith.constant 0 : i32
    %2 = arith.cmpi ne, %1, %c0_i32_0 : i32
    scf.if %2 {
      %cst_10 = arith.constant 0.000000e+00 : f32
      %12 = vector.broadcast %cst_10 : f32 to vector<8x32xf32>
      %c0_11 = arith.constant 0 : index
      %c0_12 = arith.constant 0 : index
      %13 = vector.load %arg8[%c0_11, %c0_12] : memref<8x32xf32, #tpu.memory_space<vmem>>, vector<8x32xf32>
      tpu.vector_store %arg8[%c0_11, %c0_12], %12 {strides = array<i32>} : memref<8x32xf32, #tpu.memory_space<vmem>>, vector<8x32xf32>,
    } else {
    }
    %c0 = arith.constant 0 : index
    %c0_1 = arith.constant 0 : index
    %3 = vector.load %arg3[%c0, %c0_1] : memref<8x32xbf16, #tpu.memory_space<vmem>>, vector<8x32xbf16>
    %c0_2 = arith.constant 0 : index
    %c0_3 = arith.constant 0 : index
    %4 = vector.load %arg8[%c0_2, %c0_3] : memref<8x32xf32, #tpu.memory_space<vmem>>, vector<8x32xf32>
    %c0_4 = arith.constant 0 : index
    %c0_5 = arith.constant 0 : index
    %5 = vector.load %arg4[%c0_4, %c0_5] : memref<32x32xbf16, #tpu.memory_space<vmem>>, vector<32x32xbf16>
    %cst = arith.constant dense<0.000000e+00> : vector<8x32xf32>
    %6 = tpu.matmul %3, %5, %cst {dimension_numbers = #tpu.dot_dimension_numbers<[1], [0], [0], [1], [0, 0, 1, 1], [], []>} : vector<8x32xbf16>, vector<32x32xbf16>, vector<8x32xf32> -> vector<8x32xf32>
    %7 = arith.addf %4, %6 : vector<8x32xf32>
    %c0_6 = arith.constant 0 : index
    %c0_7 = arith.constant 0 : index
    %8 = vector.load %arg8[%c0_6, %c0_7] : memref<8x32xf32, #tpu.memory_space<vmem>>, vector<8x32xf32>
    tpu.vector_store %arg8[%c0_6, %c0_7], %7 {strides = array<i32>} : memref<8x32xf32, #tpu.memory_space<vmem>>, vector<8x32xf32>,
    %c0_i32_8 = arith.constant 0 : i32
    %9 = arith.cmpi eq, %arg2, %c0_i32_8 : i32
    %10 = arith.extui %9 : i1 to i32
    %c0_i32_9 = arith.constant 0 : i32
    %11 = arith.cmpi ne, %10, %c0_i32_9 : i32
    scf.if %11 {
      %c0_10 = arith.constant 0 : index
      %c0_11 = arith.constant 0 : index
      %12 = vector.load %arg8[%c0_10, %c0_11] : memref<8x32xf32, #tpu.memory_space<vmem>>, vector<8x32xf32>
      %c0_12 = arith.constant 0 : index
      %c0_13 = arith.constant 0 : index
      %13 = vector.load %arg5[%c0_12, %c0_13] : memref<1x32xbf16, #tpu.memory_space<vmem>>, vector<1x32xbf16>
      %14 = arith.extf %13 : vector<1x32xbf16> to vector<1x32xf32>
      %15 = vector.broadcast %14 : vector<1x32xf32> to vector<8x32xf32>
      %16 = arith.addf %12, %15 : vector<8x32xf32>
      %c0_14 = arith.constant 0 : index
      %c0_15 = arith.constant 0 : index
      %17 = vector.load %arg6[%c0_14, %c0_15] : memref<8x32xbf16, #tpu.memory_space<vmem>>, vector<8x32xbf16>
      %18 = arith.extf %17 : vector<8x32xbf16> to vector<8x32xf32>
      %19 = arith.addf %16, %18 : vector<8x32xf32>
      %20 = arith.truncf %19 : vector<8x32xf32> to vector<8x32xbf16>
      %c0_16 = arith.constant 0 : index
      %c0_17 = arith.constant 0 : index
      %21 = vector.load %arg7[%c0_16, %c0_17] : memref<8x32xbf16, #tpu.memory_space<vmem>>, vector<8x32xbf16>
      tpu.vector_store %arg7[%c0_16, %c0_17], %20 {strides = array<i32>} : memref<8x32xbf16, #tpu.memory_space<vmem>>, vector<8x32xbf16>,
    } else {
    }
    return
  }
  func.func @transform_0(%arg0: i32, %arg1: i32, %arg2: i32) -> (i32, i32) {
    %c0_i32 = arith.constant 0 : i32
    return %arg0, %arg2 : i32, i32
  }
  func.func @transform_1(%arg0: i32, %arg1: i32, %arg2: i32) -> (i32, i32) {
    %c0_i32 = arith.constant 0 : i32
    return %arg2, %arg1 : i32, i32
  }
  func.func @transform_2(%arg0: i32, %arg1: i32, %arg2: i32) -> (i32, i32) {
    %c0_i32 = arith.constant 0 : i32
    %c0_i32_0 = arith.constant 0 : i32
    return %c0_i32, %arg1 : i32, i32
  }
  func.func @transform_3(%arg0: i32, %arg1: i32, %arg2: i32) -> (i32, i32) {
    %c0_i32 = arith.constant 0 : i32
    return %arg0, %arg1 : i32, i32
  }
  func.func @transform_4(%arg0: i32, %arg1: i32, %arg2: i32) -> (i32, i32) {
    %c0_i32 = arith.constant 0 : i32
    return %arg0, %arg1 : i32, i32
  }
}

module attributes {stable_mosaic.version = 11 : i64} {
  func.func @kernel(%arg0: i32, %arg1: i32, %arg2: i32, %arg3: memref<8x32xbf16, #tpu.memory_space<vmem>>, %arg4: memref<32x64xbf16, #tpu.memory_space<vmem>>, %arg5: memref<1x32xbf16, #tpu.memory_space<vmem>>, %arg6: memref<1x32xbf16, #tpu.memory_space<vmem>>, %arg7: memref<1x64xbf16, #tpu.memory_space<vmem>>, %arg8: memref<8x64xbf16, #tpu.memory_space<vmem>>, %arg9: memref<8x64xf32, #tpu.memory_space<vmem>>) attributes {dimension_semantics = [#tpu.dimension_semantics<parallel>, #tpu.dimension_semantics<parallel>, #tpu.dimension_semantics<arbitrary>], iteration_bounds = array<i64: 1, 1, 1>, scalar_prefetch = 0 : i64, scratch_operands = 1 : i64, tpu.core_type = #tpu.core_type<tc>, window_params = [{transform_indices = @transform_0, window_bounds = array<i64: 8, 32>}, {transform_indices = @transform_1, window_bounds = array<i64: 32, 64>}, {pipeline_mode = #tpu.pipeline_mode<synchronous>, transform_indices = @transform_2, window_bounds = array<i64: 1, 32>}, {pipeline_mode = #tpu.pipeline_mode<synchronous>, transform_indices = @transform_3, window_bounds = array<i64: 1, 32>}, {transform_indices = @transform_4, window_bounds = array<i64: 1, 64>}, {transform_indices = @transform_5, window_bounds = array<i64: 8, 64>}]} {
    %c0_i32 = arith.constant 0 : i32
    %0 = arith.cmpi eq, %arg2, %c0_i32 : i32
    %1 = arith.extui %0 : i1 to i32
    %c0_i32_0 = arith.constant 0 : i32
    %2 = arith.cmpi ne, %1, %c0_i32_0 : i32
    scf.if %2 {
      %cst_19 = arith.constant 0.000000e+00 : f32
      %42 = vector.broadcast %cst_19 : f32 to vector<8x64xf32>
      %c0_20 = arith.constant 0 : index
      %c0_21 = arith.constant 0 : index
      %43 = vector.load %arg9[%c0_20, %c0_21] : memref<8x64xf32, #tpu.memory_space<vmem>>, vector<8x64xf32>
      tpu.vector_store %arg9[%c0_20, %c0_21], %42 {strides = array<i32>} : memref<8x64xf32, #tpu.memory_space<vmem>>, vector<8x64xf32>,
    } else {
    }
    %c0 = arith.constant 0 : index
    %c0_1 = arith.constant 0 : index
    %3 = vector.load %arg3[%c0, %c0_1] : memref<8x32xbf16, #tpu.memory_space<vmem>>, vector<8x32xbf16>
    %4 = arith.extf %3 : vector<8x32xbf16> to vector<8x32xf32>
    %cst = arith.constant dense<0.000000e+00> : vector<8xf32>
    %5 = vector.multi_reduction <add>, %4, %cst [1] : vector<8x32xf32> to vector<8xf32>
    %6 = vector.shape_cast %5 : vector<8xf32> to vector<8x1xf32>
    %cst_2 = arith.constant 3.200000e+01 : f32
    %7 = vector.broadcast %cst_2 : f32 to vector<8x1xf32>
    %8 = arith.divf %6, %7 : vector<8x1xf32>
    %9 = vector.broadcast %8 : vector<8x1xf32> to vector<8x32xf32>
    %10 = arith.subf %4, %9 : vector<8x32xf32>
    %11 = vector.broadcast %8 : vector<8x1xf32> to vector<8x32xf32>
    %12 = arith.subf %4, %11 : vector<8x32xf32>
    %13 = arith.mulf %10, %12 : vector<8x32xf32>
    %cst_3 = arith.constant dense<0.000000e+00> : vector<8xf32>
    %14 = vector.multi_reduction <add>, %13, %cst_3 [1] : vector<8x32xf32> to vector<8xf32>
    %15 = vector.shape_cast %14 : vector<8xf32> to vector<8x1xf32>
    %cst_4 = arith.constant 3.200000e+01 : f32
    %16 = vector.broadcast %cst_4 : f32 to vector<8x1xf32>
    %17 = arith.divf %15, %16 : vector<8x1xf32>
    %18 = vector.broadcast %8 : vector<8x1xf32> to vector<8x32xf32>
    %19 = arith.subf %4, %18 : vector<8x32xf32>
    %cst_5 = arith.constant 9.99999997E-7 : f32
    %20 = vector.broadcast %cst_5 : f32 to vector<8x1xf32>
    %21 = arith.addf %17, %20 : vector<8x1xf32>
    %22 = math.rsqrt %21 : vector<8x1xf32>
    %23 = vector.broadcast %22 : vector<8x1xf32> to vector<8x32xf32>
    %24 = arith.mulf %19, %23 : vector<8x32xf32>
    %c0_6 = arith.constant 0 : index
    %c0_7 = arith.constant 0 : index
    %25 = vector.load %arg5[%c0_6, %c0_7] : memref<1x32xbf16, #tpu.memory_space<vmem>>, vector<1x32xbf16>
    %26 = arith.extf %25 : vector<1x32xbf16> to vector<1x32xf32>
    %27 = vector.broadcast %26 : vector<1x32xf32> to vector<8x32xf32>
    %28 = arith.mulf %24, %27 : vector<8x32xf32>
    %c0_8 = arith.constant 0 : index
    %c0_9 = arith.constant 0 : index
    %29 = vector.load %arg6[%c0_8, %c0_9] : memref<1x32xbf16, #tpu.memory_space<vmem>>, vector<1x32xbf16>
    %30 = arith.extf %29 : vector<1x32xbf16> to vector<1x32xf32>
    %31 = vector.broadcast %30 : vector<1x32xf32> to vector<8x32xf32>
    %32 = arith.addf %28, %31 : vector<8x32xf32>
    %33 = arith.truncf %32 : vector<8x32xf32> to vector<8x32xbf16>
    %c0_10 = arith.constant 0 : index
    %c0_11 = arith.constant 0 : index
    %34 = vector.load %arg9[%c0_10, %c0_11] : memref<8x64xf32, #tpu.memory_space<vmem>>, vector<8x64xf32>
    %c0_12 = arith.constant 0 : index
    %c0_13 = arith.constant 0 : index
    %35 = vector.load %arg4[%c0_12, %c0_13] : memref<32x64xbf16, #tpu.memory_space<vmem>>, vector<32x64xbf16>
    %cst_14 = arith.constant dense<0.000000e+00> : vector<8x64xf32>
    %36 = tpu.matmul %33, %35, %cst_14 {dimension_numbers = #tpu.dot_dimension_numbers<[1], [0], [0], [1], [0, 0, 1, 1], [], []>} : vector<8x32xbf16>, vector<32x64xbf16>, vector<8x64xf32> -> vector<8x64xf32>
    %37 = arith.addf %34, %36 : vector<8x64xf32>
    %c0_15 = arith.constant 0 : index
    %c0_16 = arith.constant 0 : index
    %38 = vector.load %arg9[%c0_15, %c0_16] : memref<8x64xf32, #tpu.memory_space<vmem>>, vector<8x64xf32>
    tpu.vector_store %arg9[%c0_15, %c0_16], %37 {strides = array<i32>} : memref<8x64xf32, #tpu.memory_space<vmem>>, vector<8x64xf32>,
    %c0_i32_17 = arith.constant 0 : i32
    %39 = arith.cmpi eq, %arg2, %c0_i32_17 : i32
    %40 = arith.extui %39 : i1 to i32
    %c0_i32_18 = arith.constant 0 : i32
    %41 = arith.cmpi ne, %40, %c0_i32_18 : i32
    scf.if %41 {
      %c0_19 = arith.constant 0 : index
      %c0_20 = arith.constant 0 : index
      %42 = vector.load %arg9[%c0_19, %c0_20] : memref<8x64xf32, #tpu.memory_space<vmem>>, vector<8x64xf32>
      %c0_21 = arith.constant 0 : index
      %c0_22 = arith.constant 0 : index
      %43 = vector.load %arg7[%c0_21, %c0_22] : memref<1x64xbf16, #tpu.memory_space<vmem>>, vector<1x64xbf16>
      %44 = arith.extf %43 : vector<1x64xbf16> to vector<1x64xf32>
      %45 = vector.broadcast %44 : vector<1x64xf32> to vector<8x64xf32>
      %46 = arith.addf %42, %45 : vector<8x64xf32>
      %cst_23 = arith.constant 5.000000e-01 : f32
      %47 = vector.broadcast %cst_23 : f32 to vector<8x64xf32>
      %48 = arith.mulf %47, %46 : vector<8x64xf32>
      %cst_24 = arith.constant 4.471500e-02 : f32
      %49 = vector.broadcast %cst_24 : f32 to vector<8x64xf32>
      %50 = arith.mulf %49, %46 : vector<8x64xf32>
      %51 = arith.mulf %50, %46 : vector<8x64xf32>
      %52 = arith.mulf %51, %46 : vector<8x64xf32>
      %53 = arith.addf %46, %52 : vector<8x64xf32>
      %cst_25 = arith.constant 0.797884583 : f32
      %54 = vector.broadcast %cst_25 : f32 to vector<8x64xf32>
      %55 = arith.mulf %54, %53 : vector<8x64xf32>
      %56 = math.tanh %55 : vector<8x64xf32>
      %cst_26 = arith.constant 1.000000e+00 : f32
      %57 = vector.broadcast %cst_26 : f32 to vector<8x64xf32>
      %58 = arith.addf %57, %56 : vector<8x64xf32>
      %59 = arith.mulf %48, %58 : vector<8x64xf32>
      %60 = arith.truncf %59 : vector<8x64xf32> to vector<8x64xbf16>
      %c0_27 = arith.constant 0 : index
      %c0_28 = arith.constant 0 : index
      %61 = vector.load %arg8[%c0_27, %c0_28] : memref<8x64xbf16, #tpu.memory_space<vmem>>, vector<8x64xbf16>
      tpu.vector_store %arg8[%c0_27, %c0_28], %60 {strides = array<i32>} : memref<8x64xbf16, #tpu.memory_space<vmem>>, vector<8x64xbf16>,
    } else {
    }
    return
  }
  func.func @transform_0(%arg0: i32, %arg1: i32, %arg2: i32) -> (i32, i32) {
    %c0_i32 = arith.constant 0 : i32
    return %arg0, %arg2 : i32, i32
  }
  func.func @transform_1(%arg0: i32, %arg1: i32, %arg2: i32) -> (i32, i32) {
    %c0_i32 = arith.constant 0 : i32
    return %arg2, %arg1 : i32, i32
  }
  func.func @transform_2(%arg0: i32, %arg1: i32, %arg2: i32) -> (i32, i32) {
    %c0_i32 = arith.constant 0 : i32
    %c0_i32_0 = arith.constant 0 : i32
    %c0_i32_1 = arith.constant 0 : i32
    return %c0_i32, %c0_i32_0 : i32, i32
  }
  func.func @transform_3(%arg0: i32, %arg1: i32, %arg2: i32) -> (i32, i32) {
    %c0_i32 = arith.constant 0 : i32
    %c0_i32_0 = arith.constant 0 : i32
    %c0_i32_1 = arith.constant 0 : i32
    return %c0_i32, %c0_i32_0 : i32, i32
  }
  func.func @transform_4(%arg0: i32, %arg1: i32, %arg2: i32) -> (i32, i32) {
    %c0_i32 = arith.constant 0 : i32
    %c0_i32_0 = arith.constant 0 : i32
    return %c0_i32, %arg1 : i32, i32
  }
  func.func @transform_5(%arg0: i32, %arg1: i32, %arg2: i32) -> (i32, i32) {
    %c0_i32 = arith.constant 0 : i32
    return %arg0, %arg1 : i32, i32
  }
}

module attributes {stable_mosaic.version = 11 : i64} {
  func.func @kernel(%arg0: i32, %arg1: i32, %arg2: i32, %arg3: memref<8x64xbf16, #tpu.memory_space<vmem>>, %arg4: memref<64x32xbf16, #tpu.memory_space<vmem>>, %arg5: memref<1x32xbf16, #tpu.memory_space<vmem>>, %arg6: memref<8x32xbf16, #tpu.memory_space<vmem>>, %arg7: memref<8x32xbf16, #tpu.memory_space<vmem>>, %arg8: memref<8x32xf32, #tpu.memory_space<vmem>>) attributes {dimension_semantics = [#tpu.dimension_semantics<parallel>, #tpu.dimension_semantics<parallel>, #tpu.dimension_semantics<arbitrary>], iteration_bounds = array<i64: 1, 1, 1>, scalar_prefetch = 0 : i64, scratch_operands = 1 : i64, tpu.core_type = #tpu.core_type<tc>, window_params = [{transform_indices = @transform_0, window_bounds = array<i64: 8, 64>}, {transform_indices = @transform_1, window_bounds = array<i64: 64, 32>}, {transform_indices = @transform_2, window_bounds = array<i64: 1, 32>}, {transform_indices = @transform_3, window_bounds = array<i64: 8, 32>}, {transform_indices = @transform_4, window_bounds = array<i64: 8, 32>}]} {
    %c0_i32 = arith.constant 0 : i32
    %0 = arith.cmpi eq, %arg2, %c0_i32 : i32
    %1 = arith.extui %0 : i1 to i32
    %c0_i32_0 = arith.constant 0 : i32
    %2 = arith.cmpi ne, %1, %c0_i32_0 : i32
    scf.if %2 {
      %cst_10 = arith.constant 0.000000e+00 : f32
      %12 = vector.broadcast %cst_10 : f32 to vector<8x32xf32>
      %c0_11 = arith.constant 0 : index
      %c0_12 = arith.constant 0 : index
      %13 = vector.load %arg8[%c0_11, %c0_12] : memref<8x32xf32, #tpu.memory_space<vmem>>, vector<8x32xf32>
      tpu.vector_store %arg8[%c0_11, %c0_12], %12 {strides = array<i32>} : memref<8x32xf32, #tpu.memory_space<vmem>>, vector<8x32xf32>,
    } else {
    }
    %c0 = arith.constant 0 : index
    %c0_1 = arith.constant 0 : index
    %3 = vector.load %arg3[%c0, %c0_1] : memref<8x64xbf16, #tpu.memory_space<vmem>>, vector<8x64xbf16>
    %c0_2 = arith.constant 0 : index
    %c0_3 = arith.constant 0 : index
    %4 = vector.load %arg8[%c0_2, %c0_3] : memref<8x32xf32, #tpu.memory_space<vmem>>, vector<8x32xf32>
    %c0_4 = arith.constant 0 : index
    %c0_5 = arith.constant 0 : index
    %5 = vector.load %arg4[%c0_4, %c0_5] : memref<64x32xbf16, #tpu.memory_space<vmem>>, vector<64x32xbf16>
    %cst = arith.constant dense<0.000000e+00> : vector<8x32xf32>
    %6 = tpu.matmul %3, %5, %cst {dimension_numbers = #tpu.dot_dimension_numbers<[1], [0], [0], [1], [0, 0, 1, 1], [], []>} : vector<8x64xbf16>, vector<64x32xbf16>, vector<8x32xf32> -> vector<8x32xf32>
    %7 = arith.addf %4, %6 : vector<8x32xf32>
    %c0_6 = arith.constant 0 : index
    %c0_7 = arith.constant 0 : index
    %8 = vector.load %arg8[%c0_6, %c0_7] : memref<8x32xf32, #tpu.memory_space<vmem>>, vector<8x32xf32>
    tpu.vector_store %arg8[%c0_6, %c0_7], %7 {strides = array<i32>} : memref<8x32xf32, #tpu.memory_space<vmem>>, vector<8x32xf32>,
    %c0_i32_8 = arith.constant 0 : i32
    %9 = arith.cmpi eq, %arg2, %c0_i32_8 : i32
    %10 = arith.extui %9 : i1 to i32
    %c0_i32_9 = arith.constant 0 : i32
    %11 = arith.cmpi ne, %10, %c0_i32_9 : i32
    scf.if %11 {
      %c0_10 = arith.constant 0 : index
      %c0_11 = arith.constant 0 : index
      %12 = vector.load %arg8[%c0_10, %c0_11] : memref<8x32xf32, #tpu.memory_space<vmem>>, vector<8x32xf32>
      %c0_12 = arith.constant 0 : index
      %c0_13 = arith.constant 0 : index
      %13 = vector.load %arg5[%c0_12, %c0_13] : memref<1x32xbf16, #tpu.memory_space<vmem>>, vector<1x32xbf16>
      %14 = arith.extf %13 : vector<1x32xbf16> to vector<1x32xf32>
      %15 = vector.broadcast %14 : vector<1x32xf32> to vector<8x32xf32>
      %16 = arith.addf %12, %15 : vector<8x32xf32>
      %c0_14 = arith.constant 0 : index
      %c0_15 = arith.constant 0 : index
      %17 = vector.load %arg6[%c0_14, %c0_15] : memref<8x32xbf16, #tpu.memory_space<vmem>>, vector<8x32xbf16>
      %18 = arith.extf %17 : vector<8x32xbf16> to vector<8x32xf32>
      %19 = arith.addf %16, %18 : vector<8x32xf32>
      %20 = arith.truncf %19 : vector<8x32xf32> to vector<8x32xbf16>
      %c0_16 = arith.constant 0 : index
      %c0_17 = arith.constant 0 : index
      %21 = vector.load %arg7[%c0_16, %c0_17] : memref<8x32xbf16, #tpu.memory_space<vmem>>, vector<8x32xbf16>
      tpu.vector_store %arg7[%c0_16, %c0_17], %20 {strides = array<i32>} : memref<8x32xbf16, #tpu.memory_space<vmem>>, vector<8x32xbf16>,
    } else {
    }
    return
  }
  func.func @transform_0(%arg0: i32, %arg1: i32, %arg2: i32) -> (i32, i32) {
    %c0_i32 = arith.constant 0 : i32
    return %arg0, %arg2 : i32, i32
  }
  func.func @transform_1(%arg0: i32, %arg1: i32, %arg2: i32) -> (i32, i32) {
    %c0_i32 = arith.constant 0 : i32
    return %arg2, %arg1 : i32, i32
  }
  func.func @transform_2(%arg0: i32, %arg1: i32, %arg2: i32) -> (i32, i32) {
    %c0_i32 = arith.constant 0 : i32
    %c0_i32_0 = arith.constant 0 : i32
    return %c0_i32, %arg1 : i32, i32
  }
  func.func @transform_3(%arg0: i32, %arg1: i32, %arg2: i32) -> (i32, i32) {
    %c0_i32 = arith.constant 0 : i32
    return %arg0, %arg1 : i32, i32
  }
  func.func @transform_4(%arg0: i32, %arg1: i32, %arg2: i32) -> (i32, i32) {
    %c0_i32 = arith.constant 0 : i32
    return %arg0, %arg1 : i32, i32
  }
}

module attributes {stable_mosaic.version = 11 : i64} {
  func.func @kernel(%arg0: i32, %arg1: i32, %arg2: i32, %arg3: memref<8x32xbf16, #tpu.memory_space<vmem>>, %arg4: memref<32x64xbf16, #tpu.memory_space<vmem>>, %arg5: memref<1x32xbf16, #tpu.memory_space<vmem>>, %arg6: memref<1x32xbf16, #tpu.memory_space<vmem>>, %arg7: memref<1x64xbf16, #tpu.memory_space<vmem>>, %arg8: memref<8x64xbf16, #tpu.memory_space<vmem>>, %arg9: memref<8x64xf32, #tpu.memory_space<vmem>>) attributes {dimension_semantics = [#tpu.dimension_semantics<parallel>, #tpu.dimension_semantics<parallel>, #tpu.dimension_semantics<arbitrary>], iteration_bounds = array<i64: 1, 1, 1>, scalar_prefetch = 0 : i64, scratch_operands = 1 : i64, tpu.core_type = #tpu.core_type<tc>, window_params = [{transform_indices = @transform_0, window_bounds = array<i64: 8, 32>}, {transform_indices = @transform_1, window_bounds = array<i64: 32, 64>}, {pipeline_mode = #tpu.pipeline_mode<synchronous>, transform_indices = @transform_2, window_bounds = array<i64: 1, 32>}, {pipeline_mode = #tpu.pipeline_mode<synchronous>, transform_indices = @transform_3, window_bounds = array<i64: 1, 32>}, {transform_indices = @transform_4, window_bounds = array<i64: 1, 64>}, {transform_indices = @transform_5, window_bounds = array<i64: 8, 64>}]} {
    %c0_i32 = arith.constant 0 : i32
    %0 = arith.cmpi eq, %arg2, %c0_i32 : i32
    %1 = arith.extui %0 : i1 to i32
    %c0_i32_0 = arith.constant 0 : i32
    %2 = arith.cmpi ne, %1, %c0_i32_0 : i32
    scf.if %2 {
      %cst_19 = arith.constant 0.000000e+00 : f32
      %42 = vector.broadcast %cst_19 : f32 to vector<8x64xf32>
      %c0_20 = arith.constant 0 : index
      %c0_21 = arith.constant 0 : index
      %43 = vector.load %arg9[%c0_20, %c0_21] : memref<8x64xf32, #tpu.memory_space<vmem>>, vector<8x64xf32>
      tpu.vector_store %arg9[%c0_20, %c0_21], %42 {strides = array<i32>} : memref<8x64xf32, #tpu.memory_space<vmem>>, vector<8x64xf32>,
    } else {
    }
    %c0 = arith.constant 0 : index
    %c0_1 = arith.constant 0 : index
    %3 = vector.load %arg3[%c0, %c0_1] : memref<8x32xbf16, #tpu.memory_space<vmem>>, vector<8x32xbf16>
    %4 = arith.extf %3 : vector<8x32xbf16> to vector<8x32xf32>
    %cst = arith.constant dense<0.000000e+00> : vector<8xf32>
    %5 = vector.multi_reduction <add>, %4, %cst [1] : vector<8x32xf32> to vector<8xf32>
    %6 = vector.shape_cast %5 : vector<8xf32> to vector<8x1xf32>
    %cst_2 = arith.constant 3.200000e+01 : f32
    %7 = vector.broadcast %cst_2 : f32 to vector<8x1xf32>
    %8 = arith.divf %6, %7 : vector<8x1xf32>
    %9 = vector.broadcast %8 : vector<8x1xf32> to vector<8x32xf32>
    %10 = arith.subf %4, %9 : vector<8x32xf32>
    %11 = vector.broadcast %8 : vector<8x1xf32> to vector<8x32xf32>
    %12 = arith.subf %4, %11 : vector<8x32xf32>
    %13 = arith.mulf %10, %12 : vector<8x32xf32>
    %cst_3 = arith.constant dense<0.000000e+00> : vector<8xf32>
    %14 = vector.multi_reduction <add>, %13, %cst_3 [1] : vector<8x32xf32> to vector<8xf32>
    %15 = vector.shape_cast %14 : vector<8xf32> to vector<8x1xf32>
    %cst_4 = arith.constant 3.200000e+01 : f32
    %16 = vector.broadcast %cst_4 : f32 to vector<8x1xf32>
    %17 = arith.divf %15, %16 : vector<8x1xf32>
    %18 = vector.broadcast %8 : vector<8x1xf32> to vector<8x32xf32>
    %19 = arith.subf %4, %18 : vector<8x32xf32>
    %cst_5 = arith.constant 9.99999997E-7 : f32
    %20 = vector.broadcast %cst_5 : f32 to vector<8x1xf32>
    %21 = arith.addf %17, %20 : vector<8x1xf32>
    %22 = math.rsqrt %21 : vector<8x1xf32>
    %23 = vector.broadcast %22 : vector<8x1xf32> to vector<8x32xf32>
    %24 = arith.mulf %19, %23 : vector<8x32xf32>
    %c0_6 = arith.constant 0 : index
    %c0_7 = arith.constant 0 : index
    %25 = vector.load %arg5[%c0_6, %c0_7] : memref<1x32xbf16, #tpu.memory_space<vmem>>, vector<1x32xbf16>
    %26 = arith.extf %25 : vector<1x32xbf16> to vector<1x32xf32>
    %27 = vector.broadcast %26 : vector<1x32xf32> to vector<8x32xf32>
    %28 = arith.mulf %24, %27 : vector<8x32xf32>
    %c0_8 = arith.constant 0 : index
    %c0_9 = arith.constant 0 : index
    %29 = vector.load %arg6[%c0_8, %c0_9] : memref<1x32xbf16, #tpu.memory_space<vmem>>, vector<1x32xbf16>
    %30 = arith.extf %29 : vector<1x32xbf16> to vector<1x32xf32>
    %31 = vector.broadcast %30 : vector<1x32xf32> to vector<8x32xf32>
    %32 = arith.addf %28, %31 : vector<8x32xf32>
    %33 = arith.truncf %32 : vector<8x32xf32> to vector<8x32xbf16>
    %c0_10 = arith.constant 0 : index
    %c0_11 = arith.constant 0 : index
    %34 = vector.load %arg9[%c0_10, %c0_11] : memref<8x64xf32, #tpu.memory_space<vmem>>, vector<8x64xf32>
    %c0_12 = arith.constant 0 : index
    %c0_13 = arith.constant 0 : index
    %35 = vector.load %arg4[%c0_12, %c0_13] : memref<32x64xbf16, #tpu.memory_space<vmem>>, vector<32x64xbf16>
    %cst_14 = arith.constant dense<0.000000e+00> : vector<8x64xf32>
    %36 = tpu.matmul %33, %35, %cst_14 {dimension_numbers = #tpu.dot_dimension_numbers<[1], [0], [0], [1], [0, 0, 1, 1], [], []>} : vector<8x32xbf16>, vector<32x64xbf16>, vector<8x64xf32> -> vector<8x64xf32>
    %37 = arith.addf %34, %36 : vector<8x64xf32>
    %c0_15 = arith.constant 0 : index
    %c0_16 = arith.constant 0 : index
    %38 = vector.load %arg9[%c0_15, %c0_16] : memref<8x64xf32, #tpu.memory_space<vmem>>, vector<8x64xf32>
    tpu.vector_store %arg9[%c0_15, %c0_16], %37 {strides = array<i32>} : memref<8x64xf32, #tpu.memory_space<vmem>>, vector<8x64xf32>,
    %c0_i32_17 = arith.constant 0 : i32
    %39 = arith.cmpi eq, %arg2, %c0_i32_17 : i32
    %40 = arith.extui %39 : i1 to i32
    %c0_i32_18 = arith.constant 0 : i32
    %41 = arith.cmpi ne, %40, %c0_i32_18 : i32
    scf.if %41 {
      %c0_19 = arith.constant 0 : index
      %c0_20 = arith.constant 0 : index
      %42 = vector.load %arg9[%c0_19, %c0_20] : memref<8x64xf32, #tpu.memory_space<vmem>>, vector<8x64xf32>
      %c0_21 = arith.constant 0 : index
      %c0_22 = arith.constant 0 : index
      %43 = vector.load %arg7[%c0_21, %c0_22] : memref<1x64xbf16, #tpu.memory_space<vmem>>, vector<1x64xbf16>
      %44 = arith.extf %43 : vector<1x64xbf16> to vector<1x64xf32>
      %45 = vector.broadcast %44 : vector<1x64xf32> to vector<8x64xf32>
      %46 = arith.addf %42, %45 : vector<8x64xf32>
      %47 = arith.truncf %46 : vector<8x64xf32> to vector<8x64xbf16>
      %c0_23 = arith.constant 0 : index
      %c0_24 = arith.constant 0 : index
      %48 = vector.load %arg8[%c0_23, %c0_24] : memref<8x64xbf16, #tpu.memory_space<vmem>>, vector<8x64xbf16>
      tpu.vector_store %arg8[%c0_23, %c0_24], %47 {strides = array<i32>} : memref<8x64xbf16, #tpu.memory_space<vmem>>, vector<8x64xbf16>,
    } else {
    }
    return
  }
  func.func @transform_0(%arg0: i32, %arg1: i32, %arg2: i32) -> (i32, i32) {
    %c0_i32 = arith.constant 0 : i32
    return %arg0, %arg2 : i32, i32
  }
  func.func @transform_1(%arg0: i32, %arg1: i32, %arg2: i32) -> (i32, i32) {
    %c0_i32 = arith.constant 0 : i32
    return %arg2, %arg1 : i32, i32
  }
  func.func @transform_2(%arg0: i32, %arg1: i32, %arg2: i32) -> (i32, i32) {
    %c0_i32 = arith.constant 0 : i32
    %c0_i32_0 = arith.constant 0 : i32
    %c0_i32_1 = arith.constant 0 : i32
    return %c0_i32, %c0_i32_0 : i32, i32
  }
  func.func @transform_3(%arg0: i32, %arg1: i32, %arg2: i32) -> (i32, i32) {
    %c0_i32 = arith.constant 0 : i32
    %c0_i32_0 = arith.constant 0 : i32
    %c0_i32_1 = arith.constant 0 : i32
    return %c0_i32, %c0_i32_0 : i32, i32
  }
  func.func @transform_4(%arg0: i32, %arg1: i32, %arg2: i32) -> (i32, i32) {
    %c0_i32 = arith.constant 0 : i32
    %c0_i32_0 = arith.constant 0 : i32
    return %c0_i32, %arg1 : i32, i32
  }
  func.func @transform_5(%arg0: i32, %arg1: i32, %arg2: i32) -> (i32, i32) {
    %c0_i32 = arith.constant 0 : i32
    return %arg0, %arg1 : i32, i32
  }
}

module attributes {stable_mosaic.version = 11 : i64} {
  func.func @kernel(%arg0: i32, %arg1: i32, %arg2: i32, %arg3: memref<16x64xbf16, #tpu.memory_space<vmem>>, %arg4: memref<64x128xbf16, #tpu.memory_space<vmem>>, %arg5: memref<1x64xbf16, #tpu.memory_space<vmem>>, %arg6: memref<16x128xbf16, #tpu.memory_space<vmem>>, %arg7: memref<16x128xf32, #tpu.memory_space<vmem>>) attributes {dimension_semantics = [#tpu.dimension_semantics<parallel>, #tpu.dimension_semantics<parallel>, #tpu.dimension_semantics<arbitrary>], iteration_bounds = array<i64: 1, 1, 1>, scalar_prefetch = 0 : i64, scratch_operands = 1 : i64, tpu.core_type = #tpu.core_type<tc>, window_params = [{transform_indices = @transform_0, window_bounds = array<i64: 16, 64>}, {transform_indices = @transform_1, window_bounds = array<i64: 64, 128>}, {pipeline_mode = #tpu.pipeline_mode<synchronous>, transform_indices = @transform_2, window_bounds = array<i64: 1, 64>}, {transform_indices = @transform_3, window_bounds = array<i64: 16, 128>}]} {
    %c0_i32 = arith.constant 0 : i32
    %0 = arith.cmpi eq, %arg2, %c0_i32 : i32
    %1 = arith.extui %0 : i1 to i32
    %c0_i32_0 = arith.constant 0 : i32
    %2 = arith.cmpi ne, %1, %c0_i32_0 : i32
    scf.if %2 {
      %cst_16 = arith.constant 0.000000e+00 : f32
      %30 = vector.broadcast %cst_16 : f32 to vector<16x128xf32>
      %c0_17 = arith.constant 0 : index
      %c0_18 = arith.constant 0 : index
      %31 = vector.load %arg7[%c0_17, %c0_18] : memref<16x128xf32, #tpu.memory_space<vmem>>, vector<16x128xf32>
      tpu.vector_store %arg7[%c0_17, %c0_18], %30 {strides = array<i32>} : memref<16x128xf32, #tpu.memory_space<vmem>>, vector<16x128xf32>,
    } else {
    }
    %c0 = arith.constant 0 : index
    %c0_1 = arith.constant 0 : index
    %3 = vector.load %arg3[%c0, %c0_1] : memref<16x64xbf16, #tpu.memory_space<vmem>>, vector<16x64xbf16>
    %4 = arith.extf %3 : vector<16x64xbf16> to vector<16x64xf32>
    %5 = arith.mulf %4, %4 : vector<16x64xf32>
    %cst = arith.constant dense<0.000000e+00> : vector<16xf32>
    %6 = vector.multi_reduction <add>, %5, %cst [1] : vector<16x64xf32> to vector<16xf32>
    %7 = vector.shape_cast %6 : vector<16xf32> to vector<16x1xf32>
    %cst_2 = arith.constant 6.400000e+01 : f32
    %8 = vector.broadcast %cst_2 : f32 to vector<16x1xf32>
    %9 = arith.divf %7, %8 : vector<16x1xf32>
    %cst_3 = arith.constant 9.99999997E-7 : f32
    %10 = vector.broadcast %cst_3 : f32 to vector<16x1xf32>
    %11 = arith.addf %9, %10 : vector<16x1xf32>
    %12 = math.rsqrt %11 : vector<16x1xf32>
    %13 = vector.broadcast %12 : vector<16x1xf32> to vector<16x64xf32>
    %14 = arith.mulf %4, %13 : vector<16x64xf32>
    %c0_4 = arith.constant 0 : index
    %c0_5 = arith.constant 0 : index
    %15 = vector.load %arg5[%c0_4, %c0_5] : memref<1x64xbf16, #tpu.memory_space<vmem>>, vector<1x64xbf16>
    %16 = arith.extf %15 : vector<1x64xbf16> to vector<1x64xf32>
    %cst_6 = arith.constant 1.000000e+00 : f32
    %17 = vector.broadcast %cst_6 : f32 to vector<1x64xf32>
    %18 = arith.addf %17, %16 : vector<1x64xf32>
    %19 = vector.broadcast %18 : vector<1x64xf32> to vector<16x64xf32>
    %20 = arith.mulf %14, %19 : vector<16x64xf32>
    %21 = arith.truncf %20 : vector<16x64xf32> to vector<16x64xbf16>
    %c0_7 = arith.constant 0 : index
    %c0_8 = arith.constant 0 : index
    %22 = vector.load %arg7[%c0_7, %c0_8] : memref<16x128xf32, #tpu.memory_space<vmem>>, vector<16x128xf32>
    %c0_9 = arith.constant 0 : index
    %c0_10 = arith.constant 0 : index
    %23 = vector.load %arg4[%c0_9, %c0_10] : memref<64x128xbf16, #tpu.memory_space<vmem>>, vector<64x128xbf16>
    %cst_11 = arith.constant dense<0.000000e+00> : vector<16x128xf32>
    %24 = tpu.matmul %21, %23, %cst_11 {dimension_numbers = #tpu.dot_dimension_numbers<[1], [0], [0], [1], [0, 0, 1, 1], [], []>} : vector<16x64xbf16>, vector<64x128xbf16>, vector<16x128xf32> -> vector<16x128xf32>
    %25 = arith.addf %22, %24 : vector<16x128xf32>
    %c0_12 = arith.constant 0 : index
    %c0_13 = arith.constant 0 : index
    %26 = vector.load %arg7[%c0_12, %c0_13] : memref<16x128xf32, #tpu.memory_space<vmem>>, vector<16x128xf32>
    tpu.vector_store %arg7[%c0_12, %c0_13], %25 {strides = array<i32>} : memref<16x128xf32, #tpu.memory_space<vmem>>, vector<16x128xf32>,
    %c0_i32_14 = arith.constant 0 : i32
    %27 = arith.cmpi eq, %arg2, %c0_i32_14 : i32
    %28 = arith.extui %27 : i1 to i32
    %c0_i32_15 = arith.constant 0 : i32
    %29 = arith.cmpi ne, %28, %c0_i32_15 : i32
    scf.if %29 {
      %c0_16 = arith.constant 0 : index
      %c0_17 = arith.constant 0 : index
      %30 = vector.load %arg7[%c0_16, %c0_17] : memref<16x128xf32, #tpu.memory_space<vmem>>, vector<16x128xf32>
      %31 = arith.truncf %30 : vector<16x128xf32> to vector<16x128xbf16>
      %c0_18 = arith.constant 0 : index
      %c0_19 = arith.constant 0 : index
      %32 = vector.load %arg6[%c0_18, %c0_19] : memref<16x128xbf16, #tpu.memory_space<vmem>>, vector<16x128xbf16>
      tpu.vector_store %arg6[%c0_18, %c0_19], %31 {strides = array<i32>} : memref<16x128xbf16, #tpu.memory_space<vmem>>, vector<16x128xbf16>,
    } else {
    }
    return
  }
  func.func @transform_0(%arg0: i32, %arg1: i32, %arg2: i32) -> (i32, i32) {
    %c0_i32 = arith.constant 0 : i32
    return %arg0, %arg2 : i32, i32
  }
  func.func @transform_1(%arg0: i32, %arg1: i32, %arg2: i32) -> (i32, i32) {
    %c0_i32 = arith.constant 0 : i32
    return %arg2, %arg1 : i32, i32
  }
  func.func @transform_2(%arg0: i32, %arg1: i32, %arg2: i32) -> (i32, i32) {
    %c0_i32 = arith.constant 0 : i32
    %c0_i32_0 = arith.constant 0 : i32
    %c0_i32_1 = arith.constant 0 : i32
    return %c0_i32, %c0_i32_0 : i32, i32
  }
  func.func @transform_3(%arg0: i32, %arg1: i32, %arg2: i32) -> (i32, i32) {
    %c0_i32 = arith.constant 0 : i32
    return %arg0, %arg1 : i32, i32
  }
}

module attributes {stable_mosaic.version = 11 : i64} {
  func.func @_flash_attn_kernel(%arg0: i32, %arg1: i32, %arg2: i32, %arg3: memref<1x16x16xbf16, #tpu.memory_space<vmem>>, %arg4: memref<1x8x16xbf16, #tpu.memory_space<vmem>>, %arg5: memref<1x8x16xbf16, #tpu.memory_space<vmem>>, %arg6: memref<1x16x16xbf16, #tpu.memory_space<vmem>>, %arg7: memref<16x1xf32, #tpu.memory_space<vmem>>, %arg8: memref<16x1xf32, #tpu.memory_space<vmem>>, %arg9: memref<16x16xf32, #tpu.memory_space<vmem>>) attributes {dimension_semantics = [#tpu.dimension_semantics<parallel>, #tpu.dimension_semantics<parallel>, #tpu.dimension_semantics<arbitrary>], iteration_bounds = array<i64: 4, 1, 1>, scalar_prefetch = 0 : i64, scratch_operands = 3 : i64, tpu.core_type = #tpu.core_type<tc>, window_params = [{transform_indices = @transform_0, window_bounds = array<i64: 1, 16, 16>}, {transform_indices = @transform_1, window_bounds = array<i64: 1, 8, 16>}, {transform_indices = @transform_2, window_bounds = array<i64: 1, 8, 16>}, {transform_indices = @transform_3, window_bounds = array<i64: 1, 16, 16>}]} {
    %c0_i32 = arith.constant 0 : i32
    %0 = arith.cmpi eq, %arg2, %c0_i32 : i32
    %1 = arith.extui %0 : i1 to i32
    %c0_i32_0 = arith.constant 0 : i32
    %2 = arith.cmpi ne, %1, %c0_i32_0 : i32
    scf.if %2 {
      %cst_26 = arith.constant 0xFF800000 : f32
      %36 = vector.broadcast %cst_26 : f32 to vector<16x1xf32>
      %c0_27 = arith.constant 0 : index
      %c0_28 = arith.constant 0 : index
      %37 = vector.load %arg7[%c0_27, %c0_28] : memref<16x1xf32, #tpu.memory_space<vmem>>, vector<16x1xf32>
      tpu.vector_store %arg7[%c0_27, %c0_28], %36 {strides = array<i32>} : memref<16x1xf32, #tpu.memory_space<vmem>>, vector<16x1xf32>,
      %cst_29 = arith.constant 0.000000e+00 : f32
      %38 = vector.broadcast %cst_29 : f32 to vector<16x1xf32>
      %c0_30 = arith.constant 0 : index
      %c0_31 = arith.constant 0 : index
      %39 = vector.load %arg8[%c0_30, %c0_31] : memref<16x1xf32, #tpu.memory_space<vmem>>, vector<16x1xf32>
      tpu.vector_store %arg8[%c0_30, %c0_31], %38 {strides = array<i32>} : memref<16x1xf32, #tpu.memory_space<vmem>>, vector<16x1xf32>,
      %cst_32 = arith.constant 0.000000e+00 : f32
      %40 = vector.broadcast %cst_32 : f32 to vector<16x16xf32>
      %c0_33 = arith.constant 0 : index
      %c0_34 = arith.constant 0 : index
      %41 = vector.load %arg9[%c0_33, %c0_34] : memref<16x16xf32, #tpu.memory_space<vmem>>, vector<16x16xf32>
      tpu.vector_store %arg9[%c0_33, %c0_34], %40 {strides = array<i32>} : memref<16x16xf32, #tpu.memory_space<vmem>>, vector<16x16xf32>,
    } else {
    }
    %c0 = arith.constant 0 : index
    %c0_1 = arith.constant 0 : index
    %c0_2 = arith.constant 0 : index
    %3 = vector.load %arg3[%c0, %c0_1, %c0_2] : memref<1x16x16xbf16, #tpu.memory_space<vmem>>, vector<1x16x16xbf16>
    %4 = vector.shape_cast %3 : vector<1x16x16xbf16> to vector<16x16xbf16>
    %c0_3 = arith.constant 0 : index
    %c0_4 = arith.constant 0 : index
    %c0_5 = arith.constant 0 : index
    %5 = vector.load %arg4[%c0_3, %c0_4, %c0_5] : memref<1x8x16xbf16, #tpu.memory_space<vmem>>, vector<1x8x16xbf16>
    %6 = vector.shape_cast %5 : vector<1x8x16xbf16> to vector<8x16xbf16>
    %c0_6 = arith.constant 0 : index
    %c0_7 = arith.constant 0 : index
    %c0_8 = arith.constant 0 : index
    %7 = vector.load %arg5[%c0_6, %c0_7, %c0_8] : memref<1x8x16xbf16, #tpu.memory_space<vmem>>, vector<1x8x16xbf16>
    %8 = vector.shape_cast %7 : vector<1x8x16xbf16> to vector<8x16xbf16>
    %cst = arith.constant dense<0.000000e+00> : vector<16x8xf32>
    %9 = tpu.matmul %4, %6, %cst {dimension_numbers = #tpu.dot_dimension_numbers<[1], [1], [0], [0], [0, 0, 1, 0], [], []>} : vector<16x16xbf16>, vector<8x16xbf16>, vector<16x8xf32> -> vector<16x8xf32>
    %c0_9 = arith.constant 0 : index
    %c0_10 = arith.constant 0 : index
    %10 = vector.load %arg7[%c0_9, %c0_10] : memref<16x1xf32, #tpu.memory_space<vmem>>, vector<16x1xf32>
    %cst_11 = arith.constant dense<0xFF800000> : vector<16xf32>
    %11 = vector.multi_reduction <maximumf>, %9, %cst_11 [1] : vector<16x8xf32> to vector<16xf32>
    %12 = vector.shape_cast %11 : vector<16xf32> to vector<16x1xf32>
    %13 = arith.maximumf %10, %12 : vector<16x1xf32>
    %14 = arith.subf %10, %13 : vector<16x1xf32>
    %15 = math.exp %14 : vector<16x1xf32>
    %16 = vector.broadcast %13 : vector<16x1xf32> to vector<16x8xf32>
    %17 = arith.subf %9, %16 : vector<16x8xf32>
    %18 = math.exp %17 : vector<16x8xf32>
    %c0_12 = arith.constant 0 : index
    %c0_13 = arith.constant 0 : index
    %19 = vector.load %arg8[%c0_12, %c0_13] : memref<16x1xf32, #tpu.memory_space<vmem>>, vector<16x1xf32>
    %20 = arith.mulf %15, %19 : vector<16x1xf32>
    %cst_14 = arith.constant dense<0.000000e+00> : vector<16xf32>
    %21 = vector.multi_reduction <add>, %18, %cst_14 [1] : vector<16x8xf32> to vector<16xf32>
    %22 = vector.shape_cast %21 : vector<16xf32> to vector<16x1xf32>
    %23 = arith.addf %20, %22 : vector<16x1xf32>
    %c0_15 = arith.constant 0 : index
    %c0_16 = arith.constant 0 : index
    %24 = vector.load %arg8[%c0_15, %c0_16] : memref<16x1xf32, #tpu.memory_space<vmem>>, vector<16x1xf32>
    tpu.vector_store %arg8[%c0_15, %c0_16], %23 {strides = array<i32>} : memref<16x1xf32, #tpu.memory_space<vmem>>, vector<16x1xf32>,
    %c0_17 = arith.constant 0 : index
    %c0_18 = arith.constant 0 : index
    %25 = vector.load %arg9[%c0_17, %c0_18] : memref<16x16xf32, #tpu.memory_space<vmem>>, vector<16x16xf32>
    %26 = vector.broadcast %15 : vector<16x1xf32> to vector<16x16xf32>
    %27 = arith.mulf %26, %25 : vector<16x16xf32>
    %28 = arith.truncf %18 : vector<16x8xf32> to vector<16x8xbf16>
    %cst_19 = arith.constant dense<0.000000e+00> : vector<16x16xf32>
    %29 = tpu.matmul %28, %8, %cst_19 {dimension_numbers = #tpu.dot_dimension_numbers<[1], [0], [0], [1], [0, 0, 1, 1], [], []>} : vector<16x8xbf16>, vector<8x16xbf16>, vector<16x16xf32> -> vector<16x16xf32>
    %30 = arith.addf %27, %29 : vector<16x16xf32>
    %c0_20 = arith.constant 0 : index
    %c0_21 = arith.constant 0 : index
    %31 = vector.load %arg9[%c0_20, %c0_21] : memref<16x16xf32, #tpu.memory_space<vmem>>, vector<16x16xf32>
    tpu.vector_store %arg9[%c0_20, %c0_21], %30 {strides = array<i32>} : memref<16x16xf32, #tpu.memory_space<vmem>>, vector<16x16xf32>,
    %c0_22 = arith.constant 0 : index
    %c0_23 = arith.constant 0 : index
    %32 = vector.load %arg7[%c0_22, %c0_23] : memref<16x1xf32, #tpu.memory_space<vmem>>, vector<16x1xf32>
    tpu.vector_store %arg7[%c0_22, %c0_23], %13 {strides = array<i32>} : memref<16x1xf32, #tpu.memory_space<vmem>>, vector<16x1xf32>,
    %c0_i32_24 = arith.constant 0 : i32
    %33 = arith.cmpi eq, %arg2, %c0_i32_24 : i32
    %34 = arith.extui %33 : i1 to i32
    %c0_i32_25 = arith.constant 0 : i32
    %35 = arith.cmpi ne, %34, %c0_i32_25 : i32
    scf.if %35 {
      %c0_26 = arith.constant 0 : index
      %c0_27 = arith.constant 0 : index
      %36 = vector.load %arg9[%c0_26, %c0_27] : memref<16x16xf32, #tpu.memory_space<vmem>>, vector<16x16xf32>
      %c0_28 = arith.constant 0 : index
      %c0_29 = arith.constant 0 : index
      %37 = vector.load %arg8[%c0_28, %c0_29] : memref<16x1xf32, #tpu.memory_space<vmem>>, vector<16x1xf32>
      %38 = tpu.reciprocal %37 {approx = true} : vector<16x1xf32> -> vector<16x1xf32>
      %39 = vector.broadcast %38 : vector<16x1xf32> to vector<16x16xf32>
      %40 = arith.mulf %36, %39 : vector<16x16xf32>
      %41 = arith.truncf %40 : vector<16x16xf32> to vector<16x16xbf16>
      %c0_30 = arith.constant 0 : index
      %c0_31 = arith.constant 0 : index
      %c0_32 = arith.constant 0 : index
      %42 = vector.load %arg6[%c0_30, %c0_31, %c0_32] : memref<1x16x16xbf16, #tpu.memory_space<vmem>>, vector<1x16x16xbf16>
      %43 = vector.shape_cast %42 : vector<1x16x16xbf16> to vector<16x16xbf16>
      %44 = vector.shape_cast %41 : vector<16x16xbf16> to vector<1x16x16xbf16>
      tpu.vector_store %arg6[%c0_30, %c0_31, %c0_32], %44 {strides = array<i32>} : memref<1x16x16xbf16, #tpu.memory_space<vmem>>, vector<1x16x16xbf16>,
    } else {
    }
    return
  }
  func.func @transform_0(%arg0: i32, %arg1: i32, %arg2: i32) -> (i32, i32, i32) {
    %c0_i32 = arith.constant 0 : i32
    %c0_i32_0 = arith.constant 0 : i32
    return %arg0, %arg1, %c0_i32 : i32, i32, i32
  }
  func.func @transform_1(%arg0: i32, %arg1: i32, %arg2: i32) -> (i32, i32, i32) {
    %c0_i32 = arith.constant 0 : i32
    %c0_i32_0 = arith.constant 0 : i32
    return %arg0, %arg2, %c0_i32 : i32, i32, i32
  }
  func.func @transform_2(%arg0: i32, %arg1: i32, %arg2: i32) -> (i32, i32, i32) {
    %c0_i32 = arith.constant 0 : i32
    %c0_i32_0 = arith.constant 0 : i32
    return %arg0, %arg2, %c0_i32 : i32, i32, i32
  }
  func.func @transform_3(%arg0: i32, %arg1: i32, %arg2: i32) -> (i32, i32, i32) {
    %c0_i32 = arith.constant 0 : i32
    %c0_i32_0 = arith.constant 0 : i32
    return %arg0, %arg1, %c0_i32 : i32, i32, i32
  }
}

module attributes {stable_mosaic.version = 11 : i64} {
  func.func @kernel(%arg0: i32, %arg1: i32, %arg2: i32, %arg3: memref<16x64xbf16, #tpu.memory_space<vmem>>, %arg4: memref<64x64xbf16, #tpu.memory_space<vmem>>, %arg5: memref<16x64xbf16, #tpu.memory_space<vmem>>, %arg6: memref<16x64xbf16, #tpu.memory_space<vmem>>, %arg7: memref<16x64xf32, #tpu.memory_space<vmem>>) attributes {dimension_semantics = [#tpu.dimension_semantics<parallel>, #tpu.dimension_semantics<parallel>, #tpu.dimension_semantics<arbitrary>], iteration_bounds = array<i64: 1, 1, 1>, scalar_prefetch = 0 : i64, scratch_operands = 1 : i64, tpu.core_type = #tpu.core_type<tc>, window_params = [{transform_indices = @transform_0, window_bounds = array<i64: 16, 64>}, {transform_indices = @transform_1, window_bounds = array<i64: 64, 64>}, {transform_indices = @transform_2, window_bounds = array<i64: 16, 64>}, {transform_indices = @transform_3, window_bounds = array<i64: 16, 64>}]} {
    %c0_i32 = arith.constant 0 : i32
    %0 = arith.cmpi eq, %arg2, %c0_i32 : i32
    %1 = arith.extui %0 : i1 to i32
    %c0_i32_0 = arith.constant 0 : i32
    %2 = arith.cmpi ne, %1, %c0_i32_0 : i32
    scf.if %2 {
      %cst_10 = arith.constant 0.000000e+00 : f32
      %12 = vector.broadcast %cst_10 : f32 to vector<16x64xf32>
      %c0_11 = arith.constant 0 : index
      %c0_12 = arith.constant 0 : index
      %13 = vector.load %arg7[%c0_11, %c0_12] : memref<16x64xf32, #tpu.memory_space<vmem>>, vector<16x64xf32>
      tpu.vector_store %arg7[%c0_11, %c0_12], %12 {strides = array<i32>} : memref<16x64xf32, #tpu.memory_space<vmem>>, vector<16x64xf32>,
    } else {
    }
    %c0 = arith.constant 0 : index
    %c0_1 = arith.constant 0 : index
    %3 = vector.load %arg3[%c0, %c0_1] : memref<16x64xbf16, #tpu.memory_space<vmem>>, vector<16x64xbf16>
    %c0_2 = arith.constant 0 : index
    %c0_3 = arith.constant 0 : index
    %4 = vector.load %arg7[%c0_2, %c0_3] : memref<16x64xf32, #tpu.memory_space<vmem>>, vector<16x64xf32>
    %c0_4 = arith.constant 0 : index
    %c0_5 = arith.constant 0 : index
    %5 = vector.load %arg4[%c0_4, %c0_5] : memref<64x64xbf16, #tpu.memory_space<vmem>>, vector<64x64xbf16>
    %cst = arith.constant dense<0.000000e+00> : vector<16x64xf32>
    %6 = tpu.matmul %3, %5, %cst {dimension_numbers = #tpu.dot_dimension_numbers<[1], [0], [0], [1], [0, 0, 1, 1], [], []>} : vector<16x64xbf16>, vector<64x64xbf16>, vector<16x64xf32> -> vector<16x64xf32>
    %7 = arith.addf %4, %6 : vector<16x64xf32>
    %c0_6 = arith.constant 0 : index
    %c0_7 = arith.constant 0 : index
    %8 = vector.load %arg7[%c0_6, %c0_7] : memref<16x64xf32, #tpu.memory_space<vmem>>, vector<16x64xf32>
    tpu.vector_store %arg7[%c0_6, %c0_7], %7 {strides = array<i32>} : memref<16x64xf32, #tpu.memory_space<vmem>>, vector<16x64xf32>,
    %c0_i32_8 = arith.constant 0 : i32
    %9 = arith.cmpi eq, %arg2, %c0_i32_8 : i32
    %10 = arith.extui %9 : i1 to i32
    %c0_i32_9 = arith.constant 0 : i32
    %11 = arith.cmpi ne, %10, %c0_i32_9 : i32
    scf.if %11 {
      %c0_10 = arith.constant 0 : index
      %c0_11 = arith.constant 0 : index
      %12 = vector.load %arg7[%c0_10, %c0_11] : memref<16x64xf32, #tpu.memory_space<vmem>>, vector<16x64xf32>
      %c0_12 = arith.constant 0 : index
      %c0_13 = arith.constant 0 : index
      %13 = vector.load %arg5[%c0_12, %c0_13] : memref<16x64xbf16, #tpu.memory_space<vmem>>, vector<16x64xbf16>
      %14 = arith.extf %13 : vector<16x64xbf16> to vector<16x64xf32>
      %15 = arith.addf %12, %14 : vector<16x64xf32>
      %16 = arith.truncf %15 : vector<16x64xf32> to vector<16x64xbf16>
      %c0_14 = arith.constant 0 : index
      %c0_15 = arith.constant 0 : index
      %17 = vector.load %arg6[%c0_14, %c0_15] : memref<16x64xbf16, #tpu.memory_space<vmem>>, vector<16x64xbf16>
      tpu.vector_store %arg6[%c0_14, %c0_15], %16 {strides = array<i32>} : memref<16x64xbf16, #tpu.memory_space<vmem>>, vector<16x64xbf16>,
    } else {
    }
    return
  }
  func.func @transform_0(%arg0: i32, %arg1: i32, %arg2: i32) -> (i32, i32) {
    %c0_i32 = arith.constant 0 : i32
    return %arg0, %arg2 : i32, i32
  }
  func.func @transform_1(%arg0: i32, %arg1: i32, %arg2: i32) -> (i32, i32) {
    %c0_i32 = arith.constant 0 : i32
    return %arg2, %arg1 : i32, i32
  }
  func.func @transform_2(%arg0: i32, %arg1: i32, %arg2: i32) -> (i32, i32) {
    %c0_i32 = arith.constant 0 : i32
    return %arg0, %arg1 : i32, i32
  }
  func.func @transform_3(%arg0: i32, %arg1: i32, %arg2: i32) -> (i32, i32) {
    %c0_i32 = arith.constant 0 : i32
    return %arg0, %arg1 : i32, i32
  }
}

module attributes {stable_mosaic.version = 11 : i64} {
  func.func @kernel(%arg0: i32, %arg1: i32, %arg2: i32, %arg3: memref<16x64xbf16, #tpu.memory_space<vmem>>, %arg4: memref<64x128xbf16, #tpu.memory_space<vmem>>, %arg5: memref<64x128xbf16, #tpu.memory_space<vmem>>, %arg6: memref<1x64xbf16, #tpu.memory_space<vmem>>, %arg7: memref<16x128xbf16, #tpu.memory_space<vmem>>, %arg8: memref<16x128xf32, #tpu.memory_space<vmem>>, %arg9: memref<16x128xf32, #tpu.memory_space<vmem>>) attributes {dimension_semantics = [#tpu.dimension_semantics<parallel>, #tpu.dimension_semantics<parallel>, #tpu.dimension_semantics<arbitrary>], iteration_bounds = array<i64: 1, 1, 1>, scalar_prefetch = 0 : i64, scratch_operands = 2 : i64, tpu.core_type = #tpu.core_type<tc>, window_params = [{transform_indices = @transform_0, window_bounds = array<i64: 16, 64>}, {transform_indices = @transform_1, window_bounds = array<i64: 64, 128>}, {transform_indices = @transform_2, window_bounds = array<i64: 64, 128>}, {pipeline_mode = #tpu.pipeline_mode<synchronous>, transform_indices = @transform_3, window_bounds = array<i64: 1, 64>}, {transform_indices = @transform_4, window_bounds = array<i64: 16, 128>}]} {
    %c0_i32 = arith.constant 0 : i32
    %0 = arith.cmpi eq, %arg2, %c0_i32 : i32
    %1 = arith.extui %0 : i1 to i32
    %c0_i32_0 = arith.constant 0 : i32
    %2 = arith.cmpi ne, %1, %c0_i32_0 : i32
    scf.if %2 {
      %cst_23 = arith.constant 0.000000e+00 : f32
      %35 = vector.broadcast %cst_23 : f32 to vector<16x128xf32>
      %c0_24 = arith.constant 0 : index
      %c0_25 = arith.constant 0 : index
      %36 = vector.load %arg8[%c0_24, %c0_25] : memref<16x128xf32, #tpu.memory_space<vmem>>, vector<16x128xf32>
      tpu.vector_store %arg8[%c0_24, %c0_25], %35 {strides = array<i32>} : memref<16x128xf32, #tpu.memory_space<vmem>>, vector<16x128xf32>,
      %cst_26 = arith.constant 0.000000e+00 : f32
      %37 = vector.broadcast %cst_26 : f32 to vector<16x128xf32>
      %c0_27 = arith.constant 0 : index
      %c0_28 = arith.constant 0 : index
      %38 = vector.load %arg9[%c0_27, %c0_28] : memref<16x128xf32, #tpu.memory_space<vmem>>, vector<16x128xf32>
      tpu.vector_store %arg9[%c0_27, %c0_28], %37 {strides = array<i32>} : memref<16x128xf32, #tpu.memory_space<vmem>>, vector<16x128xf32>,
    } else {
    }
    %c0 = arith.constant 0 : index
    %c0_1 = arith.constant 0 : index
    %3 = vector.load %arg3[%c0, %c0_1] : memref<16x64xbf16, #tpu.memory_space<vmem>>, vector<16x64xbf16>
    %4 = arith.extf %3 : vector<16x64xbf16> to vector<16x64xf32>
    %5 = arith.mulf %4, %4 : vector<16x64xf32>
    %cst = arith.constant dense<0.000000e+00> : vector<16xf32>
    %6 = vector.multi_reduction <add>, %5, %cst [1] : vector<16x64xf32> to vector<16xf32>
    %7 = vector.shape_cast %6 : vector<16xf32> to vector<16x1xf32>
    %cst_2 = arith.constant 6.400000e+01 : f32
    %8 = vector.broadcast %cst_2 : f32 to vector<16x1xf32>
    %9 = arith.divf %7, %8 : vector<16x1xf32>
    %cst_3 = arith.constant 9.99999997E-7 : f32
    %10 = vector.broadcast %cst_3 : f32 to vector<16x1xf32>
    %11 = arith.addf %9, %10 : vector<16x1xf32>
    %12 = math.rsqrt %11 : vector<16x1xf32>
    %13 = vector.broadcast %12 : vector<16x1xf32> to vector<16x64xf32>
    %14 = arith.mulf %4, %13 : vector<16x64xf32>
    %c0_4 = arith.constant 0 : index
    %c0_5 = arith.constant 0 : index
    %15 = vector.load %arg6[%c0_4, %c0_5] : memref<1x64xbf16, #tpu.memory_space<vmem>>, vector<1x64xbf16>
    %16 = arith.extf %15 : vector<1x64xbf16> to vector<1x64xf32>
    %cst_6 = arith.constant 1.000000e+00 : f32
    %17 = vector.broadcast %cst_6 : f32 to vector<1x64xf32>
    %18 = arith.addf %17, %16 : vector<1x64xf32>
    %19 = vector.broadcast %18 : vector<1x64xf32> to vector<16x64xf32>
    %20 = arith.mulf %14, %19 : vector<16x64xf32>
    %21 = arith.truncf %20 : vector<16x64xf32> to vector<16x64xbf16>
    %c0_7 = arith.constant 0 : index
    %c0_8 = arith.constant 0 : index
    %22 = vector.load %arg8[%c0_7, %c0_8] : memref<16x128xf32, #tpu.memory_space<vmem>>, vector<16x128xf32>
    %c0_9 = arith.constant 0 : index
    %c0_10 = arith.constant 0 : index
    %23 = vector.load %arg4[%c0_9, %c0_10] : memref<64x128xbf16, #tpu.memory_space<vmem>>, vector<64x128xbf16>
    %cst_11 = arith.constant dense<0.000000e+00> : vector<16x128xf32>
    %24 = tpu.matmul %21, %23, %cst_11 {dimension_numbers = #tpu.dot_dimension_numbers<[1], [0], [0], [1], [0, 0, 1, 1], [], []>} : vector<16x64xbf16>, vector<64x128xbf16>, vector<16x128xf32> -> vector<16x128xf32>
    %25 = arith.addf %22, %24 : vector<16x128xf32>
    %c0_12 = arith.constant 0 : index
    %c0_13 = arith.constant 0 : index
    %26 = vector.load %arg8[%c0_12, %c0_13] : memref<16x128xf32, #tpu.memory_space<vmem>>, vector<16x128xf32>
    tpu.vector_store %arg8[%c0_12, %c0_13], %25 {strides = array<i32>} : memref<16x128xf32, #tpu.memory_space<vmem>>, vector<16x128xf32>,
    %c0_14 = arith.constant 0 : index
    %c0_15 = arith.constant 0 : index
    %27 = vector.load %arg9[%c0_14, %c0_15] : memref<16x128xf32, #tpu.memory_space<vmem>>, vector<16x128xf32>
    %c0_16 = arith.constant 0 : index
    %c0_17 = arith.constant 0 : index
    %28 = vector.load %arg5[%c0_16, %c0_17] : memref<64x128xbf16, #tpu.memory_space<vmem>>, vector<64x128xbf16>
    %cst_18 = arith.constant dense<0.000000e+00> : vector<16x128xf32>
    %29 = tpu.matmul %21, %28, %cst_18 {dimension_numbers = #tpu.dot_dimension_numbers<[1], [0], [0], [1], [0, 0, 1, 1], [], []>} : vector<16x64xbf16>, vector<64x128xbf16>, vector<16x128xf32> -> vector<16x128xf32>
    %30 = arith.addf %27, %29 : vector<16x128xf32>
    %c0_19 = arith.constant 0 : index
    %c0_20 = arith.constant 0 : index
    %31 = vector.load %arg9[%c0_19, %c0_20] : memref<16x128xf32, #tpu.memory_space<vmem>>, vector<16x128xf32>
    tpu.vector_store %arg9[%c0_19, %c0_20], %30 {strides = array<i32>} : memref<16x128xf32, #tpu.memory_space<vmem>>, vector<16x128xf32>,
    %c0_i32_21 = arith.constant 0 : i32
    %32 = arith.cmpi eq, %arg2, %c0_i32_21 : i32
    %33 = arith.extui %32 : i1 to i32
    %c0_i32_22 = arith.constant 0 : i32
    %34 = arith.cmpi ne, %33, %c0_i32_22 : i32
    scf.if %34 {
      %c0_23 = arith.constant 0 : index
      %c0_24 = arith.constant 0 : index
      %35 = vector.load %arg8[%c0_23, %c0_24] : memref<16x128xf32, #tpu.memory_space<vmem>>, vector<16x128xf32>
      %cst_25 = arith.constant 5.000000e-01 : f32
      %36 = vector.broadcast %cst_25 : f32 to vector<16x128xf32>
      %37 = arith.mulf %36, %35 : vector<16x128xf32>
      %cst_26 = arith.constant 4.471500e-02 : f32
      %38 = vector.broadcast %cst_26 : f32 to vector<16x128xf32>
      %39 = arith.mulf %38, %35 : vector<16x128xf32>
      %40 = arith.mulf %39, %35 : vector<16x128xf32>
      %41 = arith.mulf %40, %35 : vector<16x128xf32>
      %42 = arith.addf %35, %41 : vector<16x128xf32>
      %cst_27 = arith.constant 0.797884583 : f32
      %43 = vector.broadcast %cst_27 : f32 to vector<16x128xf32>
      %44 = arith.mulf %43, %42 : vector<16x128xf32>
      %45 = math.tanh %44 : vector<16x128xf32>
      %cst_28 = arith.constant 1.000000e+00 : f32
      %46 = vector.broadcast %cst_28 : f32 to vector<16x128xf32>
      %47 = arith.addf %46, %45 : vector<16x128xf32>
      %48 = arith.mulf %37, %47 : vector<16x128xf32>
      %c0_29 = arith.constant 0 : index
      %c0_30 = arith.constant 0 : index
      %49 = vector.load %arg9[%c0_29, %c0_30] : memref<16x128xf32, #tpu.memory_space<vmem>>, vector<16x128xf32>
      %50 = arith.mulf %48, %49 : vector<16x128xf32>
      %51 = arith.truncf %50 : vector<16x128xf32> to vector<16x128xbf16>
      %c0_31 = arith.constant 0 : index
      %c0_32 = arith.constant 0 : index
      %52 = vector.load %arg7[%c0_31, %c0_32] : memref<16x128xbf16, #tpu.memory_space<vmem>>, vector<16x128xbf16>
      tpu.vector_store %arg7[%c0_31, %c0_32], %51 {strides = array<i32>} : memref<16x128xbf16, #tpu.memory_space<vmem>>, vector<16x128xbf16>,
    } else {
    }
    return
  }
  func.func @transform_0(%arg0: i32, %arg1: i32, %arg2: i32) -> (i32, i32) {
    %c0_i32 = arith.constant 0 : i32
    return %arg0, %arg2 : i32, i32
  }
  func.func @transform_1(%arg0: i32, %arg1: i32, %arg2: i32) -> (i32, i32) {
    %c0_i32 = arith.constant 0 : i32
    return %arg2, %arg1 : i32, i32
  }
  func.func @transform_2(%arg0: i32, %arg1: i32, %arg2: i32) -> (i32, i32) {
    %c0_i32 = arith.constant 0 : i32
    return %arg2, %arg1 : i32, i32
  }
  func.func @transform_3(%arg0: i32, %arg1: i32, %arg2: i32) -> (i32, i32) {
    %c0_i32 = arith.constant 0 : i32
    %c0_i32_0 = arith.constant 0 : i32
    %c0_i32_1 = arith.constant 0 : i32
    return %c0_i32, %c0_i32_0 : i32, i32
  }
  func.func @transform_4(%arg0: i32, %arg1: i32, %arg2: i32) -> (i32, i32) {
    %c0_i32 = arith.constant 0 : i32
    return %arg0, %arg1 : i32, i32
  }
}

module attributes {stable_mosaic.version = 11 : i64} {
  func.func @kernel(%arg0: i32, %arg1: i32, %arg2: i32, %arg3: memref<16x128xbf16, #tpu.memory_space<vmem>>, %arg4: memref<128x64xbf16, #tpu.memory_space<vmem>>, %arg5: memref<16x64xbf16, #tpu.memory_space<vmem>>, %arg6: memref<16x64xbf16, #tpu.memory_space<vmem>>, %arg7: memref<16x64xf32, #tpu.memory_space<vmem>>) attributes {dimension_semantics = [#tpu.dimension_semantics<parallel>, #tpu.dimension_semantics<parallel>, #tpu.dimension_semantics<arbitrary>], iteration_bounds = array<i64: 1, 1, 1>, scalar_prefetch = 0 : i64, scratch_operands = 1 : i64, tpu.core_type = #tpu.core_type<tc>, window_params = [{transform_indices = @transform_0, window_bounds = array<i64: 16, 128>}, {transform_indices = @transform_1, window_bounds = array<i64: 128, 64>}, {transform_indices = @transform_2, window_bounds = array<i64: 16, 64>}, {transform_indices = @transform_3, window_bounds = array<i64: 16, 64>}]} {
    %c0_i32 = arith.constant 0 : i32
    %0 = arith.cmpi eq, %arg2, %c0_i32 : i32
    %1 = arith.extui %0 : i1 to i32
    %c0_i32_0 = arith.constant 0 : i32
    %2 = arith.cmpi ne, %1, %c0_i32_0 : i32
    scf.if %2 {
      %cst_10 = arith.constant 0.000000e+00 : f32
      %12 = vector.broadcast %cst_10 : f32 to vector<16x64xf32>
      %c0_11 = arith.constant 0 : index
      %c0_12 = arith.constant 0 : index
      %13 = vector.load %arg7[%c0_11, %c0_12] : memref<16x64xf32, #tpu.memory_space<vmem>>, vector<16x64xf32>
      tpu.vector_store %arg7[%c0_11, %c0_12], %12 {strides = array<i32>} : memref<16x64xf32, #tpu.memory_space<vmem>>, vector<16x64xf32>,
    } else {
    }
    %c0 = arith.constant 0 : index
    %c0_1 = arith.constant 0 : index
    %3 = vector.load %arg3[%c0, %c0_1] : memref<16x128xbf16, #tpu.memory_space<vmem>>, vector<16x128xbf16>
    %c0_2 = arith.constant 0 : index
    %c0_3 = arith.constant 0 : index
    %4 = vector.load %arg7[%c0_2, %c0_3] : memref<16x64xf32, #tpu.memory_space<vmem>>, vector<16x64xf32>
    %c0_4 = arith.constant 0 : index
    %c0_5 = arith.constant 0 : index
    %5 = vector.load %arg4[%c0_4, %c0_5] : memref<128x64xbf16, #tpu.memory_space<vmem>>, vector<128x64xbf16>
    %cst = arith.constant dense<0.000000e+00> : vector<16x64xf32>
    %6 = tpu.matmul %3, %5, %cst {dimension_numbers = #tpu.dot_dimension_numbers<[1], [0], [0], [1], [0, 0, 1, 1], [], []>} : vector<16x128xbf16>, vector<128x64xbf16>, vector<16x64xf32> -> vector<16x64xf32>
    %7 = arith.addf %4, %6 : vector<16x64xf32>
    %c0_6 = arith.constant 0 : index
    %c0_7 = arith.constant 0 : index
    %8 = vector.load %arg7[%c0_6, %c0_7] : memref<16x64xf32, #tpu.memory_space<vmem>>, vector<16x64xf32>
    tpu.vector_store %arg7[%c0_6, %c0_7], %7 {strides = array<i32>} : memref<16x64xf32, #tpu.memory_space<vmem>>, vector<16x64xf32>,
    %c0_i32_8 = arith.constant 0 : i32
    %9 = arith.cmpi eq, %arg2, %c0_i32_8 : i32
    %10 = arith.extui %9 : i1 to i32
    %c0_i32_9 = arith.constant 0 : i32
    %11 = arith.cmpi ne, %10, %c0_i32_9 : i32
    scf.if %11 {
      %c0_10 = arith.constant 0 : index
      %c0_11 = arith.constant 0 : index
      %12 = vector.load %arg7[%c0_10, %c0_11] : memref<16x64xf32, #tpu.memory_space<vmem>>, vector<16x64xf32>
      %c0_12 = arith.constant 0 : index
      %c0_13 = arith.constant 0 : index
      %13 = vector.load %arg5[%c0_12, %c0_13] : memref<16x64xbf16, #tpu.memory_space<vmem>>, vector<16x64xbf16>
      %14 = arith.extf %13 : vector<16x64xbf16> to vector<16x64xf32>
      %15 = arith.addf %12, %14 : vector<16x64xf32>
      %16 = arith.truncf %15 : vector<16x64xf32> to vector<16x64xbf16>
      %c0_14 = arith.constant 0 : index
      %c0_15 = arith.constant 0 : index
      %17 = vector.load %arg6[%c0_14, %c0_15] : memref<16x64xbf16, #tpu.memory_space<vmem>>, vector<16x64xbf16>
      tpu.vector_store %arg6[%c0_14, %c0_15], %16 {strides = array<i32>} : memref<16x64xbf16, #tpu.memory_space<vmem>>, vector<16x64xbf16>,
    } else {
    }
    return
  }
  func.func @transform_0(%arg0: i32, %arg1: i32, %arg2: i32) -> (i32, i32) {
    %c0_i32 = arith.constant 0 : i32
    return %arg0, %arg2 : i32, i32
  }
  func.func @transform_1(%arg0: i32, %arg1: i32, %arg2: i32) -> (i32, i32) {
    %c0_i32 = arith.constant 0 : i32
    return %arg2, %arg1 : i32, i32
  }
  func.func @transform_2(%arg0: i32, %arg1: i32, %arg2: i32) -> (i32, i32) {
    %c0_i32 = arith.constant 0 : i32
    return %arg0, %arg1 : i32, i32
  }
  func.func @transform_3(%arg0: i32, %arg1: i32, %arg2: i32) -> (i32, i32) {
    %c0_i32 = arith.constant 0 : i32
    return %arg0, %arg1 : i32, i32
  }
}

module attributes {stable_mosaic.version = 11 : i64} {
  func.func @kernel(%arg0: i32, %arg1: i32, %arg2: i32, %arg3: memref<16x64xbf16, #tpu.memory_space<vmem>>, %arg4: memref<64x256xbf16, #tpu.memory_space<vmem>>, %arg5: memref<1x64xbf16, #tpu.memory_space<vmem>>, %arg6: memref<16x256xf32, #tpu.memory_space<vmem>>, %arg7: memref<16x256xf32, #tpu.memory_space<vmem>>) attributes {dimension_semantics = [#tpu.dimension_semantics<parallel>, #tpu.dimension_semantics<parallel>, #tpu.dimension_semantics<arbitrary>], iteration_bounds = array<i64: 1, 1, 1>, scalar_prefetch = 0 : i64, scratch_operands = 1 : i64, tpu.core_type = #tpu.core_type<tc>, window_params = [{transform_indices = @transform_0, window_bounds = array<i64: 16, 64>}, {transform_indices = @transform_1, window_bounds = array<i64: 64, 256>}, {pipeline_mode = #tpu.pipeline_mode<synchronous>, transform_indices = @transform_2, window_bounds = array<i64: 1, 64>}, {transform_indices = @transform_3, window_bounds = array<i64: 16, 256>}]} {
    %c0_i32 = arith.constant 0 : i32
    %0 = arith.cmpi eq, %arg2, %c0_i32 : i32
    %1 = arith.extui %0 : i1 to i32
    %c0_i32_0 = arith.constant 0 : i32
    %2 = arith.cmpi ne, %1, %c0_i32_0 : i32
    scf.if %2 {
      %cst_16 = arith.constant 0.000000e+00 : f32
      %30 = vector.broadcast %cst_16 : f32 to vector<16x256xf32>
      %c0_17 = arith.constant 0 : index
      %c0_18 = arith.constant 0 : index
      %31 = vector.load %arg7[%c0_17, %c0_18] : memref<16x256xf32, #tpu.memory_space<vmem>>, vector<16x256xf32>
      tpu.vector_store %arg7[%c0_17, %c0_18], %30 {strides = array<i32>} : memref<16x256xf32, #tpu.memory_space<vmem>>, vector<16x256xf32>,
    } else {
    }
    %c0 = arith.constant 0 : index
    %c0_1 = arith.constant 0 : index
    %3 = vector.load %arg3[%c0, %c0_1] : memref<16x64xbf16, #tpu.memory_space<vmem>>, vector<16x64xbf16>
    %4 = arith.extf %3 : vector<16x64xbf16> to vector<16x64xf32>
    %5 = arith.mulf %4, %4 : vector<16x64xf32>
    %cst = arith.constant dense<0.000000e+00> : vector<16xf32>
    %6 = vector.multi_reduction <add>, %5, %cst [1] : vector<16x64xf32> to vector<16xf32>
    %7 = vector.shape_cast %6 : vector<16xf32> to vector<16x1xf32>
    %cst_2 = arith.constant 6.400000e+01 : f32
    %8 = vector.broadcast %cst_2 : f32 to vector<16x1xf32>
    %9 = arith.divf %7, %8 : vector<16x1xf32>
    %cst_3 = arith.constant 9.99999997E-7 : f32
    %10 = vector.broadcast %cst_3 : f32 to vector<16x1xf32>
    %11 = arith.addf %9, %10 : vector<16x1xf32>
    %12 = math.rsqrt %11 : vector<16x1xf32>
    %13 = vector.broadcast %12 : vector<16x1xf32> to vector<16x64xf32>
    %14 = arith.mulf %4, %13 : vector<16x64xf32>
    %c0_4 = arith.constant 0 : index
    %c0_5 = arith.constant 0 : index
    %15 = vector.load %arg5[%c0_4, %c0_5] : memref<1x64xbf16, #tpu.memory_space<vmem>>, vector<1x64xbf16>
    %16 = arith.extf %15 : vector<1x64xbf16> to vector<1x64xf32>
    %cst_6 = arith.constant 1.000000e+00 : f32
    %17 = vector.broadcast %cst_6 : f32 to vector<1x64xf32>
    %18 = arith.addf %17, %16 : vector<1x64xf32>
    %19 = vector.broadcast %18 : vector<1x64xf32> to vector<16x64xf32>
    %20 = arith.mulf %14, %19 : vector<16x64xf32>
    %21 = arith.truncf %20 : vector<16x64xf32> to vector<16x64xbf16>
    %c0_7 = arith.constant 0 : index
    %c0_8 = arith.constant 0 : index
    %22 = vector.load %arg7[%c0_7, %c0_8] : memref<16x256xf32, #tpu.memory_space<vmem>>, vector<16x256xf32>
    %c0_9 = arith.constant 0 : index
    %c0_10 = arith.constant 0 : index
    %23 = vector.load %arg4[%c0_9, %c0_10] : memref<64x256xbf16, #tpu.memory_space<vmem>>, vector<64x256xbf16>
    %cst_11 = arith.constant dense<0.000000e+00> : vector<16x256xf32>
    %24 = tpu.matmul %21, %23, %cst_11 {dimension_numbers = #tpu.dot_dimension_numbers<[1], [0], [0], [1], [0, 0, 1, 1], [], []>} : vector<16x64xbf16>, vector<64x256xbf16>, vector<16x256xf32> -> vector<16x256xf32>
    %25 = arith.addf %22, %24 : vector<16x256xf32>
    %c0_12 = arith.constant 0 : index
    %c0_13 = arith.constant 0 : index
    %26 = vector.load %arg7[%c0_12, %c0_13] : memref<16x256xf32, #tpu.memory_space<vmem>>, vector<16x256xf32>
    tpu.vector_store %arg7[%c0_12, %c0_13], %25 {strides = array<i32>} : memref<16x256xf32, #tpu.memory_space<vmem>>, vector<16x256xf32>,
    %c0_i32_14 = arith.constant 0 : i32
    %27 = arith.cmpi eq, %arg2, %c0_i32_14 : i32
    %28 = arith.extui %27 : i1 to i32
    %c0_i32_15 = arith.constant 0 : i32
    %29 = arith.cmpi ne, %28, %c0_i32_15 : i32
    scf.if %29 {
      %c0_16 = arith.constant 0 : index
      %c0_17 = arith.constant 0 : index
      %30 = vector.load %arg7[%c0_16, %c0_17] : memref<16x256xf32, #tpu.memory_space<vmem>>, vector<16x256xf32>
      %c0_18 = arith.constant 0 : index
      %c0_19 = arith.constant 0 : index
      %31 = vector.load %arg6[%c0_18, %c0_19] : memref<16x256xf32, #tpu.memory_space<vmem>>, vector<16x256xf32>
      tpu.vector_store %arg6[%c0_18, %c0_19], %30 {strides = array<i32>} : memref<16x256xf32, #tpu.memory_space<vmem>>, vector<16x256xf32>,
    } else {
    }
    return
  }
  func.func @transform_0(%arg0: i32, %arg1: i32, %arg2: i32) -> (i32, i32) {
    %c0_i32 = arith.constant 0 : i32
    return %arg0, %arg2 : i32, i32
  }
  func.func @transform_1(%arg0: i32, %arg1: i32, %arg2: i32) -> (i32, i32) {
    %c0_i32 = arith.constant 0 : i32
    return %arg2, %arg1 : i32, i32
  }
  func.func @transform_2(%arg0: i32, %arg1: i32, %arg2: i32) -> (i32, i32) {
    %c0_i32 = arith.constant 0 : i32
    %c0_i32_0 = arith.constant 0 : i32
    %c0_i32_1 = arith.constant 0 : i32
    return %c0_i32, %c0_i32_0 : i32, i32
  }
  func.func @transform_3(%arg0: i32, %arg1: i32, %arg2: i32) -> (i32, i32) {
    %c0_i32 = arith.constant 0 : i32
    return %arg0, %arg1 : i32, i32
  }
}

</mosaic_0001>

<llo_original>
// kernel: run.23
$region0: #{run.23}
  #allocation0 [shape = 'u32[]', space=smem, size = 0x4, offset = 0x4, fixed_abs, tag = 'smem constant byte address 0x4 - core index']
  #allocation1 [shape = 'u32[144,128]{1,0:T(1,128)}', space=vmem, size = 0x12000, scoped, tag = 'internal scratch']
  #allocation2 [shape = 'f32[8,32]{1,0:T(8,128)}', space=vmem, size = 0x1000, scoped, tag = 'scratch operand']
  %s0 = inlined_call_operand.vmem [shape: bf16[8,192], index: 0, kind: input, shape index: {}]
  %s1 = inlined_call_operand.vmem [shape: bf16[192,32], index: 1, kind: input, shape index: {}]
  %s2 = inlined_call_operand.vmem [shape: bf16[1,32], index: 2, kind: input, shape index: {}]
  %s3 = inlined_call_operand.vmem [shape: bf16[8,32], index: 3, kind: output, shape index: {}]
  %s4 = sld [smem:[#allocation0]]
  $region30: #{run.23} parent=0
    _
  %s6 = ssub.s32 1, %s4
  %s7 = scalar_select 0, %s6, %s4
  // Predicated region
  $region2: #{run.23} parent=0 // pred_check
    _
  $region3: #{run.23} parent=0 // pred_check_branch
    %9 = sbr.rel (0) target = $region5
  $region4: #{run.23} parent=0 // pred_region
    _
  $region5: #{run.23} parent=0 // pred_fallthru
    _
  // Predicated region
  $region6: #{run.23} parent=0 // pred_check
    _
  $region7: #{run.23} parent=0 // pred_check_branch
    %11 = sbr.rel (0) target = $region9
  $region8: #{run.23} parent=0 // pred_region
    _
  $region9: #{run.23} parent=0 // pred_fallthru
    _
  // Predicated region
  $region10: #{run.23} parent=0 // pred_check
    _
  $region11: #{run.23} parent=0 // pred_check_branch
    %13 = sbr.rel (0) target = $region13
  $region12: #{run.23} parent=0 // pred_region
    _
  $region13: #{run.23} parent=0 // pred_fallthru
    _
  %p15 = scmp.eq.s32.totalorder 0, 0
  // Predicated region
  $region14: #{run.23} parent=0 // pred_check
    %p16 = pneg %p15
  $region15: #{run.23} parent=0 // pred_check_branch
    %18 = sbr.rel (%p16) target = $region17
  $region16: #{run.23} parent=0 // pred_region
    %vm19 = vcmask 261120
    %20 = vst.msk [vmem:[#allocation2] sm:$0xff] %vm19, 0.0
  $region17: #{run.23} parent=0 // pred_fallthru
    _
  %v21 = vld [vmem:[%s0] sm:$0xff]
  %v22 = vld [vmem:[#allocation2] sm:$0xff]
  %v23 = vld [vmem:[%s1] sm:$0xf]
  %v24 = vld [vmem:[%s1 + $0x4] sm:$0xf]
  %v25 = vld [vmem:[%s1 + $0x8] sm:$0xf]
  %v26 = vld [vmem:[%s1 + $0xc] sm:$0xf]
  %v27 = vld [vmem:[%s1 + $0x10] sm:$0xf]
  %v28 = vld [vmem:[%s1 + $0x14] sm:$0xf]
  %v29 = vld [vmem:[%s1 + $0x18] sm:$0xf]
  %v30 = vld [vmem:[%s1 + $0x1c] sm:$0xf]
  %v31 = vld [vmem:[%s1 + $0x20] sm:$0xf]
  %v32 = vld [vmem:[%s1 + $0x24] sm:$0xf]
  %v33 = vld [vmem:[%s1 + $0x28] sm:$0xf]
  %v34 = vld [vmem:[%s1 + $0x2c] sm:$0xf]
  %v35 = vld [vmem:[%s1 + $0x30] sm:$0xf]
  %v36 = vld [vmem:[%s1 + $0x34] sm:$0xf]
  %v37 = vld [vmem:[%s1 + $0x38] sm:$0xf]
  %v38 = vld [vmem:[%s1 + $0x3c] sm:$0xf]
  %v39 = vld [vmem:[%s1 + $0x40] sm:$0xf]
  %v40 = vld [vmem:[%s1 + $0x44] sm:$0xf]
  %v41 = vld [vmem:[%s1 + $0x48] sm:$0xf]
  %v42 = vld [vmem:[%s1 + $0x4c] sm:$0xf]
  %v43 = vld [vmem:[%s1 + $0x50] sm:$0xf]
  %v44 = vld [vmem:[%s1 + $0x54] sm:$0xf]
  %v45 = vld [vmem:[%s1 + $0x58] sm:$0xf]
  %v46 = vld [vmem:[%s1 + $0x5c] sm:$0xf]
  %v48 = vunpack.c.l.b16 %v21
  %v49 = vunpack.c.h.b16 %v21
  %v50 = vpack.c.b16 %v48, %v48
  %v51 = vpack.c.b16 %v49, %v49
  %v77 = vunpack.c.l.b16 %v23
  %v78 = vunpack.c.l.b16 %v24
  %v79 = vunpack.c.l.b16 %v25
  %v80 = vunpack.c.l.b16 %v26
  %v81 = vunpack.c.l.b16 %v27
  %v82 = vunpack.c.l.b16 %v28
  %v83 = vunpack.c.l.b16 %v29
  %v84 = vunpack.c.l.b16 %v30
  %v85 = vunpack.c.l.b16 %v31
  %v86 = vunpack.c.l.b16 %v32
  %v87 = vunpack.c.l.b16 %v33
  %v88 = vunpack.c.l.b16 %v34
  %v89 = vunpack.c.l.b16 %v35
  %v90 = vunpack.c.l.b16 %v36
  %v91 = vunpack.c.l.b16 %v37
  %v92 = vunpack.c.l.b16 %v38
  %v93 = vunpack.c.l.b16 %v39
  %v94 = vunpack.c.l.b16 %v40
  %v95 = vunpack.c.l.b16 %v41
  %v96 = vunpack.c.l.b16 %v42
  %v97 = vunpack.c.l.b16 %v43
  %v98 = vunpack.c.l.b16 %v44
  %v99 = vunpack.c.l.b16 %v45
  %v100 = vunpack.c.l.b16 %v46
  %v101 = vpack.c.b16 %v78, %v77
  %v102 = vpack.c.b16 %v80, %v79
  %v103 = vpack.c.b16 %v82, %v81
  %v104 = vpack.c.b16 %v84, %v83
  %v105 = vpack.c.b16 %v86, %v85
  %v106 = vpack.c.b16 %v88, %v87
  %v107 = vpack.c.b16 %v90, %v89
  %v108 = vpack.c.b16 %v92, %v91
  %v109 = vpack.c.b16 %v94, %v93
  %v110 = vpack.c.b16 %v96, %v95
  %v111 = vpack.c.b16 %v98, %v97
  %v112 = vpack.c.b16 %v100, %v99
  %vm125 = vcmask 523264
  %v127 = vsel %vm125, %v51, 0
  %129 = vmatprep.subr.bf16.mxu0 0
  %130 = vmatpush1.bf16.msra.mxu0 %v108
  %131 = vmatprep.subr.bf16.mxu0 0
  %132 = vmatpush1.bf16.msra.mxu0 %v107
  %133 = vmatprep.subr.bf16.mxu0 0
  %134 = vmatpush1.bf16.msra.mxu0 %v106
  %135 = vmatprep.subr.bf16.mxu0 0
  %136 = vmatpush1.bf16.msra.mxu0 %v105
  %137 = vmatprep.subr.bf16.mxu0 0
  %138 = vmatpush1.bf16.msra.mxu0 %v104
  %139 = vmatprep.subr.bf16.mxu0 0
  %140 = vmatpush1.bf16.msra.mxu0 %v103
  %141 = vmatprep.subr.bf16.mxu0 0
  %142 = vmatpush1.bf16.msra.mxu0 %v102
  %143 = vmatprep.subr.bf16.mxu0 0
  %144 = vmatpush1.bf16.msra.mxu0 %v101
  %145 = vmatprep.subr.bf16.mxu0 0
  %146 = vmatpush2.bf16.msra.mxu0 0
  %147 = vmatprep.subr.bf16.mxu0 0
  %148 = vmatpush2.bf16.msra.mxu0 0
  %149 = vmatprep.subr.bf16.mxu0 0
  %150 = vmatpush2.bf16.msra.mxu0 0
  %151 = vmatprep.subr.bf16.mxu0 0
  %152 = vmatpush2.bf16.msra.mxu0 0
  %153 = vmatprep.subr.bf16.mxu0 0
  %154 = vmatpush2.bf16.msra.mxu0 %v112
  %155 = vmatprep.subr.bf16.mxu0 0
  %156 = vmatpush2.bf16.msra.mxu0 %v111
  %157 = vmatprep.subr.bf16.mxu0 0
  %158 = vmatpush2.bf16.msra.mxu0 %v110
  %159 = vmatprep.subr.bf16.mxu0 0
  %160 = vmatpush2.bf16.msra.mxu0 %v109
  %161 = vmatprep.mubr.bf16.mxu0 %v127
  %162 = vmatmul.mubr.bf16.gmra.mxu0 %v50
  %v163 = vpop.f32.mrf.mxu0
  %v164 = vadd.f32 0.0, %v163
  %v165 = vpop.f32.mrf.mxu0
  %v166 = vpop.f32.mrf.mxu0
  %v167 = vpop.f32.mrf.mxu0
  %168 = vdwg.mxu0
  %v169 = vadd.f32 %v22, %v164
  %vm170 = vcmask 261120
  %171 = vst.msk [vmem:[#allocation2] sm:$0xff] %vm170, %v169
  // Predicated region
  $region18: #{run.23} parent=0 // pred_check
    %p172 = pneg %p15
  $region19: #{run.23} parent=0 // pred_check_branch
    %174 = sbr.rel (%p172) target = $region21
  $region20: #{run.23} parent=0 // pred_region
    %v175 = vld [vmem:[#allocation2] sm:$0xff]
    %v176 = vld [vmem:[%s2] sm:$0x1]
    %v177 = vunpack.c.l.bf16 %v176
    %v178 = vlaneseq
    %v179 = vshrl.u32 %v178, 7
    %v180 = vsub.s32 0, %v179
    %v181 = vrot.slane %v177, %v180
    %v182 = vadd.f32 %v175, %v181
    %v183 = vpack.c.bf16 %v182, %v182
    %vm184 = vcmask 257024
    %185 = vst.msk [vmem:[%s3] sm:$0xf] %vm184, %v183
  $region21: #{run.23} parent=0 // pred_fallthru
    _
  // Predicated region
  $region22: #{run.23} parent=0 // pred_check
    _
  $region23: #{run.23} parent=0 // pred_check_branch
    %187 = sbr.rel (0) target = $region25
  $region24: #{run.23} parent=0 // pred_region
    _
  $region25: #{run.23} parent=0 // pred_fallthru
    _
  // Predicated region
  $region26: #{run.23} parent=0 // pred_check
    _
  $region27: #{run.23} parent=0 // pred_check_branch
    %189 = sbr.rel (0) target = $region29
  $region28: #{run.23} parent=0 // pred_region
    _
  $region29: #{run.23} parent=0 // pred_fallthru
    _

// kernel: run.24
$region0: #{run.24}
  #allocation0 [shape = 'u32[]', space=smem, size = 0x4, offset = 0x4, fixed_abs, tag = 'smem constant byte address 0x4 - core index']
  #allocation1 [shape = 'u32[144,128]{1,0:T(1,128)}', space=vmem, size = 0x12000, scoped, tag = 'internal scratch']
  #allocation2 [shape = 'f32[8,96]{1,0:T(8,128)}', space=vmem, size = 0x1000, scoped, tag = 'scratch operand']
  %s0 = inlined_call_operand.vmem [shape: bf16[8,32], index: 0, kind: input, shape index: {}]
  %s1 = inlined_call_operand.vmem [shape: bf16[32,96], index: 1, kind: input, shape index: {}]
  %s2 = inlined_call_operand.vmem [shape: bf16[1,32], index: 2, kind: input, shape index: {}]
  %s3 = inlined_call_operand.vmem [shape: bf16[1,32], index: 3, kind: input, shape index: {}]
  %s4 = inlined_call_operand.vmem [shape: bf16[1,96], index: 4, kind: input, shape index: {}]
  %s5 = inlined_call_operand.vmem [shape: bf16[8,96], index: 5, kind: output, shape index: {}]
  %s6 = sld [smem:[#allocation0]]
  $region38: #{run.24} parent=0
    _
  %s8 = ssub.s32 1, %s6
  %s9 = scalar_select 0, %s8, %s6
  // Predicated region
  $region2: #{run.24} parent=0 // pred_check
    _
  $region3: #{run.24} parent=0 // pred_check_branch
    %11 = sbr.rel (0) target = $region5
  $region4: #{run.24} parent=0 // pred_region
    _
  $region5: #{run.24} parent=0 // pred_fallthru
    _
  // Predicated region
  $region6: #{run.24} parent=0 // pred_check
    _
  $region7: #{run.24} parent=0 // pred_check_branch
    %13 = sbr.rel (0) target = $region9
  $region8: #{run.24} parent=0 // pred_region
    _
  $region9: #{run.24} parent=0 // pred_fallthru
    _
  // Predicated region
  $region10: #{run.24} parent=0 // pred_check
    _
  $region11: #{run.24} parent=0 // pred_check_branch
    %15 = sbr.rel (0) target = $region13
  $region12: #{run.24} parent=0 // pred_region
    _
  $region13: #{run.24} parent=0 // pred_fallthru
    _
  // Predicated region
  $region14: #{run.24} parent=0 // pred_check
    _
  $region15: #{run.24} parent=0 // pred_check_branch
    %17 = sbr.rel (0) target = $region17
  $region16: #{run.24} parent=0 // pred_region
    _
  $region17: #{run.24} parent=0 // pred_fallthru
    _
  // Predicated region
  $region18: #{run.24} parent=0 // pred_check
    _
  $region19: #{run.24} parent=0 // pred_check_branch
    %19 = sbr.rel (0) target = $region21
  $region20: #{run.24} parent=0 // pred_region
    _
  $region21: #{run.24} parent=0 // pred_fallthru
    _
  %p21 = scmp.eq.s32.totalorder 0, 0
  // Predicated region
  $region22: #{run.24} parent=0 // pred_check
    %p22 = pneg %p21
  $region23: #{run.24} parent=0 // pred_check_branch
    %24 = sbr.rel (%p22) target = $region25
  $region24: #{run.24} parent=0 // pred_region
    %vm25 = vcmask 785408
    %26 = vst.msk [vmem:[#allocation2] sm:$0xff] %vm25, 0.0
  $region25: #{run.24} parent=0 // pred_fallthru
    _
  %v27 = vld [vmem:[%s0] sm:$0xf]
  %v28 = vunpack.c.l.bf16 %v27
  %vm29 = vcmask 261120
  %v30 = vsel %vm29, %v28, 0.0
  %31 = vadd.xlane.f32.xlu0 %v30
  %v32 = vpop.xlane.xlu0 %31
  %v33 = vrcp.pop 32.0
  %v34 = vmul.f32 %v32, %v33
  %v35 = vsub.f32 %v28, %v34
  %v36 = vmul.f32 %v35, %v35
  %v37 = vsel %vm29, %v36, 0.0
  %38 = vadd.xlane.f32.xlu0 %v37
  %v39 = vpop.xlane.xlu0 %38
  %v40 = vmul.f32 %v39, %v33
  %v41 = vadd.f32 %v40, 1e-06
  %v42 = vrsqrt.pop %v41
  %v43 = vmul.f32 %v35, %v42
  %v44 = vld [vmem:[%s2] sm:$0x1]
  %v45 = vunpack.c.l.bf16 %v44
  %v46 = vlaneseq
  %v47 = vshrl.u32 %v46, 7
  %v48 = vsub.s32 0, %v47
  %v49 = vrot.slane %v45, %v48
  %v50 = vmul.f32 %v43, %v49
  %v51 = vld [vmem:[%s3] sm:$0x1]
  %v52 = vunpack.c.l.bf16 %v51
  %v53 = vlaneseq
  %v54 = vshrl.u32 %v53, 7
  %v55 = vsub.s32 0, %v54
  %v56 = vrot.slane %v52, %v55
  %v57 = vadd.f32 %v50, %v56
  %v58 = vpack.c.bf16 %v57, %v57
  %v59 = vld [vmem:[#allocation2] sm:$0xff]
  %v60 = vld [vmem:[%s1] sm:$0xf]
  %v61 = vld [vmem:[%s1 + $0x4] sm:$0xf]
  %v62 = vld [vmem:[%s1 + $0x8] sm:$0xf]
  %v63 = vld [vmem:[%s1 + $0xc] sm:$0xf]
  %v68 = vunpack.c.l.b16 %v60
  %v69 = vunpack.c.l.b16 %v61
  %v70 = vunpack.c.l.b16 %v62
  %v71 = vunpack.c.l.b16 %v63
  %v72 = vpack.c.b16 %v69, %v68
  %v73 = vpack.c.b16 %v71, %v70
  %v77 = vsel %vm29, %v58, 0
  %79 = vmatprep.subr.bf16.mxu0 0
  %80 = vmatpush1.bf16.msra.mxu0 0
  %81 = vmatprep.subr.bf16.mxu0 0
  %82 = vmatpush1.bf16.msra.mxu0 0
  %83 = vmatprep.subr.bf16.mxu0 0
  %84 = vmatpush1.bf16.msra.mxu0 0
  %85 = vmatprep.subr.bf16.mxu0 0
  %86 = vmatpush1.bf16.msra.mxu0 0
  %87 = vmatprep.subr.bf16.mxu0 0
  %88 = vmatpush1.bf16.msra.mxu0 0
  %89 = vmatprep.subr.bf16.mxu0 0
  %90 = vmatpush1.bf16.msra.mxu0 0
  %91 = vmatprep.subr.bf16.mxu0 0
  %92 = vmatpush1.bf16.msra.mxu0 %v73
  %93 = vmatprep.subr.bf16.mxu0 0
  %94 = vmatpush1.bf16.msra.mxu0 %v72
  %95 = vmatprep.subr.bf16.mxu0 0
  %96 = vmatpush2.bf16.msra.mxu0 0
  %97 = vmatprep.subr.bf16.mxu0 0
  %98 = vmatpush2.bf16.msra.mxu0 0
  %99 = vmatprep.subr.bf16.mxu0 0
  %100 = vmatpush2.bf16.msra.mxu0 0
  %101 = vmatprep.subr.bf16.mxu0 0
  %102 = vmatpush2.bf16.msra.mxu0 0
  %103 = vmatprep.subr.bf16.mxu0 0
  %104 = vmatpush2.bf16.msra.mxu0 0
  %105 = vmatprep.subr.bf16.mxu0 0
  %106 = vmatpush2.bf16.msra.mxu0 0
  %107 = vmatprep.subr.bf16.mxu0 0
  %108 = vmatpush2.bf16.msra.mxu0 0
  %109 = vmatprep.subr.bf16.mxu0 0
  %110 = vmatpush2.bf16.msra.mxu0 0
  %111 = vmatprep.mubr.bf16.mxu0 0
  %112 = vmatmul.mubr.bf16.gmra.mxu0 %v77
  %v113 = vpop.f32.mrf.mxu0
  %v114 = vadd.f32 0.0, %v113
  %v115 = vpop.f32.mrf.mxu0
  %v116 = vpop.f32.mrf.mxu0
  %v117 = vpop.f32.mrf.mxu0
  %118 = vdwg.mxu0
  %v119 = vadd.f32 %v59, %v114
  %vm120 = vcmask 785408
  %121 = vst.msk [vmem:[#allocation2] sm:$0xff] %vm120, %v119
  // Predicated region
  $region26: #{run.24} parent=0 // pred_check
    %p122 = pneg %p21
  $region27: #{run.24} parent=0 // pred_check_branch
    %124 = sbr.rel (%p122) target = $region29
  $region28: #{run.24} parent=0 // pred_region
    %v125 = vld [vmem:[#allocation2] sm:$0xff]
    %v126 = vld [vmem:[%s4] sm:$0x1]
    %v127 = vunpack.c.l.bf16 %v126
    %v128 = vlaneseq
    %v129 = vshrl.u32 %v128, 7
    %v130 = vsub.s32 0, %v129
    %v131 = vrot.slane %v127, %v130
    %v132 = vadd.f32 %v125, %v131
    %v133 = vpack.c.bf16 %v132, %v132
    %vm134 = vcmask 781312
    %135 = vst.msk [vmem:[%s5] sm:$0xf] %vm134, %v133
  $region29: #{run.24} parent=0 // pred_fallthru
    _
  // Predicated region
  $region30: #{run.24} parent=0 // pred_check
    _
  $region31: #{run.24} parent=0 // pred_check_branch
    %137 = sbr.rel (0) target = $region33
  $region32: #{run.24} parent=0 // pred_region
    _
  $region33: #{run.24} parent=0 // pred_fallthru
    _
  // Predicated region
  $region34: #{run.24} parent=0 // pred_check
    _
  $region35: #{run.24} parent=0 // pred_check_branch
    %139 = sbr.rel (0) target = $region37
  $region36: #{run.24} parent=0 // pred_region
    _
  $region37: #{run.24} parent=0 // pred_fallthru
    _

// kernel: run.25
$region0: #{run.25}
  #allocation0 [shape = 'u32[]', space=smem, size = 0x4, offset = 0x4, fixed_abs, tag = 'smem constant byte address 0x4 - core index']
  #allocation1 [shape = 'u32[144,128]{1,0:T(1,128)}', space=vmem, size = 0x12000, scoped, tag = 'internal scratch']
  #allocation2 [shape = 'f32[4,1]{1,0:T(4,128)}', space=vmem, size = 0x800, scoped, tag = 'scratch operand']
  #allocation3 [shape = 'f32[4,1]{1,0:T(4,128)}', space=vmem, size = 0x800, scoped, tag = 'scratch operand']
  #allocation4 [shape = 'f32[4,8]{1,0:T(4,128)}', space=vmem, size = 0x800, scoped, tag = 'scratch operand']
  %s0 = inlined_call_operand.vmem [shape: bf16[8,4,8], index: 0, kind: input, shape index: {}]
  %s1 = inlined_call_operand.vmem [shape: bf16[8,4,8], index: 1, kind: input, shape index: {}]
  %s2 = inlined_call_operand.vmem [shape: bf16[8,4,8], index: 2, kind: input, shape index: {}]
  %s3 = inlined_call_operand.vmem [shape: bf16[8,4,8], index: 3, kind: output, shape index: {}]
  %s4 = sld [smem:[#allocation0]]
  $region53: #{run.25} parent=0
    _
  %s6 = ssub.s32 1, %s4
  %s7 = scalar_select 0, %s6, %s4
  loop: start=0, step=1, limit=10
  $region2: #{run.25} parent=0 // loop_pre_header
    _
  $region3: #{run.25} parent=0 // loop_header
    %s9 = sphi 0, %s13
    %p10 = scmp.ge.s32.totalorder %s9, 10
    %s16 = sphi 0, %s35
    %s17 = sphi 0, %s31
    %s18 = sphi 0, %s27
    %s19 = sphi 0, %s16
    %s20 = sphi 0, %s17
    %s21 = sphi 0, %s18
    %s22 = sphi 0, %s19
    %s23 = sphi 0, %s20
    %s24 = sphi 0, %s21
    %s40 = sphi 0, %s42
    %s43 = sphi 0, %s40
    %s44 = sphi 0, %s43
    %s60 = sphi 0, %s44
    %s68 = sphi 0, %s70
    %s71 = sphi 0, %s68
    %s72 = sphi 0, %s71
    %s88 = sphi 0, %s72
    %s96 = sphi 0, %s98
    %s99 = sphi 0, %s96
    %s100 = sphi 0, %s99
    %s116 = sphi 0, %s100
    %s124 = sphi 0, %s126
    %s127 = sphi 0, %s124
    %s128 = sphi 0, %s127
    %s144 = sphi 0, %s128
  $region4: #{run.25} parent=0 // loop_header_branch
    %12 = sbr.rel (%p10) target = $region8
  $region5: #{run.25} parent=0 // loop_body
    %s14 = ssub.s32 %s9, 1
    %s15 = ssub.s32 %s9, 2
    %s25 = sadd.s32 1, %s18
    %p26 = scmp.ge.s32.totalorder %s25, 1
    %s27 = scalar_select %p26, 0, %s25
    %s28 = sadd.s32 1, %s17
    %s29 = scalar_select %p26, %s28, %s17
    %p30 = scmp.ge.s32.totalorder %s29, 1
    %s31 = scalar_select %p30, 0, %s29
    %s32 = sadd.s32 1, %s16
    %s33 = scalar_select %p30, %s32, %s16
    %p34 = scmp.ge.s32.totalorder %s33, 8
    %s35 = scalar_select %p34, 0, %s33
    %s36 = ssub.s32 %s16, %s35
    %s37 = ssub.s32 %s17, %s31
    %s38 = sor.u32 %s36, %s37
    %p39 = scmp.eq.s32.totalorder %s38, 0
    %s41 = sadd.s32 %s40, 1
    %s42 = scalar_select %p39, %s40, %s41
    %p45 = pneg %p39
    %p46 = scmp.eq.s32.totalorder %s9, 7
    %p47 = por %p45, %p46
    %p48 = scmp.ne.s32.totalorder %s40, %s43
    %p49 = scmp.eq.s32.totalorder %s9, 0
    %p50 = por %p48, %p49
    %p51 = scmp.ne.s32.totalorder %s40, %s43
    %p52 = scmp.eq.s32.totalorder %s14, 7
    %p53 = por %p51, %p52
    %p54 = scmp.ne.s32.totalorder %s43, %s44
    %p55 = scmp.eq.s32.totalorder %s14, 0
    %p56 = por %p54, %p55
    %p57 = scmp.ne.s32.totalorder %s43, %s44
    %p58 = scmp.eq.s32.totalorder %s15, 7
    %p59 = por %p57, %p58
    %p61 = scmp.ne.s32.totalorder %s44, %s60
    %p62 = scmp.eq.s32.totalorder %s15, 0
    %p63 = por %p61, %p62
    %s64 = ssub.s32 %s16, %s35
    %s65 = ssub.s32 %s18, %s27
    %s66 = sor.u32 %s64, %s65
    %p67 = scmp.eq.s32.totalorder %s66, 0
    %s69 = sadd.s32 %s68, 1
    %s70 = scalar_select %p67, %s68, %s69
    %p73 = pneg %p67
    %p74 = scmp.eq.s32.totalorder %s9, 7
    %p75 = por %p73, %p74
    %p76 = scmp.ne.s32.totalorder %s68, %s71
    %p77 = scmp.eq.s32.totalorder %s9, 0
    %p78 = por %p76, %p77
    %p79 = scmp.ne.s32.totalorder %s68, %s71
    %p80 = scmp.eq.s32.totalorder %s14, 7
    %p81 = por %p79, %p80
    %p82 = scmp.ne.s32.totalorder %s71, %s72
    %p83 = scmp.eq.s32.totalorder %s14, 0
    %p84 = por %p82, %p83
    %p85 = scmp.ne.s32.totalorder %s71, %s72
    %p86 = scmp.eq.s32.totalorder %s15, 7
    %p87 = por %p85, %p86
    %p89 = scmp.ne.s32.totalorder %s72, %s88
    %p90 = scmp.eq.s32.totalorder %s15, 0
    %p91 = por %p89, %p90
    %s92 = ssub.s32 %s16, %s35
    %s93 = ssub.s32 %s18, %s27
    %s94 = sor.u32 %s92, %s93
    %p95 = scmp.eq.s32.totalorder %s94, 0
    %s97 = sadd.s32 %s96, 1
    %s98 = scalar_select %p95, %s96, %s97
    %p101 = pneg %p95
    %p102 = scmp.eq.s32.totalorder %s9, 7
    %p103 = por %p101, %p102
    %p104 = scmp.ne.s32.totalorder %s96, %s99
    %p105 = scmp.eq.s32.totalorder %s9, 0
    %p106 = por %p104, %p105
    %p107 = scmp.ne.s32.totalorder %s96, %s99
    %p108 = scmp.eq.s32.totalorder %s14, 7
    %p109 = por %p107, %p108
    %p110 = scmp.ne.s32.totalorder %s99, %s100
    %p111 = scmp.eq.s32.totalorder %s14, 0
    %p112 = por %p110, %p111
    %p113 = scmp.ne.s32.totalorder %s99, %s100
    %p114 = scmp.eq.s32.totalorder %s15, 7
    %p115 = por %p113, %p114
    %p117 = scmp.ne.s32.totalorder %s100, %s116
    %p118 = scmp.eq.s32.totalorder %s15, 0
    %p119 = por %p117, %p118
    %s120 = ssub.s32 %s16, %s35
    %s121 = ssub.s32 %s17, %s31
    %s122 = sor.u32 %s120, %s121
    %p123 = scmp.eq.s32.totalorder %s122, 0
    %s125 = sadd.s32 %s124, 1
    %s126 = scalar_select %p123, %s124, %s125
    %p129 = pneg %p123
    %p130 = scmp.eq.s32.totalorder %s9, 7
    %p131 = por %p129, %p130
    %p132 = scmp.ne.s32.totalorder %s124, %s127
    %p133 = scmp.eq.s32.totalorder %s9, 0
    %p134 = por %p132, %p133
    %p135 = scmp.ne.s32.totalorder %s124, %s127
    %p136 = scmp.eq.s32.totalorder %s14, 7
    %p137 = por %p135, %p136
    %p138 = scmp.ne.s32.totalorder %s127, %s128
    %p139 = scmp.eq.s32.totalorder %s14, 0
    %p140 = por %p138, %p139
    %p141 = scmp.ne.s32.totalorder %s127, %s128
    %p142 = scmp.eq.s32.totalorder %s15, 7
    %p143 = por %p141, %p142
    %p145 = scmp.ne.s32.totalorder %s128, %s144
    %p146 = scmp.eq.s32.totalorder %s15, 0
    %p147 = por %p145, %p146
    %p148 = scmp.le.s32.totalorder 1, %s9
    %p149 = scmp.lt.s32.totalorder %s9, 9
    %p150 = pnand %p148, %p149
    %p151 = pneg %p150
    // Predicated region
    $region9: #{run.25} parent=5 // pred_check
      _
    $region10: #{run.25} parent=5 // pred_check_branch
      %153 = sbr.rel (%p150) target = $region12
    $region11: #{run.25} parent=5 // pred_region
      %s154 = ssub.s32 %s9, 1
    $region12: #{run.25} parent=5 // pred_fallthru
      _
    %p155 = scmp.lt.s32.totalorder %s9, 8
    // Predicated region
    $region13: #{run.25} parent=5 // pred_check
      %p156 = pneg %p155
    $region14: #{run.25} parent=5 // pred_check_branch
      %158 = sbr.rel (%p156) target = $region16
    $region15: #{run.25} parent=5 // pred_region
      // Predicated region
      $region17: #{run.25} parent=15 // pred_check
        %p159 = pneg %p50
      $region18: #{run.25} parent=15 // pred_check_branch
        %161 = sbr.rel (%p159) target = $region20
      $region19: #{run.25} parent=15 // pred_region
        %p162 = scmp.lt.s32.totalorder %s16, 7
        %s163 = scalar_select %p162, %s16, 7
        %p164 = scmp.lt.s32.totalorder %s17, 0
        %s165 = scalar_select %p164, %s17, 0
        %s166 = sadd.s32 %s165, %s163
        %s167 = smul.addr %s166, 2
        %s168 = scalar_lea.vmem %s0, %s167
      $region20: #{run.25} parent=15 // pred_fallthru
        _
      // Predicated region
      $region21: #{run.25} parent=15 // pred_check
        %p169 = pneg %p78
      $region22: #{run.25} parent=15 // pred_check_branch
        %171 = sbr.rel (%p169) target = $region24
      $region23: #{run.25} parent=15 // pred_region
        %p172 = scmp.lt.s32.totalorder %s16, 7
        %s173 = scalar_select %p172, %s16, 7
        %p174 = scmp.lt.s32.totalorder %s18, 0
        %s175 = scalar_select %p174, %s18, 0
        %s176 = sadd.s32 %s175, %s173
        %s177 = smul.addr %s176, 2
        %s178 = scalar_lea.vmem %s1, %s177
      $region24: #{run.25} parent=15 // pred_fallthru
        _
      // Predicated region
      $region25: #{run.25} parent=15 // pred_check
        %p179 = pneg %p106
      $region26: #{run.25} parent=15 // pred_check_branch
        %181 = sbr.rel (%p179) target = $region28
      $region27: #{run.25} parent=15 // pred_region
        %p182 = scmp.lt.s32.totalorder %s16, 7
        %s183 = scalar_select %p182, %s16, 7
        %p184 = scmp.lt.s32.totalorder %s18, 0
        %s185 = scalar_select %p184, %s18, 0
        %s186 = sadd.s32 %s185, %s183
        %s187 = smul.addr %s186, 2
        %s188 = scalar_lea.vmem %s2, %s187
      $region28: #{run.25} parent=15 // pred_fallthru
        _
    $region16: #{run.25} parent=5 // pred_fallthru
      _
    %p189 = scmp.le.s32.totalorder 1, %s9
    %p190 = scmp.lt.s32.totalorder %s9, 9
    %p191 = pnand %p189, %p190
    %p192 = pneg %p191
    // Predicated region
    $region29: #{run.25} parent=5 // pred_check
      _
    $region30: #{run.25} parent=5 // pred_check_branch
      %194 = sbr.rel (%p191) target = $region32
    $region31: #{run.25} parent=5 // pred_region
      %s195 = ssub.s32 %s9, 1
      %p196 = scmp.lt.s32.totalorder %s19, 7
      %s197 = scalar_select %p196, %s19, 7
      %p198 = scmp.lt.s32.totalorder %s20, 0
      %s199 = scalar_select %p198, %s20, 0
      %s200 = sadd.s32 %s199, %s197
      %s201 = smul.addr %s200, 2
      %s202 = scalar_lea.vmem %s0, %s201
      %p203 = pneg %p56
      %p204 = pneg %p53
      %p205 = scmp.lt.s32.totalorder %s19, 7
      %s206 = scalar_select %p205, %s19, 7
      %p207 = scmp.lt.s32.totalorder %s21, 0
      %s208 = scalar_select %p207, %s21, 0
      %s209 = sadd.s32 %s208, %s206
      %s210 = smul.addr %s209, 2
      %s211 = scalar_lea.vmem %s1, %s210
      %p212 = pneg %p84
      %p213 = pneg %p81
      %p214 = scmp.lt.s32.totalorder %s19, 7
      %s215 = scalar_select %p214, %s19, 7
      %p216 = scmp.lt.s32.totalorder %s21, 0
      %s217 = scalar_select %p216, %s21, 0
      %s218 = sadd.s32 %s217, %s215
      %s219 = smul.addr %s218, 2
      %s220 = scalar_lea.vmem %s2, %s219
      %p221 = pneg %p112
      %p222 = pneg %p109
      %p223 = pneg %p140
      %p224 = pneg %p137
      %p225 = scmp.lt.s32.totalorder %s19, 7
      %s226 = scalar_select %p225, %s19, 7
      %p227 = scmp.lt.s32.totalorder %s20, 0
      %s228 = scalar_select %p227, %s20, 0
      %s229 = sadd.s32 %s228, %s226
      %s230 = smul.addr %s229, 2
      %s231 = scalar_lea.vmem %s3, %s230
      %p232 = scmp.lt.s32.totalorder %s19, 7
      %s233 = scalar_select %p232, %s19, 7
      %p234 = scmp.lt.s32.totalorder %s20, 0
      %s235 = scalar_select %p234, %s20, 0
      %s236 = sadd.s32 %s235, %s233
      %s237 = smul.addr %s236, 2
      %s238 = scalar_lea.vmem %s0, %s237
      %p239 = scmp.lt.s32.totalorder %s19, 7
      %s240 = scalar_select %p239, %s19, 7
      %p241 = scmp.lt.s32.totalorder %s21, 0
      %s242 = scalar_select %p241, %s21, 0
      %s243 = sadd.s32 %s242, %s240
      %s244 = smul.addr %s243, 2
      %s245 = scalar_lea.vmem %s1, %s244
      %p246 = scmp.lt.s32.totalorder %s19, 7
      %s247 = scalar_select %p246, %s19, 7
      %p248 = scmp.lt.s32.totalorder %s21, 0
      %s249 = scalar_select %p248, %s21, 0
      %s250 = sadd.s32 %s249, %s247
      %s251 = smul.addr %s250, 2
      %s252 = scalar_lea.vmem %s2, %s251
      %p253 = scmp.lt.s32.totalorder %s19, 7
      %s254 = scalar_select %p253, %s19, 7
      %p255 = scmp.lt.s32.totalorder %s20, 0
      %s256 = scalar_select %p255, %s20, 0
      %s257 = sadd.s32 %s256, %s254
      %s258 = smul.addr %s257, 2
      %s259 = scalar_lea.vmem %s3, %s258
      %p261 = scmp.eq.s32.totalorder %s21, 0
      // Predicated region
      $region33: #{run.25} parent=31 // pred_check
        %p262 = pneg %p261
      $region34: #{run.25} parent=31 // pred_check_branch
        %264 = sbr.rel (%p262) target = $region36
      $region35: #{run.25} parent=31 // pred_region
        %vm265 = vcmask 3072
        %266 = vst.msk [vmem:[#allocation2] sm:$0xf] %vm265, -inf
        %267 = vst.msk [vmem:[#allocation3] sm:$0xf] %vm265, 0.0
        %vm268 = vcmask 60416
        %269 = vst.msk [vmem:[#allocation4] sm:$0xf] %vm268, 0.0
      $region36: #{run.25} parent=31 // pred_fallthru
        _
      %v270 = vld [vmem:[%s238] sm:$0x3]
      %v271 = vld [vmem:[%s245] sm:$0x3]
      %v272 = vld [vmem:[%s252] sm:$0x3]
      %vm273 = vcmask 64512
      %v275 = vsel %vm273, %v270, 0
      %v278 = vsel %vm273, %v271, 0
      %280 = vmatprep.subr.bf16.mxu0 0
      %281 = vmatpush1.bf16.xpose.msra.mxu0 0
      %282 = vmatprep.subr.bf16.mxu0 0
      %283 = vmatpush1.bf16.xpose.msra.mxu0 0
      %284 = vmatprep.subr.bf16.mxu0 0
      %285 = vmatpush1.bf16.xpose.msra.mxu0 0
      %286 = vmatprep.subr.bf16.mxu0 0
      %287 = vmatpush1.bf16.xpose.msra.mxu0 0
      %288 = vmatprep.subr.bf16.mxu0 0
      %289 = vmatpush1.bf16.xpose.msra.mxu0 0
      %290 = vmatprep.subr.bf16.mxu0 0
      %291 = vmatpush1.bf16.xpose.msra.mxu0 0
      %292 = vmatprep.subr.bf16.mxu0 0
      %293 = vmatpush1.bf16.xpose.msra.mxu0 0
      %294 = vmatprep.subr.bf16.mxu0 0
      %295 = vmatpush1.bf16.xpose.msra.mxu0 %v278
      %296 = vmatprep.subr.bf16.mxu0 0
      %297 = vmatpush2.bf16.xpose.msra.mxu0 0
      %298 = vmatprep.subr.bf16.mxu0 0
      %299 = vmatpush2.bf16.xpose.msra.mxu0 0
      %300 = vmatprep.subr.bf16.mxu0 0
      %301 = vmatpush2.bf16.xpose.msra.mxu0 0
      %302 = vmatprep.subr.bf16.mxu0 0
      %303 = vmatpush2.bf16.xpose.msra.mxu0 0
      %304 = vmatprep.subr.bf16.mxu0 0
      %305 = vmatpush2.bf16.xpose.msra.mxu0 0
      %306 = vmatprep.subr.bf16.mxu0 0
      %307 = vmatpush2.bf16.xpose.msra.mxu0 0
      %308 = vmatprep.subr.bf16.mxu0 0
      %309 = vmatpush2.bf16.xpose.msra.mxu0 0
      %310 = vmatprep.subr.bf16.mxu0 0
      %311 = vmatpush2.bf16.xpose.msra.mxu0 0
      %312 = vmatprep.mubr.bf16.mxu0 0
      %313 = vmatmul.mubr.bf16.gmra.mxu0 %v275
      %v314 = vpop.f32.mrf.mxu0
      %v315 = vadd.f32 0.0, %v314
      %v316 = vpop.f32.mrf.mxu0
      %v317 = vpop.f32.mrf.mxu0
      %v318 = vpop.f32.mrf.mxu0
      %319 = vdwg.mxu0
      %v320 = vld [vmem:[#allocation2] sm:$0xf]
      %vm321 = vcmask 27648
      %v322 = vsel %vm321, %v315, -inf
      %323 = vmax.xlane.f32.xlu0 %v322
      %v324 = vpop.xlane.xlu0 %323
      %v325 = vmax.f32 %v320, %v324
      %v326 = vsub.f32 %v320, %v325
      %v327 = vmul.f32 %v326, 1.442695
      %v328 = vpow.pop %v327
      %330 = vset.pattern.permute.xlu0 0
      %331 = vperm.xlu0 %330, %v325
      %v332 = vpop.permute.xlu0 %331
      %v334 = vsub.f32 %v315, %v332
      %v335 = vmul.f32 %v334, 1.442695
      %v336 = vpow.pop %v335
      %v337 = vld [vmem:[#allocation3] sm:$0xf]
      %v338 = vmul.f32 %v328, %v337
      %v339 = vsel %vm321, %v336, 0.0
      %340 = vadd.xlane.f32.xlu0 %v339
      %v341 = vpop.xlane.xlu0 %340
      %v342 = vadd.f32 %v338, %v341
      %vm343 = vcmask 3072
      %344 = vst.msk [vmem:[#allocation3] sm:$0xf] %vm343, %v342
      %v345 = vld [vmem:[#allocation4] sm:$0xf]
      %347 = vset.pattern.permute.xlu0 0
      %348 = vperm.xlu0 %347, %v328
      %v349 = vpop.permute.xlu0 %348
      %v351 = vmul.f32 %v349, %v345
      %v352 = vpack.c.bf16 %v336, %v336
      %vm353 = vcmask 31744
      %v355 = vsel %vm353, %v352, 0
      %vm357 = vcmask 1041408
      %v359 = vsel %vm357, %v272, 0
      %361 = vmatprep.subr.bf16.mxu0 0
      %362 = vmatpush1.bf16.msra.mxu0 0
      %363 = vmatprep.subr.bf16.mxu0 0
      %364 = vmatpush1.bf16.msra.mxu0 0
      %365 = vmatprep.subr.bf16.mxu0 0
      %366 = vmatpush1.bf16.msra.mxu0 0
      %367 = vmatprep.subr.bf16.mxu0 0
      %368 = vmatpush1.bf16.msra.mxu0 0
      %369 = vmatprep.subr.bf16.mxu0 0
      %370 = vmatpush1.bf16.msra.mxu0 0
      %371 = vmatprep.subr.bf16.mxu0 0
      %372 = vmatpush1.bf16.msra.mxu0 0
      %373 = vmatprep.subr.bf16.mxu0 0
      %374 = vmatpush1.bf16.msra.mxu0 0
      %375 = vmatprep.subr.bf16.mxu0 0
      %376 = vmatpush1.bf16.msra.mxu0 %v359
      %377 = vmatprep.subr.bf16.mxu0 0
      %378 = vmatpush2.bf16.msra.mxu0 0
      %379 = vmatprep.subr.bf16.mxu0 0
      %380 = vmatpush2.bf16.msra.mxu0 0
      %381 = vmatprep.subr.bf16.mxu0 0
      %382 = vmatpush2.bf16.msra.mxu0 0
      %383 = vmatprep.subr.bf16.mxu0 0
      %384 = vmatpush2.bf16.msra.mxu0 0
      %385 = vmatprep.subr.bf16.mxu0 0
      %386 = vmatpush2.bf16.msra.mxu0 0
      %387 = vmatprep.subr.bf16.mxu0 0
      %388 = vmatpush2.bf16.msra.mxu0 0
      %389 = vmatprep.subr.bf16.mxu0 0
      %390 = vmatpush2.bf16.msra.mxu0 0
      %391 = vmatprep.subr.bf16.mxu0 0
      %392 = vmatpush2.bf16.msra.mxu0 0
      %393 = vmatprep.mubr.bf16.mxu0 0
      %394 = vmatmul.mubr.bf16.gmra.mxu0 %v355
      %v395 = vpop.f32.mrf.mxu0
      %v396 = vadd.f32 0.0, %v395
      %v397 = vpop.f32.mrf.mxu0
      %v398 = vpop.f32.mrf.mxu0
      %v399 = vpop.f32.mrf.mxu0
      %400 = vdwg.mxu0
      %v401 = vadd.f32 %v351, %v396
      %vm402 = vcmask 60416
      %403 = vst.msk [vmem:[#allocation4] sm:$0xf] %vm402, %v401
      %404 = vst.msk [vmem:[#allocation2] sm:$0xf] %vm343, %v325
      // Predicated region
      $region37: #{run.25} parent=31 // pred_check
        %p405 = pneg %p261
      $region38: #{run.25} parent=31 // pred_check_branch
        %407 = sbr.rel (%p405) target = $region40
      $region39: #{run.25} parent=31 // pred_region
        %v408 = vld [vmem:[#allocation4] sm:$0xf]
        %v409 = vld [vmem:[#allocation3] sm:$0xf]
        %v410 = vrcp.pop %v409
        %412 = vset.pattern.permute.xlu0 0
        %413 = vperm.xlu0 %412, %v410
        %v414 = vpop.permute.xlu0 %413
        %v416 = vmul.f32 %v408, %v414
        %v417 = vpack.c.bf16 %v416, %v416
        %vm418 = vcmask 58368
        %419 = vst.msk [vmem:[%s259] sm:$0x3] %vm418, %v417
      $region40: #{run.25} parent=31 // pred_fallthru
        _
      %p420 = scmp.lt.s32.totalorder %s19, 7
      %s421 = scalar_select %p420, %s19, 7
      %p422 = scmp.lt.s32.totalorder %s20, 0
      %s423 = scalar_select %p422, %s20, 0
      %s424 = sadd.s32 %s423, %s421
      %s425 = smul.addr %s424, 2
      %s426 = scalar_lea.vmem %s3, %s425
      // Predicated region
      $region41: #{run.25} parent=31 // pred_check
        %p427 = pneg %p137
      $region42: #{run.25} parent=31 // pred_check_branch
        %429 = sbr.rel (%p427) target = $region44
      $region43: #{run.25} parent=31 // pred_region
        _
      $region44: #{run.25} parent=31 // pred_fallthru
        _
    $region32: #{run.25} parent=5 // pred_fallthru
      _
    %p430 = scmp.le.s32.totalorder 2, %s9
    // Predicated region
    $region45: #{run.25} parent=5 // pred_check
      %p431 = pneg %p430
    $region46: #{run.25} parent=5 // pred_check_branch
      %433 = sbr.rel (%p431) target = $region48
    $region47: #{run.25} parent=5 // pred_region
      %s434 = ssub.s32 %s9, 2
      // Predicated region
      $region49: #{run.25} parent=47 // pred_check
        %p435 = pneg %p143
      $region50: #{run.25} parent=47 // pred_check_branch
        %437 = sbr.rel (%p435) target = $region52
      $region51: #{run.25} parent=47 // pred_region
        %p438 = scmp.lt.s32.totalorder %s22, 7
        %s439 = scalar_select %p438, %s22, 7
        %p440 = scmp.lt.s32.totalorder %s23, 0
        %s441 = scalar_select %p440, %s23, 0
        %s442 = sadd.s32 %s441, %s439
        %s443 = smul.addr %s442, 2
        %s444 = scalar_lea.vmem %s3, %s443
      $region52: #{run.25} parent=47 // pred_fallthru
        _
    $region48: #{run.25} parent=5 // pred_fallthru
      _
  $region6: #{run.25} parent=0 // loop_footer
    %s13 = sadd.s32 1, %s9
  $region7: #{run.25} parent=0 // loop_footer_branch
    %8 = sbr.rel target = $region3
  $region8: #{run.25} parent=0 // loop_exit
    _

// kernel: run.26
$region0: #{run.26}
  #allocation0 [shape = 'u32[]', space=smem, size = 0x4, offset = 0x4, fixed_abs, tag = 'smem constant byte address 0x4 - core index']
  #allocation1 [shape = 'u32[144,128]{1,0:T(1,128)}', space=vmem, size = 0x12000, scoped, tag = 'internal scratch']
  #allocation2 [shape = 'f32[8,32]{1,0:T(8,128)}', space=vmem, size = 0x1000, scoped, tag = 'scratch operand']
  %s0 = inlined_call_operand.vmem [shape: bf16[8,32], index: 0, kind: input, shape index: {}]
  %s1 = inlined_call_operand.vmem [shape: bf16[32,32], index: 1, kind: input, shape index: {}]
  %s2 = inlined_call_operand.vmem [shape: bf16[1,32], index: 2, kind: input, shape index: {}]
  %s3 = inlined_call_operand.vmem [shape: bf16[8,32], index: 3, kind: input, shape index: {}]
  %s4 = inlined_call_operand.vmem [shape: bf16[8,32], index: 4, kind: output, shape index: {}]
  %s5 = sld [smem:[#allocation0]]
  $region34: #{run.26} parent=0
    _
  %s7 = ssub.s32 1, %s5
  %s8 = scalar_select 0, %s7, %s5
  // Predicated region
  $region2: #{run.26} parent=0 // pred_check
    _
  $region3: #{run.26} parent=0 // pred_check_branch
    %10 = sbr.rel (0) target = $region5
  $region4: #{run.26} parent=0 // pred_region
    _
  $region5: #{run.26} parent=0 // pred_fallthru
    _
  // Predicated region
  $region6: #{run.26} parent=0 // pred_check
    _
  $region7: #{run.26} parent=0 // pred_check_branch
    %12 = sbr.rel (0) target = $region9
  $region8: #{run.26} parent=0 // pred_region
    _
  $region9: #{run.26} parent=0 // pred_fallthru
    _
  // Predicated region
  $region10: #{run.26} parent=0 // pred_check
    _
  $region11: #{run.26} parent=0 // pred_check_branch
    %14 = sbr.rel (0) target = $region13
  $region12: #{run.26} parent=0 // pred_region
    _
  $region13: #{run.26} parent=0 // pred_fallthru
    _
  // Predicated region
  $region14: #{run.26} parent=0 // pred_check
    _
  $region15: #{run.26} parent=0 // pred_check_branch
    %16 = sbr.rel (0) target = $region17
  $region16: #{run.26} parent=0 // pred_region
    _
  $region17: #{run.26} parent=0 // pred_fallthru
    _
  %p18 = scmp.eq.s32.totalorder 0, 0
  // Predicated region
  $region18: #{run.26} parent=0 // pred_check
    %p19 = pneg %p18
  $region19: #{run.26} parent=0 // pred_check_branch
    %21 = sbr.rel (%p19) target = $region21
  $region20: #{run.26} parent=0 // pred_region
    %vm22 = vcmask 261120
    %23 = vst.msk [vmem:[#allocation2] sm:$0xff] %vm22, 0.0
  $region21: #{run.26} parent=0 // pred_fallthru
    _
  %v24 = vld [vmem:[%s0] sm:$0xf]
  %v25 = vld [vmem:[#allocation2] sm:$0xff]
  %v26 = vld [vmem:[%s1] sm:$0xf]
  %v27 = vld [vmem:[%s1 + $0x4] sm:$0xf]
  %v28 = vld [vmem:[%s1 + $0x8] sm:$0xf]
  %v29 = vld [vmem:[%s1 + $0xc] sm:$0xf]
  %v34 = vunpack.c.l.b16 %v26
  %v35 = vunpack.c.l.b16 %v27
  %v36 = vunpack.c.l.b16 %v28
  %v37 = vunpack.c.l.b16 %v29
  %v38 = vpack.c.b16 %v35, %v34
  %v39 = vpack.c.b16 %v37, %v36
  %vm42 = vcmask 261120
  %v44 = vsel %vm42, %v24, 0
  %46 = vmatprep.subr.bf16.mxu0 0
  %47 = vmatpush1.bf16.msra.mxu0 0
  %48 = vmatprep.subr.bf16.mxu0 0
  %49 = vmatpush1.bf16.msra.mxu0 0
  %50 = vmatprep.subr.bf16.mxu0 0
  %51 = vmatpush1.bf16.msra.mxu0 0
  %52 = vmatprep.subr.bf16.mxu0 0
  %53 = vmatpush1.bf16.msra.mxu0 0
  %54 = vmatprep.subr.bf16.mxu0 0
  %55 = vmatpush1.bf16.msra.mxu0 0
  %56 = vmatprep.subr.bf16.mxu0 0
  %57 = vmatpush1.bf16.msra.mxu0 0
  %58 = vmatprep.subr.bf16.mxu0 0
  %59 = vmatpush1.bf16.msra.mxu0 %v39
  %60 = vmatprep.subr.bf16.mxu0 0
  %61 = vmatpush1.bf16.msra.mxu0 %v38
  %62 = vmatprep.subr.bf16.mxu0 0
  %63 = vmatpush2.bf16.msra.mxu0 0
  %64 = vmatprep.subr.bf16.mxu0 0
  %65 = vmatpush2.bf16.msra.mxu0 0
  %66 = vmatprep.subr.bf16.mxu0 0
  %67 = vmatpush2.bf16.msra.mxu0 0
  %68 = vmatprep.subr.bf16.mxu0 0
  %69 = vmatpush2.bf16.msra.mxu0 0
  %70 = vmatprep.subr.bf16.mxu0 0
  %71 = vmatpush2.bf16.msra.mxu0 0
  %72 = vmatprep.subr.bf16.mxu0 0
  %73 = vmatpush2.bf16.msra.mxu0 0
  %74 = vmatprep.subr.bf16.mxu0 0
  %75 = vmatpush2.bf16.msra.mxu0 0
  %76 = vmatprep.subr.bf16.mxu0 0
  %77 = vmatpush2.bf16.msra.mxu0 0
  %78 = vmatprep.mubr.bf16.mxu0 0
  %79 = vmatmul.mubr.bf16.gmra.mxu0 %v44
  %v80 = vpop.f32.mrf.mxu0
  %v81 = vadd.f32 0.0, %v80
  %v82 = vpop.f32.mrf.mxu0
  %v83 = vpop.f32.mrf.mxu0
  %v84 = vpop.f32.mrf.mxu0
  %85 = vdwg.mxu0
  %v86 = vadd.f32 %v25, %v81
  %87 = vst.msk [vmem:[#allocation2] sm:$0xff] %vm42, %v86
  // Predicated region
  $region22: #{run.26} parent=0 // pred_check
    %p88 = pneg %p18
  $region23: #{run.26} parent=0 // pred_check_branch
    %90 = sbr.rel (%p88) target = $region25
  $region24: #{run.26} parent=0 // pred_region
    %v91 = vld [vmem:[#allocation2] sm:$0xff]
    %v92 = vld [vmem:[%s2] sm:$0x1]
    %v93 = vunpack.c.l.bf16 %v92
    %v94 = vlaneseq
    %v95 = vshrl.u32 %v94, 7
    %v96 = vsub.s32 0, %v95
    %v97 = vrot.slane %v93, %v96
    %v98 = vadd.f32 %v91, %v97
    %v99 = vld [vmem:[%s3] sm:$0xf]
    %v100 = vunpack.c.l.bf16 %v99
    %v101 = vadd.f32 %v98, %v100
    %v102 = vpack.c.bf16 %v101, %v101
    %vm103 = vcmask 257024
    %104 = vst.msk [vmem:[%s4] sm:$0xf] %vm103, %v102
  $region25: #{run.26} parent=0 // pred_fallthru
    _
  // Predicated region
  $region26: #{run.26} parent=0 // pred_check
    _
  $region27: #{run.26} parent=0 // pred_check_branch
    %106 = sbr.rel (0) target = $region29
  $region28: #{run.26} parent=0 // pred_region
    _
  $region29: #{run.26} parent=0 // pred_fallthru
    _
  // Predicated region
  $region30: #{run.26} parent=0 // pred_check
    _
  $region31: #{run.26} parent=0 // pred_check_branch
    %108 = sbr.rel (0) target = $region33
  $region32: #{run.26} parent=0 // pred_region
    _
  $region33: #{run.26} parent=0 // pred_fallthru
    _

// kernel: run.27
$region0: #{run.27}
  #allocation0 [shape = 'u32[]', space=smem, size = 0x4, offset = 0x4, fixed_abs, tag = 'smem constant byte address 0x4 - core index']
  #allocation1 [shape = 'u32[144,128]{1,0:T(1,128)}', space=vmem, size = 0x12000, scoped, tag = 'internal scratch']
  #allocation2 [shape = 'f32[8,64]{1,0:T(8,128)}', space=vmem, size = 0x1000, scoped, tag = 'scratch operand']
  %s0 = inlined_call_operand.vmem [shape: bf16[8,32], index: 0, kind: input, shape index: {}]
  %s1 = inlined_call_operand.vmem [shape: bf16[32,64], index: 1, kind: input, shape index: {}]
  %s2 = inlined_call_operand.vmem [shape: bf16[1,32], index: 2, kind: input, shape index: {}]
  %s3 = inlined_call_operand.vmem [shape: bf16[1,32], index: 3, kind: input, shape index: {}]
  %s4 = inlined_call_operand.vmem [shape: bf16[1,64], index: 4, kind: input, shape index: {}]
  %s5 = inlined_call_operand.vmem [shape: bf16[8,64], index: 5, kind: output, shape index: {}]
  %s6 = sld [smem:[#allocation0]]
  $region38: #{run.27} parent=0
    _
  %s8 = ssub.s32 1, %s6
  %s9 = scalar_select 0, %s8, %s6
  // Predicated region
  $region2: #{run.27} parent=0 // pred_check
    _
  $region3: #{run.27} parent=0 // pred_check_branch
    %11 = sbr.rel (0) target = $region5
  $region4: #{run.27} parent=0 // pred_region
    _
  $region5: #{run.27} parent=0 // pred_fallthru
    _
  // Predicated region
  $region6: #{run.27} parent=0 // pred_check
    _
  $region7: #{run.27} parent=0 // pred_check_branch
    %13 = sbr.rel (0) target = $region9
  $region8: #{run.27} parent=0 // pred_region
    _
  $region9: #{run.27} parent=0 // pred_fallthru
    _
  // Predicated region
  $region10: #{run.27} parent=0 // pred_check
    _
  $region11: #{run.27} parent=0 // pred_check_branch
    %15 = sbr.rel (0) target = $region13
  $region12: #{run.27} parent=0 // pred_region
    _
  $region13: #{run.27} parent=0 // pred_fallthru
    _
  // Predicated region
  $region14: #{run.27} parent=0 // pred_check
    _
  $region15: #{run.27} parent=0 // pred_check_branch
    %17 = sbr.rel (0) target = $region17
  $region16: #{run.27} parent=0 // pred_region
    _
  $region17: #{run.27} parent=0 // pred_fallthru
    _
  // Predicated region
  $region18: #{run.27} parent=0 // pred_check
    _
  $region19: #{run.27} parent=0 // pred_check_branch
    %19 = sbr.rel (0) target = $region21
  $region20: #{run.27} parent=0 // pred_region
    _
  $region21: #{run.27} parent=0 // pred_fallthru
    _
  %p21 = scmp.eq.s32.totalorder 0, 0
  // Predicated region
  $region22: #{run.27} parent=0 // pred_check
    %p22 = pneg %p21
  $region23: #{run.27} parent=0 // pred_check_branch
    %24 = sbr.rel (%p22) target = $region25
  $region24: #{run.27} parent=0 // pred_region
    %vm25 = vcmask 523264
    %26 = vst.msk [vmem:[#allocation2] sm:$0xff] %vm25, 0.0
  $region25: #{run.27} parent=0 // pred_fallthru
    _
  %v27 = vld [vmem:[%s0] sm:$0xf]
  %v28 = vunpack.c.l.bf16 %v27
  %vm29 = vcmask 261120
  %v30 = vsel %vm29, %v28, 0.0
  %31 = vadd.xlane.f32.xlu0 %v30
  %v32 = vpop.xlane.xlu0 %31
  %v33 = vrcp.pop 32.0
  %v34 = vmul.f32 %v32, %v33
  %v35 = vsub.f32 %v28, %v34
  %v36 = vmul.f32 %v35, %v35
  %v37 = vsel %vm29, %v36, 0.0
  %38 = vadd.xlane.f32.xlu0 %v37
  %v39 = vpop.xlane.xlu0 %38
  %v40 = vmul.f32 %v39, %v33
  %v41 = vadd.f32 %v40, 1e-06
  %v42 = vrsqrt.pop %v41
  %v43 = vmul.f32 %v35, %v42
  %v44 = vld [vmem:[%s2] sm:$0x1]
  %v45 = vunpack.c.l.bf16 %v44
  %v46 = vlaneseq
  %v47 = vshrl.u32 %v46, 7
  %v48 = vsub.s32 0, %v47
  %v49 = vrot.slane %v45, %v48
  %v50 = vmul.f32 %v43, %v49
  %v51 = vld [vmem:[%s3] sm:$0x1]
  %v52 = vunpack.c.l.bf16 %v51
  %v53 = vlaneseq
  %v54 = vshrl.u32 %v53, 7
  %v55 = vsub.s32 0, %v54
  %v56 = vrot.slane %v52, %v55
  %v57 = vadd.f32 %v50, %v56
  %v58 = vpack.c.bf16 %v57, %v57
  %v59 = vld [vmem:[#allocation2] sm:$0xff]
  %v60 = vld [vmem:[%s1] sm:$0xf]
  %v61 = vld [vmem:[%s1 + $0x4] sm:$0xf]
  %v62 = vld [vmem:[%s1 + $0x8] sm:$0xf]
  %v63 = vld [vmem:[%s1 + $0xc] sm:$0xf]
  %v68 = vunpack.c.l.b16 %v60
  %v69 = vunpack.c.l.b16 %v61
  %v70 = vunpack.c.l.b16 %v62
  %v71 = vunpack.c.l.b16 %v63
  %v72 = vpack.c.b16 %v69, %v68
  %v73 = vpack.c.b16 %v71, %v70
  %v77 = vsel %vm29, %v58, 0
  %79 = vmatprep.subr.bf16.mxu0 0
  %80 = vmatpush1.bf16.msra.mxu0 0
  %81 = vmatprep.subr.bf16.mxu0 0
  %82 = vmatpush1.bf16.msra.mxu0 0
  %83 = vmatprep.subr.bf16.mxu0 0
  %84 = vmatpush1.bf16.msra.mxu0 0
  %85 = vmatprep.subr.bf16.mxu0 0
  %86 = vmatpush1.bf16.msra.mxu0 0
  %87 = vmatprep.subr.bf16.mxu0 0
  %88 = vmatpush1.bf16.msra.mxu0 0
  %89 = vmatprep.subr.bf16.mxu0 0
  %90 = vmatpush1.bf16.msra.mxu0 0
  %91 = vmatprep.subr.bf16.mxu0 0
  %92 = vmatpush1.bf16.msra.mxu0 %v73
  %93 = vmatprep.subr.bf16.mxu0 0
  %94 = vmatpush1.bf16.msra.mxu0 %v72
  %95 = vmatprep.subr.bf16.mxu0 0
  %96 = vmatpush2.bf16.msra.mxu0 0
  %97 = vmatprep.subr.bf16.mxu0 0
  %98 = vmatpush2.bf16.msra.mxu0 0
  %99 = vmatprep.subr.bf16.mxu0 0
  %100 = vmatpush2.bf16.msra.mxu0 0
  %101 = vmatprep.subr.bf16.mxu0 0
  %102 = vmatpush2.bf16.msra.mxu0 0
  %103 = vmatprep.subr.bf16.mxu0 0
  %104 = vmatpush2.bf16.msra.mxu0 0
  %105 = vmatprep.subr.bf16.mxu0 0
  %106 = vmatpush2.bf16.msra.mxu0 0
  %107 = vmatprep.subr.bf16.mxu0 0
  %108 = vmatpush2.bf16.msra.mxu0 0
  %109 = vmatprep.subr.bf16.mxu0 0
  %110 = vmatpush2.bf16.msra.mxu0 0
  %111 = vmatprep.mubr.bf16.mxu0 0
  %112 = vmatmul.mubr.bf16.gmra.mxu0 %v77
  %v113 = vpop.f32.mrf.mxu0
  %v114 = vadd.f32 0.0, %v113
  %v115 = vpop.f32.mrf.mxu0
  %v116 = vpop.f32.mrf.mxu0
  %v117 = vpop.f32.mrf.mxu0
  %118 = vdwg.mxu0
  %v119 = vadd.f32 %v59, %v114
  %vm120 = vcmask 523264
  %121 = vst.msk [vmem:[#allocation2] sm:$0xff] %vm120, %v119
  // Predicated region
  $region26: #{run.27} parent=0 // pred_check
    %p122 = pneg %p21
  $region27: #{run.27} parent=0 // pred_check_branch
    %124 = sbr.rel (%p122) target = $region29
  $region28: #{run.27} parent=0 // pred_region
    %v125 = vld [vmem:[#allocation2] sm:$0xff]
    %v126 = vld [vmem:[%s4] sm:$0x1]
    %v127 = vunpack.c.l.bf16 %v126
    %v128 = vlaneseq
    %v129 = vshrl.u32 %v128, 7
    %v130 = vsub.s32 0, %v129
    %v131 = vrot.slane %v127, %v130
    %v132 = vadd.f32 %v125, %v131
    %v133 = vmul.f32 %v132, 0.5
    %v134 = vmul.f32 %v132, 0.044715
    %v135 = vmul.f32 %v134, %v132
    %v136 = vmul.f32 %v135, %v132
    %v137 = vadd.f32 %v132, %v136
    %v138 = vmul.f32 %v137, 0.7978846
    %v139 = vtanh.pop %v138
    %v140 = vadd.f32 %v139, 1.0
    %v141 = vmul.f32 %v133, %v140
    %v142 = vpack.c.bf16 %v141, %v141
    %vm143 = vcmask 519168
    %144 = vst.msk [vmem:[%s5] sm:$0xf] %vm143, %v142
  $region29: #{run.27} parent=0 // pred_fallthru
    _
  // Predicated region
  $region30: #{run.27} parent=0 // pred_check
    _
  $region31: #{run.27} parent=0 // pred_check_branch
    %146 = sbr.rel (0) target = $region33
  $region32: #{run.27} parent=0 // pred_region
    _
  $region33: #{run.27} parent=0 // pred_fallthru
    _
  // Predicated region
  $region34: #{run.27} parent=0 // pred_check
    _
  $region35: #{run.27} parent=0 // pred_check_branch
    %148 = sbr.rel (0) target = $region37
  $region36: #{run.27} parent=0 // pred_region
    _
  $region37: #{run.27} parent=0 // pred_fallthru
    _

// kernel: run.28
$region0: #{run.28}
  #allocation0 [shape = 'u32[]', space=smem, size = 0x4, offset = 0x4, fixed_abs, tag = 'smem constant byte address 0x4 - core index']
  #allocation1 [shape = 'u32[144,128]{1,0:T(1,128)}', space=vmem, size = 0x12000, scoped, tag = 'internal scratch']
  #allocation2 [shape = 'f32[8,32]{1,0:T(8,128)}', space=vmem, size = 0x1000, scoped, tag = 'scratch operand']
  %s0 = inlined_call_operand.vmem [shape: bf16[8,64], index: 0, kind: input, shape index: {}]
  %s1 = inlined_call_operand.vmem [shape: bf16[64,32], index: 1, kind: input, shape index: {}]
  %s2 = inlined_call_operand.vmem [shape: bf16[1,32], index: 2, kind: input, shape index: {}]
  %s3 = inlined_call_operand.vmem [shape: bf16[8,32], index: 3, kind: input, shape index: {}]
  %s4 = inlined_call_operand.vmem [shape: bf16[8,32], index: 4, kind: output, shape index: {}]
  %s5 = sld [smem:[#allocation0]]
  $region34: #{run.28} parent=0
    _
  %s7 = ssub.s32 1, %s5
  %s8 = scalar_select 0, %s7, %s5
  // Predicated region
  $region2: #{run.28} parent=0 // pred_check
    _
  $region3: #{run.28} parent=0 // pred_check_branch
    %10 = sbr.rel (0) target = $region5
  $region4: #{run.28} parent=0 // pred_region
    _
  $region5: #{run.28} parent=0 // pred_fallthru
    _
  // Predicated region
  $region6: #{run.28} parent=0 // pred_check
    _
  $region7: #{run.28} parent=0 // pred_check_branch
    %12 = sbr.rel (0) target = $region9
  $region8: #{run.28} parent=0 // pred_region
    _
  $region9: #{run.28} parent=0 // pred_fallthru
    _
  // Predicated region
  $region10: #{run.28} parent=0 // pred_check
    _
  $region11: #{run.28} parent=0 // pred_check_branch
    %14 = sbr.rel (0) target = $region13
  $region12: #{run.28} parent=0 // pred_region
    _
  $region13: #{run.28} parent=0 // pred_fallthru
    _
  // Predicated region
  $region14: #{run.28} parent=0 // pred_check
    _
  $region15: #{run.28} parent=0 // pred_check_branch
    %16 = sbr.rel (0) target = $region17
  $region16: #{run.28} parent=0 // pred_region
    _
  $region17: #{run.28} parent=0 // pred_fallthru
    _
  %p18 = scmp.eq.s32.totalorder 0, 0
  // Predicated region
  $region18: #{run.28} parent=0 // pred_check
    %p19 = pneg %p18
  $region19: #{run.28} parent=0 // pred_check_branch
    %21 = sbr.rel (%p19) target = $region21
  $region20: #{run.28} parent=0 // pred_region
    %vm22 = vcmask 261120
    %23 = vst.msk [vmem:[#allocation2] sm:$0xff] %vm22, 0.0
  $region21: #{run.28} parent=0 // pred_fallthru
    _
  %v24 = vld [vmem:[%s0] sm:$0xf]
  %v25 = vld [vmem:[#allocation2] sm:$0xff]
  %v26 = vld [vmem:[%s1] sm:$0xf]
  %v27 = vld [vmem:[%s1 + $0x4] sm:$0xf]
  %v28 = vld [vmem:[%s1 + $0x8] sm:$0xf]
  %v29 = vld [vmem:[%s1 + $0xc] sm:$0xf]
  %v30 = vld [vmem:[%s1 + $0x10] sm:$0xf]
  %v31 = vld [vmem:[%s1 + $0x14] sm:$0xf]
  %v32 = vld [vmem:[%s1 + $0x18] sm:$0xf]
  %v33 = vld [vmem:[%s1 + $0x1c] sm:$0xf]
  %v42 = vunpack.c.l.b16 %v26
  %v43 = vunpack.c.l.b16 %v27
  %v44 = vunpack.c.l.b16 %v28
  %v45 = vunpack.c.l.b16 %v29
  %v46 = vunpack.c.l.b16 %v30
  %v47 = vunpack.c.l.b16 %v31
  %v48 = vunpack.c.l.b16 %v32
  %v49 = vunpack.c.l.b16 %v33
  %v50 = vpack.c.b16 %v43, %v42
  %v51 = vpack.c.b16 %v45, %v44
  %v52 = vpack.c.b16 %v47, %v46
  %v53 = vpack.c.b16 %v49, %v48
  %vm58 = vcmask 523264
  %v60 = vsel %vm58, %v24, 0
  %62 = vmatprep.subr.bf16.mxu0 0
  %63 = vmatpush1.bf16.msra.mxu0 0
  %64 = vmatprep.subr.bf16.mxu0 0
  %65 = vmatpush1.bf16.msra.mxu0 0
  %66 = vmatprep.subr.bf16.mxu0 0
  %67 = vmatpush1.bf16.msra.mxu0 0
  %68 = vmatprep.subr.bf16.mxu0 0
  %69 = vmatpush1.bf16.msra.mxu0 0
  %70 = vmatprep.subr.bf16.mxu0 0
  %71 = vmatpush1.bf16.msra.mxu0 %v53
  %72 = vmatprep.subr.bf16.mxu0 0
  %73 = vmatpush1.bf16.msra.mxu0 %v52
  %74 = vmatprep.subr.bf16.mxu0 0
  %75 = vmatpush1.bf16.msra.mxu0 %v51
  %76 = vmatprep.subr.bf16.mxu0 0
  %77 = vmatpush1.bf16.msra.mxu0 %v50
  %78 = vmatprep.subr.bf16.mxu0 0
  %79 = vmatpush2.bf16.msra.mxu0 0
  %80 = vmatprep.subr.bf16.mxu0 0
  %81 = vmatpush2.bf16.msra.mxu0 0
  %82 = vmatprep.subr.bf16.mxu0 0
  %83 = vmatpush2.bf16.msra.mxu0 0
  %84 = vmatprep.subr.bf16.mxu0 0
  %85 = vmatpush2.bf16.msra.mxu0 0
  %86 = vmatprep.subr.bf16.mxu0 0
  %87 = vmatpush2.bf16.msra.mxu0 0
  %88 = vmatprep.subr.bf16.mxu0 0
  %89 = vmatpush2.bf16.msra.mxu0 0
  %90 = vmatprep.subr.bf16.mxu0 0
  %91 = vmatpush2.bf16.msra.mxu0 0
  %92 = vmatprep.subr.bf16.mxu0 0
  %93 = vmatpush2.bf16.msra.mxu0 0
  %94 = vmatprep.mubr.bf16.mxu0 0
  %95 = vmatmul.mubr.bf16.gmra.mxu0 %v60
  %v96 = vpop.f32.mrf.mxu0
  %v97 = vadd.f32 0.0, %v96
  %v98 = vpop.f32.mrf.mxu0
  %v99 = vpop.f32.mrf.mxu0
  %v100 = vpop.f32.mrf.mxu0
  %101 = vdwg.mxu0
  %v102 = vadd.f32 %v25, %v97
  %vm103 = vcmask 261120
  %104 = vst.msk [vmem:[#allocation2] sm:$0xff] %vm103, %v102
  // Predicated region
  $region22: #{run.28} parent=0 // pred_check
    %p105 = pneg %p18
  $region23: #{run.28} parent=0 // pred_check_branch
    %107 = sbr.rel (%p105) target = $region25
  $region24: #{run.28} parent=0 // pred_region
    %v108 = vld [vmem:[#allocation2] sm:$0xff]
    %v109 = vld [vmem:[%s2] sm:$0x1]
    %v110 = vunpack.c.l.bf16 %v109
    %v111 = vlaneseq
    %v112 = vshrl.u32 %v111, 7
    %v113 = vsub.s32 0, %v112
    %v114 = vrot.slane %v110, %v113
    %v115 = vadd.f32 %v108, %v114
    %v116 = vld [vmem:[%s3] sm:$0xf]
    %v117 = vunpack.c.l.bf16 %v116
    %v118 = vadd.f32 %v115, %v117
    %v119 = vpack.c.bf16 %v118, %v118
    %vm120 = vcmask 257024
    %121 = vst.msk [vmem:[%s4] sm:$0xf] %vm120, %v119
  $region25: #{run.28} parent=0 // pred_fallthru
    _
  // Predicated region
  $region26: #{run.28} parent=0 // pred_check
    _
  $region27: #{run.28} parent=0 // pred_check_branch
    %123 = sbr.rel (0) target = $region29
  $region28: #{run.28} parent=0 // pred_region
    _
  $region29: #{run.28} parent=0 // pred_fallthru
    _
  // Predicated region
  $region30: #{run.28} parent=0 // pred_check
    _
  $region31: #{run.28} parent=0 // pred_check_branch
    %125 = sbr.rel (0) target = $region33
  $region32: #{run.28} parent=0 // pred_region
    _
  $region33: #{run.28} parent=0 // pred_fallthru
    _

// kernel: run.34
$region0: #{run.34}
  #allocation0 [shape = 'u32[]', space=smem, size = 0x4, offset = 0x4, fixed_abs, tag = 'smem constant byte address 0x4 - core index']
  #allocation1 [shape = 'u32[144,128]{1,0:T(1,128)}', space=vmem, size = 0x12000, scoped, tag = 'internal scratch']
  #allocation2 [shape = 'f32[8,64]{1,0:T(8,128)}', space=vmem, size = 0x1000, scoped, tag = 'scratch operand']
  %s0 = inlined_call_operand.vmem [shape: bf16[8,32], index: 0, kind: input, shape index: {}]
  %s1 = inlined_call_operand.vmem [shape: bf16[32,64], index: 1, kind: input, shape index: {}]
  %s2 = inlined_call_operand.vmem [shape: bf16[1,32], index: 2, kind: input, shape index: {}]
  %s3 = inlined_call_operand.vmem [shape: bf16[1,32], index: 3, kind: input, shape index: {}]
  %s4 = inlined_call_operand.vmem [shape: bf16[1,64], index: 4, kind: input, shape index: {}]
  %s5 = inlined_call_operand.vmem [shape: bf16[8,64], index: 5, kind: output, shape index: {}]
  %s6 = sld [smem:[#allocation0]]
  $region38: #{run.34} parent=0
    _
  %s8 = ssub.s32 1, %s6
  %s9 = scalar_select 0, %s8, %s6
  // Predicated region
  $region2: #{run.34} parent=0 // pred_check
    _
  $region3: #{run.34} parent=0 // pred_check_branch
    %11 = sbr.rel (0) target = $region5
  $region4: #{run.34} parent=0 // pred_region
    _
  $region5: #{run.34} parent=0 // pred_fallthru
    _
  // Predicated region
  $region6: #{run.34} parent=0 // pred_check
    _
  $region7: #{run.34} parent=0 // pred_check_branch
    %13 = sbr.rel (0) target = $region9
  $region8: #{run.34} parent=0 // pred_region
    _
  $region9: #{run.34} parent=0 // pred_fallthru
    _
  // Predicated region
  $region10: #{run.34} parent=0 // pred_check
    _
  $region11: #{run.34} parent=0 // pred_check_branch
    %15 = sbr.rel (0) target = $region13
  $region12: #{run.34} parent=0 // pred_region
    _
  $region13: #{run.34} parent=0 // pred_fallthru
    _
  // Predicated region
  $region14: #{run.34} parent=0 // pred_check
    _
  $region15: #{run.34} parent=0 // pred_check_branch
    %17 = sbr.rel (0) target = $region17
  $region16: #{run.34} parent=0 // pred_region
    _
  $region17: #{run.34} parent=0 // pred_fallthru
    _
  // Predicated region
  $region18: #{run.34} parent=0 // pred_check
    _
  $region19: #{run.34} parent=0 // pred_check_branch
    %19 = sbr.rel (0) target = $region21
  $region20: #{run.34} parent=0 // pred_region
    _
  $region21: #{run.34} parent=0 // pred_fallthru
    _
  %p21 = scmp.eq.s32.totalorder 0, 0
  // Predicated region
  $region22: #{run.34} parent=0 // pred_check
    %p22 = pneg %p21
  $region23: #{run.34} parent=0 // pred_check_branch
    %24 = sbr.rel (%p22) target = $region25
  $region24: #{run.34} parent=0 // pred_region
    %vm25 = vcmask 523264
    %26 = vst.msk [vmem:[#allocation2] sm:$0xff] %vm25, 0.0
  $region25: #{run.34} parent=0 // pred_fallthru
    _
  %v27 = vld [vmem:[%s0] sm:$0xf]
  %v28 = vunpack.c.l.bf16 %v27
  %vm29 = vcmask 261120
  %v30 = vsel %vm29, %v28, 0.0
  %31 = vadd.xlane.f32.xlu0 %v30
  %v32 = vpop.xlane.xlu0 %31
  %v33 = vrcp.pop 32.0
  %v34 = vmul.f32 %v32, %v33
  %v35 = vsub.f32 %v28, %v34
  %v36 = vmul.f32 %v35, %v35
  %v37 = vsel %vm29, %v36, 0.0
  %38 = vadd.xlane.f32.xlu0 %v37
  %v39 = vpop.xlane.xlu0 %38
  %v40 = vmul.f32 %v39, %v33
  %v41 = vadd.f32 %v40, 1e-06
  %v42 = vrsqrt.pop %v41
  %v43 = vmul.f32 %v35, %v42
  %v44 = vld [vmem:[%s2] sm:$0x1]
  %v45 = vunpack.c.l.bf16 %v44
  %v46 = vlaneseq
  %v47 = vshrl.u32 %v46, 7
  %v48 = vsub.s32 0, %v47
  %v49 = vrot.slane %v45, %v48
  %v50 = vmul.f32 %v43, %v49
  %v51 = vld [vmem:[%s3] sm:$0x1]
  %v52 = vunpack.c.l.bf16 %v51
  %v53 = vlaneseq
  %v54 = vshrl.u32 %v53, 7
  %v55 = vsub.s32 0, %v54
  %v56 = vrot.slane %v52, %v55
  %v57 = vadd.f32 %v50, %v56
  %v58 = vpack.c.bf16 %v57, %v57
  %v59 = vld [vmem:[#allocation2] sm:$0xff]
  %v60 = vld [vmem:[%s1] sm:$0xf]
  %v61 = vld [vmem:[%s1 + $0x4] sm:$0xf]
  %v62 = vld [vmem:[%s1 + $0x8] sm:$0xf]
  %v63 = vld [vmem:[%s1 + $0xc] sm:$0xf]
  %v68 = vunpack.c.l.b16 %v60
  %v69 = vunpack.c.l.b16 %v61
  %v70 = vunpack.c.l.b16 %v62
  %v71 = vunpack.c.l.b16 %v63
  %v72 = vpack.c.b16 %v69, %v68
  %v73 = vpack.c.b16 %v71, %v70
  %v77 = vsel %vm29, %v58, 0
  %79 = vmatprep.subr.bf16.mxu0 0
  %80 = vmatpush1.bf16.msra.mxu0 0
  %81 = vmatprep.subr.bf16.mxu0 0
  %82 = vmatpush1.bf16.msra.mxu0 0
  %83 = vmatprep.subr.bf16.mxu0 0
  %84 = vmatpush1.bf16.msra.mxu0 0
  %85 = vmatprep.subr.bf16.mxu0 0
  %86 = vmatpush1.bf16.msra.mxu0 0
  %87 = vmatprep.subr.bf16.mxu0 0
  %88 = vmatpush1.bf16.msra.mxu0 0
  %89 = vmatprep.subr.bf16.mxu0 0
  %90 = vmatpush1.bf16.msra.mxu0 0
  %91 = vmatprep.subr.bf16.mxu0 0
  %92 = vmatpush1.bf16.msra.mxu0 %v73
  %93 = vmatprep.subr.bf16.mxu0 0
  %94 = vmatpush1.bf16.msra.mxu0 %v72
  %95 = vmatprep.subr.bf16.mxu0 0
  %96 = vmatpush2.bf16.msra.mxu0 0
  %97 = vmatprep.subr.bf16.mxu0 0
  %98 = vmatpush2.bf16.msra.mxu0 0
  %99 = vmatprep.subr.bf16.mxu0 0
  %100 = vmatpush2.bf16.msra.mxu0 0
  %101 = vmatprep.subr.bf16.mxu0 0
  %102 = vmatpush2.bf16.msra.mxu0 0
  %103 = vmatprep.subr.bf16.mxu0 0
  %104 = vmatpush2.bf16.msra.mxu0 0
  %105 = vmatprep.subr.bf16.mxu0 0
  %106 = vmatpush2.bf16.msra.mxu0 0
  %107 = vmatprep.subr.bf16.mxu0 0
  %108 = vmatpush2.bf16.msra.mxu0 0
  %109 = vmatprep.subr.bf16.mxu0 0
  %110 = vmatpush2.bf16.msra.mxu0 0
  %111 = vmatprep.mubr.bf16.mxu0 0
  %112 = vmatmul.mubr.bf16.gmra.mxu0 %v77
  %v113 = vpop.f32.mrf.mxu0
  %v114 = vadd.f32 0.0, %v113
  %v115 = vpop.f32.mrf.mxu0
  %v116 = vpop.f32.mrf.mxu0
  %v117 = vpop.f32.mrf.mxu0
  %118 = vdwg.mxu0
  %v119 = vadd.f32 %v59, %v114
  %vm120 = vcmask 523264
  %121 = vst.msk [vmem:[#allocation2] sm:$0xff] %vm120, %v119
  // Predicated region
  $region26: #{run.34} parent=0 // pred_check
    %p122 = pneg %p21
  $region27: #{run.34} parent=0 // pred_check_branch
    %124 = sbr.rel (%p122) target = $region29
  $region28: #{run.34} parent=0 // pred_region
    %v125 = vld [vmem:[#allocation2] sm:$0xff]
    %v126 = vld [vmem:[%s4] sm:$0x1]
    %v127 = vunpack.c.l.bf16 %v126
    %v128 = vlaneseq
    %v129 = vshrl.u32 %v128, 7
    %v130 = vsub.s32 0, %v129
    %v131 = vrot.slane %v127, %v130
    %v132 = vadd.f32 %v125, %v131
    %v133 = vpack.c.bf16 %v132, %v132
    %vm134 = vcmask 519168
    %135 = vst.msk [vmem:[%s5] sm:$0xf] %vm134, %v133
  $region29: #{run.34} parent=0 // pred_fallthru
    _
  // Predicated region
  $region30: #{run.34} parent=0 // pred_check
    _
  $region31: #{run.34} parent=0 // pred_check_branch
    %137 = sbr.rel (0) target = $region33
  $region32: #{run.34} parent=0 // pred_region
    _
  $region33: #{run.34} parent=0 // pred_fallthru
    _
  // Predicated region
  $region34: #{run.34} parent=0 // pred_check
    _
  $region35: #{run.34} parent=0 // pred_check_branch
    %139 = sbr.rel (0) target = $region37
  $region36: #{run.34} parent=0 // pred_region
    _
  $region37: #{run.34} parent=0 // pred_fallthru
    _

// kernel: run.35
$region0: #{run.35}
  #allocation0 [shape = 'u32[]', space=smem, size = 0x4, offset = 0x4, fixed_abs, tag = 'smem constant byte address 0x4 - core index']
  #allocation1 [shape = 'u32[144,128]{1,0:T(1,128)}', space=vmem, size = 0x12000, scoped, tag = 'internal scratch']
  #allocation2 [shape = 'f32[16,128]{1,0:T(8,128)}', space=vmem, size = 0x2000, scoped, tag = 'scratch operand']
  %s0 = inlined_call_operand.vmem [shape: bf16[16,64], index: 0, kind: input, shape index: {}]
  %s1 = inlined_call_operand.vmem [shape: bf16[64,128], index: 1, kind: input, shape index: {}]
  %s2 = inlined_call_operand.vmem [shape: bf16[1,64], index: 2, kind: input, shape index: {}]
  %s3 = inlined_call_operand.vmem [shape: bf16[16,128], index: 3, kind: output, shape index: {}]
  %s4 = sld [smem:[#allocation0]]
  $region30: #{run.35} parent=0
    _
  %s6 = ssub.s32 1, %s4
  %s7 = scalar_select 0, %s6, %s4
  // Predicated region
  $region2: #{run.35} parent=0 // pred_check
    _
  $region3: #{run.35} parent=0 // pred_check_branch
    %9 = sbr.rel (0) target = $region5
  $region4: #{run.35} parent=0 // pred_region
    _
  $region5: #{run.35} parent=0 // pred_fallthru
    _
  // Predicated region
  $region6: #{run.35} parent=0 // pred_check
    _
  $region7: #{run.35} parent=0 // pred_check_branch
    %11 = sbr.rel (0) target = $region9
  $region8: #{run.35} parent=0 // pred_region
    _
  $region9: #{run.35} parent=0 // pred_fallthru
    _
  // Predicated region
  $region10: #{run.35} parent=0 // pred_check
    _
  $region11: #{run.35} parent=0 // pred_check_branch
    %13 = sbr.rel (0) target = $region13
  $region12: #{run.35} parent=0 // pred_region
    _
  $region13: #{run.35} parent=0 // pred_fallthru
    _
  %p15 = scmp.eq.s32.totalorder 0, 0
  // Predicated region
  $region14: #{run.35} parent=0 // pred_check
    %p16 = pneg %p15
  $region15: #{run.35} parent=0 // pred_check_branch
    %18 = sbr.rel (%p16) target = $region17
  $region16: #{run.35} parent=0 // pred_region
    %19 = vst [vmem:[#allocation2] sm:$0xff] 0.0
    %20 = vst [vmem:[#allocation2 + $0x8] sm:$0xff] 0.0
  $region17: #{run.35} parent=0 // pred_fallthru
    _
  %v21 = vld [vmem:[%s0] sm:$0xf]
  %v22 = vld [vmem:[%s0 + $0x4] sm:$0xf]
  %v23 = vunpack.c.l.bf16 %v21
  %v24 = vunpack.c.l.bf16 %v22
  %v25 = vmul.f32 %v23, %v23
  %v26 = vmul.f32 %v24, %v24
  %vm27 = vcmask 523264
  %v28 = vsel %vm27, %v25, 0.0
  %29 = vadd.xlane.f32.xlu0 %v28
  %v30 = vpop.xlane.xlu0 %29
  %v31 = vsel %vm27, %v26, 0.0
  %32 = vadd.xlane.f32.xlu0 %v31
  %v33 = vpop.xlane.xlu0 %32
  %v34 = vrcp.pop 64.0
  %v35 = vmul.f32 %v30, %v34
  %v36 = vmul.f32 %v33, %v34
  %v37 = vadd.f32 %v35, 1e-06
  %v38 = vadd.f32 %v36, 1e-06
  %v39 = vrsqrt.pop %v37
  %v40 = vrsqrt.pop %v38
  %v41 = vmul.f32 %v23, %v39
  %v42 = vmul.f32 %v24, %v40
  %v43 = vld [vmem:[%s2] sm:$0x1]
  %v44 = vunpack.c.l.bf16 %v43
  %v45 = vadd.f32 %v44, 1.0
  %v46 = vlaneseq
  %v47 = vshrl.u32 %v46, 7
  %v48 = vsub.s32 0, %v47
  %v49 = vrot.slane %v45, %v48
  %v50 = vmul.f32 %v41, %v49
  %v51 = vmul.f32 %v42, %v49
  %v52 = vpack.c.bf16 %v51, %v50
  %v53 = vld [vmem:[#allocation2] sm:$0xff]
  %v54 = vld [vmem:[#allocation2 + $0x8] sm:$0xff]
  %v55 = vld [vmem:[%s1] sm:$0xf]
  %v56 = vld [vmem:[%s1 + $0x4] sm:$0xf]
  %v57 = vld [vmem:[%s1 + $0x8] sm:$0xf]
  %v58 = vld [vmem:[%s1 + $0xc] sm:$0xf]
  %v59 = vld [vmem:[%s1 + $0x10] sm:$0xf]
  %v60 = vld [vmem:[%s1 + $0x14] sm:$0xf]
  %v61 = vld [vmem:[%s1 + $0x18] sm:$0xf]
  %v62 = vld [vmem:[%s1 + $0x1c] sm:$0xf]
  %v71 = vunpack.c.l.b16 %v55
  %v72 = vunpack.c.l.b16 %v56
  %v73 = vunpack.c.l.b16 %v57
  %v74 = vunpack.c.l.b16 %v58
  %v75 = vunpack.c.l.b16 %v59
  %v76 = vunpack.c.l.b16 %v60
  %v77 = vunpack.c.l.b16 %v61
  %v78 = vunpack.c.l.b16 %v62
  %v79 = vpack.c.b16 %v72, %v71
  %v80 = vpack.c.b16 %v74, %v73
  %v81 = vpack.c.b16 %v76, %v75
  %v82 = vpack.c.b16 %v78, %v77
  %v88 = vsel %vm27, %v52, 0
  %90 = vmatprep.subr.bf16.mxu0 0
  %91 = vmatpush1.bf16.msra.mxu0 0
  %92 = vmatprep.subr.bf16.mxu0 0
  %93 = vmatpush1.bf16.msra.mxu0 0
  %94 = vmatprep.subr.bf16.mxu0 0
  %95 = vmatpush1.bf16.msra.mxu0 0
  %96 = vmatprep.subr.bf16.mxu0 0
  %97 = vmatpush1.bf16.msra.mxu0 0
  %98 = vmatprep.subr.bf16.mxu0 0
  %99 = vmatpush1.bf16.msra.mxu0 %v82
  %100 = vmatprep.subr.bf16.mxu0 0
  %101 = vmatpush1.bf16.msra.mxu0 %v81
  %102 = vmatprep.subr.bf16.mxu0 0
  %103 = vmatpush1.bf16.msra.mxu0 %v80
  %104 = vmatprep.subr.bf16.mxu0 0
  %105 = vmatpush1.bf16.msra.mxu0 %v79
  %106 = vmatprep.subr.bf16.mxu0 0
  %107 = vmatpush2.bf16.msra.mxu0 0
  %108 = vmatprep.subr.bf16.mxu0 0
  %109 = vmatpush2.bf16.msra.mxu0 0
  %110 = vmatprep.subr.bf16.mxu0 0
  %111 = vmatpush2.bf16.msra.mxu0 0
  %112 = vmatprep.subr.bf16.mxu0 0
  %113 = vmatpush2.bf16.msra.mxu0 0
  %114 = vmatprep.subr.bf16.mxu0 0
  %115 = vmatpush2.bf16.msra.mxu0 0
  %116 = vmatprep.subr.bf16.mxu0 0
  %117 = vmatpush2.bf16.msra.mxu0 0
  %118 = vmatprep.subr.bf16.mxu0 0
  %119 = vmatpush2.bf16.msra.mxu0 0
  %120 = vmatprep.subr.bf16.mxu0 0
  %121 = vmatpush2.bf16.msra.mxu0 0
  %122 = vmatprep.mubr.bf16.mxu0 0
  %123 = vmatmul.mubr.bf16.gmra.mxu0 %v88
  %v124 = vpop.f32.mrf.mxu0
  %v125 = vadd.f32 0.0, %v124
  %v126 = vpop.f32.mrf.mxu0
  %v127 = vpop.f32.mrf.mxu0
  %v128 = vadd.f32 0.0, %v127
  %v129 = vpop.f32.mrf.mxu0
  %130 = vdwg.mxu0
  %v131 = vadd.f32 %v53, %v125
  %v132 = vadd.f32 %v54, %v128
  %133 = vst [vmem:[#allocation2] sm:$0xff] %v131
  %134 = vst [vmem:[#allocation2 + $0x8] sm:$0xff] %v132
  // Predicated region
  $region18: #{run.35} parent=0 // pred_check
    %p135 = pneg %p15
  $region19: #{run.35} parent=0 // pred_check_branch
    %137 = sbr.rel (%p135) target = $region21
  $region20: #{run.35} parent=0 // pred_region
    %v138 = vld [vmem:[#allocation2] sm:$0xff]
    %v139 = vld [vmem:[#allocation2 + $0x8] sm:$0xff]
    %v140 = vpack.c.bf16 %v139, %v138
    %v142 = vunpack.c.l.b16 %v140
    %v143 = vunpack.c.h.b16 %v140
    %v144 = vpack.c.b16 %v142, %v142
    %v145 = vpack.c.b16 %v143, %v143
    %148 = vst [vmem:[%s3] sm:$0xf] %v144
    %149 = vst [vmem:[%s3 + $0x4] sm:$0xf] %v145
  $region21: #{run.35} parent=0 // pred_fallthru
    _
  // Predicated region
  $region22: #{run.35} parent=0 // pred_check
    _
  $region23: #{run.35} parent=0 // pred_check_branch
    %151 = sbr.rel (0) target = $region25
  $region24: #{run.35} parent=0 // pred_region
    _
  $region25: #{run.35} parent=0 // pred_fallthru
    _
  // Predicated region
  $region26: #{run.35} parent=0 // pred_check
    _
  $region27: #{run.35} parent=0 // pred_check_branch
    %153 = sbr.rel (0) target = $region29
  $region28: #{run.35} parent=0 // pred_region
    _
  $region29: #{run.35} parent=0 // pred_fallthru
    _

// kernel: run.36
$region0: #{run.36}
  #allocation0 [shape = 'u32[]', space=smem, size = 0x4, offset = 0x4, fixed_abs, tag = 'smem constant byte address 0x4 - core index']
  #allocation1 [shape = 'u32[144,128]{1,0:T(1,128)}', space=vmem, size = 0x12000, scoped, tag = 'internal scratch']
  #allocation2 [shape = 'f32[16,1]{1,0:T(8,128)}', space=vmem, size = 0x2000, scoped, tag = 'scratch operand']
  #allocation3 [shape = 'f32[16,1]{1,0:T(8,128)}', space=vmem, size = 0x2000, scoped, tag = 'scratch operand']
  #allocation4 [shape = 'f32[16,16]{1,0:T(8,128)}', space=vmem, size = 0x2000, scoped, tag = 'scratch operand']
  %s0 = inlined_call_operand.vmem [shape: bf16[4,16,16], index: 0, kind: input, shape index: {}]
  %s1 = inlined_call_operand.vmem [shape: bf16[4,8,16], index: 1, kind: input, shape index: {}]
  %s2 = inlined_call_operand.vmem [shape: bf16[4,8,16], index: 2, kind: input, shape index: {}]
  %s3 = inlined_call_operand.vmem [shape: bf16[4,16,16], index: 3, kind: output, shape index: {}]
  %s4 = sld [smem:[#allocation0]]
  $region53: #{run.36} parent=0
    _
  %s6 = ssub.s32 1, %s4
  %s7 = scalar_select 0, %s6, %s4
  loop: start=0, step=1, limit=6
  $region2: #{run.36} parent=0 // loop_pre_header
    _
  $region3: #{run.36} parent=0 // loop_header
    %s9 = sphi 0, %s13
    %p10 = scmp.ge.s32.totalorder %s9, 6
    %s16 = sphi 0, %s35
    %s17 = sphi 0, %s31
    %s18 = sphi 0, %s27
    %s19 = sphi 0, %s16
    %s20 = sphi 0, %s17
    %s21 = sphi 0, %s18
    %s22 = sphi 0, %s19
    %s23 = sphi 0, %s20
    %s24 = sphi 0, %s21
    %s40 = sphi 0, %s42
    %s43 = sphi 0, %s40
    %s44 = sphi 0, %s43
    %s60 = sphi 0, %s44
    %s68 = sphi 0, %s70
    %s71 = sphi 0, %s68
    %s72 = sphi 0, %s71
    %s88 = sphi 0, %s72
    %s96 = sphi 0, %s98
    %s99 = sphi 0, %s96
    %s100 = sphi 0, %s99
    %s116 = sphi 0, %s100
    %s124 = sphi 0, %s126
    %s127 = sphi 0, %s124
    %s128 = sphi 0, %s127
    %s144 = sphi 0, %s128
  $region4: #{run.36} parent=0 // loop_header_branch
    %12 = sbr.rel (%p10) target = $region8
  $region5: #{run.36} parent=0 // loop_body
    %s14 = ssub.s32 %s9, 1
    %s15 = ssub.s32 %s9, 2
    %s25 = sadd.s32 1, %s18
    %p26 = scmp.ge.s32.totalorder %s25, 1
    %s27 = scalar_select %p26, 0, %s25
    %s28 = sadd.s32 1, %s17
    %s29 = scalar_select %p26, %s28, %s17
    %p30 = scmp.ge.s32.totalorder %s29, 1
    %s31 = scalar_select %p30, 0, %s29
    %s32 = sadd.s32 1, %s16
    %s33 = scalar_select %p30, %s32, %s16
    %p34 = scmp.ge.s32.totalorder %s33, 4
    %s35 = scalar_select %p34, 0, %s33
    %s36 = ssub.s32 %s16, %s35
    %s37 = ssub.s32 %s17, %s31
    %s38 = sor.u32 %s36, %s37
    %p39 = scmp.eq.s32.totalorder %s38, 0
    %s41 = sadd.s32 %s40, 1
    %s42 = scalar_select %p39, %s40, %s41
    %p45 = pneg %p39
    %p46 = scmp.eq.s32.totalorder %s9, 3
    %p47 = por %p45, %p46
    %p48 = scmp.ne.s32.totalorder %s40, %s43
    %p49 = scmp.eq.s32.totalorder %s9, 0
    %p50 = por %p48, %p49
    %p51 = scmp.ne.s32.totalorder %s40, %s43
    %p52 = scmp.eq.s32.totalorder %s14, 3
    %p53 = por %p51, %p52
    %p54 = scmp.ne.s32.totalorder %s43, %s44
    %p55 = scmp.eq.s32.totalorder %s14, 0
    %p56 = por %p54, %p55
    %p57 = scmp.ne.s32.totalorder %s43, %s44
    %p58 = scmp.eq.s32.totalorder %s15, 3
    %p59 = por %p57, %p58
    %p61 = scmp.ne.s32.totalorder %s44, %s60
    %p62 = scmp.eq.s32.totalorder %s15, 0
    %p63 = por %p61, %p62
    %s64 = ssub.s32 %s16, %s35
    %s65 = ssub.s32 %s18, %s27
    %s66 = sor.u32 %s64, %s65
    %p67 = scmp.eq.s32.totalorder %s66, 0
    %s69 = sadd.s32 %s68, 1
    %s70 = scalar_select %p67, %s68, %s69
    %p73 = pneg %p67
    %p74 = scmp.eq.s32.totalorder %s9, 3
    %p75 = por %p73, %p74
    %p76 = scmp.ne.s32.totalorder %s68, %s71
    %p77 = scmp.eq.s32.totalorder %s9, 0
    %p78 = por %p76, %p77
    %p79 = scmp.ne.s32.totalorder %s68, %s71
    %p80 = scmp.eq.s32.totalorder %s14, 3
    %p81 = por %p79, %p80
    %p82 = scmp.ne.s32.totalorder %s71, %s72
    %p83 = scmp.eq.s32.totalorder %s14, 0
    %p84 = por %p82, %p83
    %p85 = scmp.ne.s32.totalorder %s71, %s72
    %p86 = scmp.eq.s32.totalorder %s15, 3
    %p87 = por %p85, %p86
    %p89 = scmp.ne.s32.totalorder %s72, %s88
    %p90 = scmp.eq.s32.totalorder %s15, 0
    %p91 = por %p89, %p90
    %s92 = ssub.s32 %s16, %s35
    %s93 = ssub.s32 %s18, %s27
    %s94 = sor.u32 %s92, %s93
    %p95 = scmp.eq.s32.totalorder %s94, 0
    %s97 = sadd.s32 %s96, 1
    %s98 = scalar_select %p95, %s96, %s97
    %p101 = pneg %p95
    %p102 = scmp.eq.s32.totalorder %s9, 3
    %p103 = por %p101, %p102
    %p104 = scmp.ne.s32.totalorder %s96, %s99
    %p105 = scmp.eq.s32.totalorder %s9, 0
    %p106 = por %p104, %p105
    %p107 = scmp.ne.s32.totalorder %s96, %s99
    %p108 = scmp.eq.s32.totalorder %s14, 3
    %p109 = por %p107, %p108
    %p110 = scmp.ne.s32.totalorder %s99, %s100
    %p111 = scmp.eq.s32.totalorder %s14, 0
    %p112 = por %p110, %p111
    %p113 = scmp.ne.s32.totalorder %s99, %s100
    %p114 = scmp.eq.s32.totalorder %s15, 3
    %p115 = por %p113, %p114
    %p117 = scmp.ne.s32.totalorder %s100, %s116
    %p118 = scmp.eq.s32.totalorder %s15, 0
    %p119 = por %p117, %p118
    %s120 = ssub.s32 %s16, %s35
    %s121 = ssub.s32 %s17, %s31
    %s122 = sor.u32 %s120, %s121
    %p123 = scmp.eq.s32.totalorder %s122, 0
    %s125 = sadd.s32 %s124, 1
    %s126 = scalar_select %p123, %s124, %s125
    %p129 = pneg %p123
    %p130 = scmp.eq.s32.totalorder %s9, 3
    %p131 = por %p129, %p130
    %p132 = scmp.ne.s32.totalorder %s124, %s127
    %p133 = scmp.eq.s32.totalorder %s9, 0
    %p134 = por %p132, %p133
    %p135 = scmp.ne.s32.totalorder %s124, %s127
    %p136 = scmp.eq.s32.totalorder %s14, 3
    %p137 = por %p135, %p136
    %p138 = scmp.ne.s32.totalorder %s127, %s128
    %p139 = scmp.eq.s32.totalorder %s14, 0
    %p140 = por %p138, %p139
    %p141 = scmp.ne.s32.totalorder %s127, %s128
    %p142 = scmp.eq.s32.totalorder %s15, 3
    %p143 = por %p141, %p142
    %p145 = scmp.ne.s32.totalorder %s128, %s144
    %p146 = scmp.eq.s32.totalorder %s15, 0
    %p147 = por %p145, %p146
    %p148 = scmp.le.s32.totalorder 1, %s9
    %p149 = scmp.lt.s32.totalorder %s9, 5
    %p150 = pnand %p148, %p149
    %p151 = pneg %p150
    // Predicated region
    $region9: #{run.36} parent=5 // pred_check
      _
    $region10: #{run.36} parent=5 // pred_check_branch
      %153 = sbr.rel (%p150) target = $region12
    $region11: #{run.36} parent=5 // pred_region
      %s154 = ssub.s32 %s9, 1
    $region12: #{run.36} parent=5 // pred_fallthru
      _
    %p155 = scmp.lt.s32.totalorder %s9, 4
    // Predicated region
    $region13: #{run.36} parent=5 // pred_check
      %p156 = pneg %p155
    $region14: #{run.36} parent=5 // pred_check_branch
      %158 = sbr.rel (%p156) target = $region16
    $region15: #{run.36} parent=5 // pred_region
      // Predicated region
      $region17: #{run.36} parent=15 // pred_check
        %p159 = pneg %p50
      $region18: #{run.36} parent=15 // pred_check_branch
        %161 = sbr.rel (%p159) target = $region20
      $region19: #{run.36} parent=15 // pred_region
        %s162 = smul.u32 2, %s17
        %p163 = scmp.lt.s32.totalorder %s16, 3
        %s164 = scalar_select %p163, %s16, 3
        %p165 = scmp.lt.s32.totalorder %s162, 1
        %s166 = scalar_select %p165, %s162, 1
        %s167 = smul.addr %s164, 2
        %s168 = sadd.s32 %s166, %s167
        %s169 = smul.addr %s168, 4
        %s170 = scalar_lea.vmem %s0, %s169
        %s171 = smul.u32 2, %s17
      $region20: #{run.36} parent=15 // pred_fallthru
        _
      // Predicated region
      $region21: #{run.36} parent=15 // pred_check
        %p172 = pneg %p78
      $region22: #{run.36} parent=15 // pred_check_branch
        %174 = sbr.rel (%p172) target = $region24
      $region23: #{run.36} parent=15 // pred_region
        %p175 = scmp.lt.s32.totalorder %s16, 3
        %s176 = scalar_select %p175, %s16, 3
        %p177 = scmp.lt.s32.totalorder %s18, 0
        %s178 = scalar_select %p177, %s18, 0
        %s179 = sadd.s32 %s178, %s176
        %s180 = smul.addr %s179, 4
        %s181 = scalar_lea.vmem %s1, %s180
      $region24: #{run.36} parent=15 // pred_fallthru
        _
      // Predicated region
      $region25: #{run.36} parent=15 // pred_check
        %p182 = pneg %p106
      $region26: #{run.36} parent=15 // pred_check_branch
        %184 = sbr.rel (%p182) target = $region28
      $region27: #{run.36} parent=15 // pred_region
        %p185 = scmp.lt.s32.totalorder %s16, 3
        %s186 = scalar_select %p185, %s16, 3
        %p187 = scmp.lt.s32.totalorder %s18, 0
        %s188 = scalar_select %p187, %s18, 0
        %s189 = sadd.s32 %s188, %s186
        %s190 = smul.addr %s189, 4
        %s191 = scalar_lea.vmem %s2, %s190
      $region28: #{run.36} parent=15 // pred_fallthru
        _
    $region16: #{run.36} parent=5 // pred_fallthru
      _
    %p192 = scmp.le.s32.totalorder 1, %s9
    %p193 = scmp.lt.s32.totalorder %s9, 5
    %p194 = pnand %p192, %p193
    %p195 = pneg %p194
    // Predicated region
    $region29: #{run.36} parent=5 // pred_check
      _
    $region30: #{run.36} parent=5 // pred_check_branch
      %197 = sbr.rel (%p194) target = $region32
    $region31: #{run.36} parent=5 // pred_region
      %s198 = ssub.s32 %s9, 1
      %s199 = smul.u32 2, %s20
      %p200 = scmp.lt.s32.totalorder %s19, 3
      %s201 = scalar_select %p200, %s19, 3
      %p202 = scmp.lt.s32.totalorder %s199, 1
      %s203 = scalar_select %p202, %s199, 1
      %s204 = smul.addr %s201, 2
      %s205 = sadd.s32 %s203, %s204
      %s206 = smul.addr %s205, 4
      %s207 = scalar_lea.vmem %s0, %s206
      %p208 = pneg %p56
      %p209 = pneg %p53
      %p210 = scmp.lt.s32.totalorder %s19, 3
      %s211 = scalar_select %p210, %s19, 3
      %p212 = scmp.lt.s32.totalorder %s21, 0
      %s213 = scalar_select %p212, %s21, 0
      %s214 = sadd.s32 %s213, %s211
      %s215 = smul.addr %s214, 4
      %s216 = scalar_lea.vmem %s1, %s215
      %p217 = pneg %p84
      %p218 = pneg %p81
      %p219 = scmp.lt.s32.totalorder %s19, 3
      %s220 = scalar_select %p219, %s19, 3
      %p221 = scmp.lt.s32.totalorder %s21, 0
      %s222 = scalar_select %p221, %s21, 0
      %s223 = sadd.s32 %s222, %s220
      %s224 = smul.addr %s223, 4
      %s225 = scalar_lea.vmem %s2, %s224
      %p226 = pneg %p112
      %p227 = pneg %p109
      %p228 = pneg %p140
      %p229 = pneg %p137
      %s230 = smul.u32 2, %s20
      %p231 = scmp.lt.s32.totalorder %s19, 3
      %s232 = scalar_select %p231, %s19, 3
      %p233 = scmp.lt.s32.totalorder %s230, 1
      %s234 = scalar_select %p233, %s230, 1
      %s235 = smul.addr %s232, 2
      %s236 = sadd.s32 %s234, %s235
      %s237 = smul.addr %s236, 4
      %s238 = scalar_lea.vmem %s3, %s237
      %s239 = smul.u32 2, %s20
      %p240 = scmp.lt.s32.totalorder %s19, 3
      %s241 = scalar_select %p240, %s19, 3
      %p242 = scmp.lt.s32.totalorder %s239, 1
      %s243 = scalar_select %p242, %s239, 1
      %s244 = smul.addr %s241, 2
      %s245 = sadd.s32 %s243, %s244
      %s246 = smul.addr %s245, 4
      %s247 = scalar_lea.vmem %s0, %s246
      %s248 = smul.u32 2, %s20
      %p249 = scmp.lt.s32.totalorder %s19, 3
      %s250 = scalar_select %p249, %s19, 3
      %p251 = scmp.lt.s32.totalorder %s21, 0
      %s252 = scalar_select %p251, %s21, 0
      %s253 = sadd.s32 %s252, %s250
      %s254 = smul.addr %s253, 4
      %s255 = scalar_lea.vmem %s1, %s254
      %p256 = scmp.lt.s32.totalorder %s19, 3
      %s257 = scalar_select %p256, %s19, 3
      %p258 = scmp.lt.s32.totalorder %s21, 0
      %s259 = scalar_select %p258, %s21, 0
      %s260 = sadd.s32 %s259, %s257
      %s261 = smul.addr %s260, 4
      %s262 = scalar_lea.vmem %s2, %s261
      %s263 = smul.u32 2, %s20
      %p264 = scmp.lt.s32.totalorder %s19, 3
      %s265 = scalar_select %p264, %s19, 3
      %p266 = scmp.lt.s32.totalorder %s263, 1
      %s267 = scalar_select %p266, %s263, 1
      %s268 = smul.addr %s265, 2
      %s269 = sadd.s32 %s267, %s268
      %s270 = smul.addr %s269, 4
      %s271 = scalar_lea.vmem %s3, %s270
      %s272 = smul.u32 2, %s20
      %p274 = scmp.eq.s32.totalorder %s21, 0
      // Predicated region
      $region33: #{run.36} parent=31 // pred_check
        %p275 = pneg %p274
      $region34: #{run.36} parent=31 // pred_check_branch
        %277 = sbr.rel (%p275) target = $region36
      $region35: #{run.36} parent=31 // pred_region
        %vm278 = vcmask 7168
        %279 = vst.msk [vmem:[#allocation2] sm:$0xff] %vm278, -inf
        %280 = vst.msk [vmem:[#allocation2 + $0x8] sm:$0xff] %vm278, -inf
        %281 = vst.msk [vmem:[#allocation3] sm:$0xff] %vm278, 0.0
        %282 = vst.msk [vmem:[#allocation3 + $0x8] sm:$0xff] %vm278, 0.0
        %vm283 = vcmask 130048
        %284 = vst.msk [vmem:[#allocation4] sm:$0xff] %vm283, 0.0
        %285 = vst.msk [vmem:[#allocation4 + $0x8] sm:$0xff] %vm283, 0.0
      $region36: #{run.36} parent=31 // pred_fallthru
        _
      %v286 = vld [vmem:[%s247] sm:$0xf]
      %v287 = vld [vmem:[%s247 + $0x4] sm:$0xf]
      %v288 = vld [vmem:[%s255] sm:$0xf]
      %v289 = vld [vmem:[%s262] sm:$0xf]
      %v292 = vunpack.c.l.b16 %v286
      %v293 = vunpack.c.l.b16 %v287
      %v294 = vpack.c.b16 %v293, %v292
      %vm295 = vcmask 130048
      %v297 = vsel %vm295, %v294, 0
      %v300 = vsel %vm295, %v288, 0
      %302 = vmatprep.subr.bf16.mxu0 0
      %303 = vmatpush1.bf16.xpose.msra.mxu0 0
      %304 = vmatprep.subr.bf16.mxu0 0
      %305 = vmatpush1.bf16.xpose.msra.mxu0 0
      %306 = vmatprep.subr.bf16.mxu0 0
      %307 = vmatpush1.bf16.xpose.msra.mxu0 0
      %308 = vmatprep.subr.bf16.mxu0 0
      %309 = vmatpush1.bf16.xpose.msra.mxu0 0
      %310 = vmatprep.subr.bf16.mxu0 0
      %311 = vmatpush1.bf16.xpose.msra.mxu0 0
      %312 = vmatprep.subr.bf16.mxu0 0
      %313 = vmatpush1.bf16.xpose.msra.mxu0 0
      %314 = vmatprep.subr.bf16.mxu0 0
      %315 = vmatpush1.bf16.xpose.msra.mxu0 0
      %316 = vmatprep.subr.bf16.mxu0 0
      %317 = vmatpush1.bf16.xpose.msra.mxu0 %v300
      %318 = vmatprep.subr.bf16.mxu0 0
      %319 = vmatpush2.bf16.xpose.msra.mxu0 0
      %320 = vmatprep.subr.bf16.mxu0 0
      %321 = vmatpush2.bf16.xpose.msra.mxu0 0
      %322 = vmatprep.subr.bf16.mxu0 0
      %323 = vmatpush2.bf16.xpose.msra.mxu0 0
      %324 = vmatprep.subr.bf16.mxu0 0
      %325 = vmatpush2.bf16.xpose.msra.mxu0 0
      %326 = vmatprep.subr.bf16.mxu0 0
      %327 = vmatpush2.bf16.xpose.msra.mxu0 0
      %328 = vmatprep.subr.bf16.mxu0 0
      %329 = vmatpush2.bf16.xpose.msra.mxu0 0
      %330 = vmatprep.subr.bf16.mxu0 0
      %331 = vmatpush2.bf16.xpose.msra.mxu0 0
      %332 = vmatprep.subr.bf16.mxu0 0
      %333 = vmatpush2.bf16.xpose.msra.mxu0 0
      %334 = vmatprep.mubr.bf16.mxu0 0
      %335 = vmatmul.mubr.bf16.gmra.mxu0 %v297
      %v336 = vpop.f32.mrf.mxu0
      %v337 = vadd.f32 0.0, %v336
      %v338 = vpop.f32.mrf.mxu0
      %v339 = vpop.f32.mrf.mxu0
      %v340 = vadd.f32 0.0, %v339
      %v341 = vpop.f32.mrf.mxu0
      %342 = vdwg.mxu0
      %v343 = vld [vmem:[#allocation2] sm:$0xff]
      %v344 = vld [vmem:[#allocation2 + $0x8] sm:$0xff]
      %vm345 = vcmask 64512
      %v346 = vsel %vm345, %v337, -inf
      %347 = vmax.xlane.f32.xlu0 %v346
      %v348 = vpop.xlane.xlu0 %347
      %v349 = vsel %vm345, %v340, -inf
      %350 = vmax.xlane.f32.xlu0 %v349
      %v351 = vpop.xlane.xlu0 %350
      %v352 = vmax.f32 %v343, %v348
      %v353 = vmax.f32 %v344, %v351
      %v354 = vsub.f32 %v343, %v352
      %v355 = vsub.f32 %v344, %v353
      %v356 = vmul.f32 %v354, 1.442695
      %v357 = vpow.pop %v356
      %v358 = vmul.f32 %v355, 1.442695
      %v359 = vpow.pop %v358
      %361 = vset.pattern.permute.xlu0 0
      %362 = vperm.xlu0 %361, %v352
      %v363 = vpop.permute.xlu0 %362
      %366 = vset.pattern.permute.xlu0 0
      %367 = vperm.xlu0 %366, %v353
      %v368 = vpop.permute.xlu0 %367
      %v370 = vsub.f32 %v337, %v363
      %v371 = vsub.f32 %v340, %v368
      %v372 = vmul.f32 %v370, 1.442695
      %v373 = vpow.pop %v372
      %v374 = vmul.f32 %v371, 1.442695
      %v375 = vpow.pop %v374
      %v376 = vld [vmem:[#allocation3] sm:$0xff]
      %v377 = vld [vmem:[#allocation3 + $0x8] sm:$0xff]
      %v378 = vmul.f32 %v357, %v376
      %v379 = vmul.f32 %v359, %v377
      %v380 = vsel %vm345, %v373, 0.0
      %381 = vadd.xlane.f32.xlu0 %v380
      %v382 = vpop.xlane.xlu0 %381
      %v383 = vsel %vm345, %v375, 0.0
      %384 = vadd.xlane.f32.xlu0 %v383
      %v385 = vpop.xlane.xlu0 %384
      %v386 = vadd.f32 %v378, %v382
      %v387 = vadd.f32 %v379, %v385
      %vm388 = vcmask 7168
      %389 = vst.msk [vmem:[#allocation3] sm:$0xff] %vm388, %v386
      %390 = vst.msk [vmem:[#allocation3 + $0x8] sm:$0xff] %vm388, %v387
      %v391 = vld [vmem:[#allocation4] sm:$0xff]
      %v392 = vld [vmem:[#allocation4 + $0x8] sm:$0xff]
      %394 = vset.pattern.permute.xlu0 0
      %395 = vperm.xlu0 %394, %v357
      %v396 = vpop.permute.xlu0 %395
      %399 = vset.pattern.permute.xlu0 0
      %400 = vperm.xlu0 %399, %v359
      %v401 = vpop.permute.xlu0 %400
      %v403 = vmul.f32 %v396, %v391
      %v404 = vmul.f32 %v401, %v392
      %v405 = vpack.c.bf16 %v375, %v373
      %v407 = vsel %vm345, %v405, 0
      %vm409 = vcmask 1043456
      %v411 = vsel %vm409, %v289, 0
      %413 = vmatprep.subr.bf16.mxu0 0
      %414 = vmatpush1.bf16.msra.mxu0 0
      %415 = vmatprep.subr.bf16.mxu0 0
      %416 = vmatpush1.bf16.msra.mxu0 0
      %417 = vmatprep.subr.bf16.mxu0 0
      %418 = vmatpush1.bf16.msra.mxu0 0
      %419 = vmatprep.subr.bf16.mxu0 0
      %420 = vmatpush1.bf16.msra.mxu0 0
      %421 = vmatprep.subr.bf16.mxu0 0
      %422 = vmatpush1.bf16.msra.mxu0 0
      %423 = vmatprep.subr.bf16.mxu0 0
      %424 = vmatpush1.bf16.msra.mxu0 0
      %425 = vmatprep.subr.bf16.mxu0 0
      %426 = vmatpush1.bf16.msra.mxu0 0
      %427 = vmatprep.subr.bf16.mxu0 0
      %428 = vmatpush1.bf16.msra.mxu0 %v411
      %429 = vmatprep.subr.bf16.mxu0 0
      %430 = vmatpush2.bf16.msra.mxu0 0
      %431 = vmatprep.subr.bf16.mxu0 0
      %432 = vmatpush2.bf16.msra.mxu0 0
      %433 = vmatprep.subr.bf16.mxu0 0
      %434 = vmatpush2.bf16.msra.mxu0 0
      %435 = vmatprep.subr.bf16.mxu0 0
      %436 = vmatpush2.bf16.msra.mxu0 0
      %437 = vmatprep.subr.bf16.mxu0 0
      %438 = vmatpush2.bf16.msra.mxu0 0
      %439 = vmatprep.subr.bf16.mxu0 0
      %440 = vmatpush2.bf16.msra.mxu0 0
      %441 = vmatprep.subr.bf16.mxu0 0
      %442 = vmatpush2.bf16.msra.mxu0 0
      %443 = vmatprep.subr.bf16.mxu0 0
      %444 = vmatpush2.bf16.msra.mxu0 0
      %445 = vmatprep.mubr.bf16.mxu0 0
      %446 = vmatmul.mubr.bf16.gmra.mxu0 %v407
      %v447 = vpop.f32.mrf.mxu0
      %v448 = vadd.f32 0.0, %v447
      %v449 = vpop.f32.mrf.mxu0
      %v450 = vpop.f32.mrf.mxu0
      %v451 = vadd.f32 0.0, %v450
      %v452 = vpop.f32.mrf.mxu0
      %453 = vdwg.mxu0
      %v454 = vadd.f32 %v403, %v448
      %v455 = vadd.f32 %v404, %v451
      %456 = vst.msk [vmem:[#allocation4] sm:$0xff] %vm295, %v454
      %457 = vst.msk [vmem:[#allocation4 + $0x8] sm:$0xff] %vm295, %v455
      %458 = vst.msk [vmem:[#allocation2] sm:$0xff] %vm388, %v352
      %459 = vst.msk [vmem:[#allocation2 + $0x8] sm:$0xff] %vm388, %v353
      // Predicated region
      $region37: #{run.36} parent=31 // pred_check
        %p460 = pneg %p274
      $region38: #{run.36} parent=31 // pred_check_branch
        %462 = sbr.rel (%p460) target = $region40
      $region39: #{run.36} parent=31 // pred_region
        %v463 = vld [vmem:[#allocation4] sm:$0xff]
        %v464 = vld [vmem:[#allocation4 + $0x8] sm:$0xff]
        %v465 = vld [vmem:[#allocation3] sm:$0xff]
        %v466 = vld [vmem:[#allocation3 + $0x8] sm:$0xff]
        %v467 = vrcp.pop %v465
        %v468 = vrcp.pop %v466
        %470 = vset.pattern.permute.xlu0 0
        %471 = vperm.xlu0 %470, %v467
        %v472 = vpop.permute.xlu0 %471
        %475 = vset.pattern.permute.xlu0 0
        %476 = vperm.xlu0 %475, %v468
        %v477 = vpop.permute.xlu0 %476
        %v479 = vmul.f32 %v463, %v472
        %v480 = vmul.f32 %v464, %v477
        %v481 = vpack.c.bf16 %v480, %v479
        %v483 = vunpack.c.l.b16 %v481
        %v484 = vunpack.c.h.b16 %v481
        %v485 = vpack.c.b16 %v483, %v483
        %v486 = vpack.c.b16 %v484, %v484
        %vm489 = vcmask 125952
        %490 = vst.msk [vmem:[%s271] sm:$0xf] %vm489, %v485
        %491 = vst.msk [vmem:[%s271 + $0x4] sm:$0xf] %vm489, %v486
      $region40: #{run.36} parent=31 // pred_fallthru
        _
      %s492 = smul.u32 2, %s20
      %p493 = scmp.lt.s32.totalorder %s19, 3
      %s494 = scalar_select %p493, %s19, 3
      %p495 = scmp.lt.s32.totalorder %s492, 1
      %s496 = scalar_select %p495, %s492, 1
      %s497 = smul.addr %s494, 2
      %s498 = sadd.s32 %s496, %s497
      %s499 = smul.addr %s498, 4
      %s500 = scalar_lea.vmem %s3, %s499
      // Predicated region
      $region41: #{run.36} parent=31 // pred_check
        %p501 = pneg %p137
      $region42: #{run.36} parent=31 // pred_check_branch
        %503 = sbr.rel (%p501) target = $region44
      $region43: #{run.36} parent=31 // pred_region
        %s504 = smul.u32 2, %s20
      $region44: #{run.36} parent=31 // pred_fallthru
        _
    $region32: #{run.36} parent=5 // pred_fallthru
      _
    %p505 = scmp.le.s32.totalorder 2, %s9
    // Predicated region
    $region45: #{run.36} parent=5 // pred_check
      %p506 = pneg %p505
    $region46: #{run.36} parent=5 // pred_check_branch
      %508 = sbr.rel (%p506) target = $region48
    $region47: #{run.36} parent=5 // pred_region
      %s509 = ssub.s32 %s9, 2
      // Predicated region
      $region49: #{run.36} parent=47 // pred_check
        %p510 = pneg %p143
      $region50: #{run.36} parent=47 // pred_check_branch
        %512 = sbr.rel (%p510) target = $region52
      $region51: #{run.36} parent=47 // pred_region
        %s513 = smul.u32 2, %s23
        %p514 = scmp.lt.s32.totalorder %s22, 3
        %s515 = scalar_select %p514, %s22, 3
        %p516 = scmp.lt.s32.totalorder %s513, 1
        %s517 = scalar_select %p516, %s513, 1
        %s518 = smul.addr %s515, 2
        %s519 = sadd.s32 %s517, %s518
        %s520 = smul.addr %s519, 4
        %s521 = scalar_lea.vmem %s3, %s520
      $region52: #{run.36} parent=47 // pred_fallthru
        _
    $region48: #{run.36} parent=5 // pred_fallthru
      _
  $region6: #{run.36} parent=0 // loop_footer
    %s13 = sadd.s32 1, %s9
  $region7: #{run.36} parent=0 // loop_footer_branch
    %8 = sbr.rel target = $region3
  $region8: #{run.36} parent=0 // loop_exit
    _

// kernel: run.37
$region0: #{run.37}
  #allocation0 [shape = 'u32[]', space=smem, size = 0x4, offset = 0x4, fixed_abs, tag = 'smem constant byte address 0x4 - core index']
  #allocation1 [shape = 'u32[144,128]{1,0:T(1,128)}', space=vmem, size = 0x12000, scoped, tag = 'internal scratch']
  #allocation2 [shape = 'f32[16,64]{1,0:T(8,128)}', space=vmem, size = 0x2000, scoped, tag = 'scratch operand']
  %s0 = inlined_call_operand.vmem [shape: bf16[16,64], index: 0, kind: input, shape index: {}]
  %s1 = inlined_call_operand.vmem [shape: bf16[64,64], index: 1, kind: input, shape index: {}]
  %s2 = inlined_call_operand.vmem [shape: bf16[16,64], index: 2, kind: input, shape index: {}]
  %s3 = inlined_call_operand.vmem [shape: bf16[16,64], index: 3, kind: output, shape index: {}]
  %s4 = sld [smem:[#allocation0]]
  $region30: #{run.37} parent=0
    _
  %s6 = ssub.s32 1, %s4
  %s7 = scalar_select 0, %s6, %s4
  // Predicated region
  $region2: #{run.37} parent=0 // pred_check
    _
  $region3: #{run.37} parent=0 // pred_check_branch
    %9 = sbr.rel (0) target = $region5
  $region4: #{run.37} parent=0 // pred_region
    _
  $region5: #{run.37} parent=0 // pred_fallthru
    _
  // Predicated region
  $region6: #{run.37} parent=0 // pred_check
    _
  $region7: #{run.37} parent=0 // pred_check_branch
    %11 = sbr.rel (0) target = $region9
  $region8: #{run.37} parent=0 // pred_region
    _
  $region9: #{run.37} parent=0 // pred_fallthru
    _
  // Predicated region
  $region10: #{run.37} parent=0 // pred_check
    _
  $region11: #{run.37} parent=0 // pred_check_branch
    %13 = sbr.rel (0) target = $region13
  $region12: #{run.37} parent=0 // pred_region
    _
  $region13: #{run.37} parent=0 // pred_fallthru
    _
  %p15 = scmp.eq.s32.totalorder 0, 0
  // Predicated region
  $region14: #{run.37} parent=0 // pred_check
    %p16 = pneg %p15
  $region15: #{run.37} parent=0 // pred_check_branch
    %18 = sbr.rel (%p16) target = $region17
  $region16: #{run.37} parent=0 // pred_region
    %vm19 = vcmask 523264
    %20 = vst.msk [vmem:[#allocation2] sm:$0xff] %vm19, 0.0
    %21 = vst.msk [vmem:[#allocation2 + $0x8] sm:$0xff] %vm19, 0.0
  $region17: #{run.37} parent=0 // pred_fallthru
    _
  %v22 = vld [vmem:[%s0] sm:$0xf]
  %v23 = vld [vmem:[%s0 + $0x4] sm:$0xf]
  %v24 = vld [vmem:[#allocation2] sm:$0xff]
  %v25 = vld [vmem:[#allocation2 + $0x8] sm:$0xff]
  %v26 = vld [vmem:[%s1] sm:$0xf]
  %v27 = vld [vmem:[%s1 + $0x4] sm:$0xf]
  %v28 = vld [vmem:[%s1 + $0x8] sm:$0xf]
  %v29 = vld [vmem:[%s1 + $0xc] sm:$0xf]
  %v30 = vld [vmem:[%s1 + $0x10] sm:$0xf]
  %v31 = vld [vmem:[%s1 + $0x14] sm:$0xf]
  %v32 = vld [vmem:[%s1 + $0x18] sm:$0xf]
  %v33 = vld [vmem:[%s1 + $0x1c] sm:$0xf]
  %v36 = vunpack.c.l.b16 %v22
  %v37 = vunpack.c.l.b16 %v23
  %v38 = vpack.c.b16 %v37, %v36
  %v47 = vunpack.c.l.b16 %v26
  %v48 = vunpack.c.l.b16 %v27
  %v49 = vunpack.c.l.b16 %v28
  %v50 = vunpack.c.l.b16 %v29
  %v51 = vunpack.c.l.b16 %v30
  %v52 = vunpack.c.l.b16 %v31
  %v53 = vunpack.c.l.b16 %v32
  %v54 = vunpack.c.l.b16 %v33
  %v55 = vpack.c.b16 %v48, %v47
  %v56 = vpack.c.b16 %v50, %v49
  %v57 = vpack.c.b16 %v52, %v51
  %v58 = vpack.c.b16 %v54, %v53
  %vm63 = vcmask 523264
  %v65 = vsel %vm63, %v38, 0
  %67 = vmatprep.subr.bf16.mxu0 0
  %68 = vmatpush1.bf16.msra.mxu0 0
  %69 = vmatprep.subr.bf16.mxu0 0
  %70 = vmatpush1.bf16.msra.mxu0 0
  %71 = vmatprep.subr.bf16.mxu0 0
  %72 = vmatpush1.bf16.msra.mxu0 0
  %73 = vmatprep.subr.bf16.mxu0 0
  %74 = vmatpush1.bf16.msra.mxu0 0
  %75 = vmatprep.subr.bf16.mxu0 0
  %76 = vmatpush1.bf16.msra.mxu0 %v58
  %77 = vmatprep.subr.bf16.mxu0 0
  %78 = vmatpush1.bf16.msra.mxu0 %v57
  %79 = vmatprep.subr.bf16.mxu0 0
  %80 = vmatpush1.bf16.msra.mxu0 %v56
  %81 = vmatprep.subr.bf16.mxu0 0
  %82 = vmatpush1.bf16.msra.mxu0 %v55
  %83 = vmatprep.subr.bf16.mxu0 0
  %84 = vmatpush2.bf16.msra.mxu0 0
  %85 = vmatprep.subr.bf16.mxu0 0
  %86 = vmatpush2.bf16.msra.mxu0 0
  %87 = vmatprep.subr.bf16.mxu0 0
  %88 = vmatpush2.bf16.msra.mxu0 0
  %89 = vmatprep.subr.bf16.mxu0 0
  %90 = vmatpush2.bf16.msra.mxu0 0
  %91 = vmatprep.subr.bf16.mxu0 0
  %92 = vmatpush2.bf16.msra.mxu0 0
  %93 = vmatprep.subr.bf16.mxu0 0
  %94 = vmatpush2.bf16.msra.mxu0 0
  %95 = vmatprep.subr.bf16.mxu0 0
  %96 = vmatpush2.bf16.msra.mxu0 0
  %97 = vmatprep.subr.bf16.mxu0 0
  %98 = vmatpush2.bf16.msra.mxu0 0
  %99 = vmatprep.mubr.bf16.mxu0 0
  %100 = vmatmul.mubr.bf16.gmra.mxu0 %v65
  %v101 = vpop.f32.mrf.mxu0
  %v102 = vadd.f32 0.0, %v101
  %v103 = vpop.f32.mrf.mxu0
  %v104 = vpop.f32.mrf.mxu0
  %v105 = vadd.f32 0.0, %v104
  %v106 = vpop.f32.mrf.mxu0
  %107 = vdwg.mxu0
  %v108 = vadd.f32 %v24, %v102
  %v109 = vadd.f32 %v25, %v105
  %110 = vst.msk [vmem:[#allocation2] sm:$0xff] %vm63, %v108
  %111 = vst.msk [vmem:[#allocation2 + $0x8] sm:$0xff] %vm63, %v109
  // Predicated region
  $region18: #{run.37} parent=0 // pred_check
    %p112 = pneg %p15
  $region19: #{run.37} parent=0 // pred_check_branch
    %114 = sbr.rel (%p112) target = $region21
  $region20: #{run.37} parent=0 // pred_region
    %v115 = vld [vmem:[#allocation2] sm:$0xff]
    %v116 = vld [vmem:[#allocation2 + $0x8] sm:$0xff]
    %v117 = vld [vmem:[%s2] sm:$0xf]
    %v118 = vld [vmem:[%s2 + $0x4] sm:$0xf]
    %v119 = vunpack.c.l.bf16 %v117
    %v120 = vunpack.c.l.bf16 %v118
    %v121 = vadd.f32 %v115, %v119
    %v122 = vadd.f32 %v116, %v120
    %v123 = vpack.c.bf16 %v122, %v121
    %v125 = vunpack.c.l.b16 %v123
    %v126 = vunpack.c.h.b16 %v123
    %v127 = vpack.c.b16 %v125, %v125
    %v128 = vpack.c.b16 %v126, %v126
    %vm131 = vcmask 519168
    %132 = vst.msk [vmem:[%s3] sm:$0xf] %vm131, %v127
    %133 = vst.msk [vmem:[%s3 + $0x4] sm:$0xf] %vm131, %v128
  $region21: #{run.37} parent=0 // pred_fallthru
    _
  // Predicated region
  $region22: #{run.37} parent=0 // pred_check
    _
  $region23: #{run.37} parent=0 // pred_check_branch
    %135 = sbr.rel (0) target = $region25
  $region24: #{run.37} parent=0 // pred_region
    _
  $region25: #{run.37} parent=0 // pred_fallthru
    _
  // Predicated region
  $region26: #{run.37} parent=0 // pred_check
    _
  $region27: #{run.37} parent=0 // pred_check_branch
    %137 = sbr.rel (0) target = $region29
  $region28: #{run.37} parent=0 // pred_region
    _
  $region29: #{run.37} parent=0 // pred_fallthru
    _

// kernel: run.38
$region0: #{run.38}
  #allocation0 [shape = 'u32[]', space=smem, size = 0x4, offset = 0x4, fixed_abs, tag = 'smem constant byte address 0x4 - core index']
  #allocation1 [shape = 'u32[144,128]{1,0:T(1,128)}', space=vmem, size = 0x12000, scoped, tag = 'internal scratch']
  #allocation2 [shape = 'f32[16,128]{1,0:T(8,128)}', space=vmem, size = 0x2000, scoped, tag = 'scratch operand']
  #allocation3 [shape = 'f32[16,128]{1,0:T(8,128)}', space=vmem, size = 0x2000, scoped, tag = 'scratch operand']
  %s0 = inlined_call_operand.vmem [shape: bf16[16,64], index: 0, kind: input, shape index: {}]
  %s1 = inlined_call_operand.vmem [shape: bf16[64,128], index: 1, kind: input, shape index: {}]
  %s2 = inlined_call_operand.vmem [shape: bf16[64,128], index: 2, kind: input, shape index: {}]
  %s3 = inlined_call_operand.vmem [shape: bf16[1,64], index: 3, kind: input, shape index: {}]
  %s4 = inlined_call_operand.vmem [shape: bf16[16,128], index: 4, kind: output, shape index: {}]
  %s5 = sld [smem:[#allocation0]]
  $region34: #{run.38} parent=0
    _
  %s7 = ssub.s32 1, %s5
  %s8 = scalar_select 0, %s7, %s5
  // Predicated region
  $region2: #{run.38} parent=0 // pred_check
    _
  $region3: #{run.38} parent=0 // pred_check_branch
    %10 = sbr.rel (0) target = $region5
  $region4: #{run.38} parent=0 // pred_region
    _
  $region5: #{run.38} parent=0 // pred_fallthru
    _
  // Predicated region
  $region6: #{run.38} parent=0 // pred_check
    _
  $region7: #{run.38} parent=0 // pred_check_branch
    %12 = sbr.rel (0) target = $region9
  $region8: #{run.38} parent=0 // pred_region
    _
  $region9: #{run.38} parent=0 // pred_fallthru
    _
  // Predicated region
  $region10: #{run.38} parent=0 // pred_check
    _
  $region11: #{run.38} parent=0 // pred_check_branch
    %14 = sbr.rel (0) target = $region13
  $region12: #{run.38} parent=0 // pred_region
    _
  $region13: #{run.38} parent=0 // pred_fallthru
    _
  // Predicated region
  $region14: #{run.38} parent=0 // pred_check
    _
  $region15: #{run.38} parent=0 // pred_check_branch
    %16 = sbr.rel (0) target = $region17
  $region16: #{run.38} parent=0 // pred_region
    _
  $region17: #{run.38} parent=0 // pred_fallthru
    _
  %p18 = scmp.eq.s32.totalorder 0, 0
  // Predicated region
  $region18: #{run.38} parent=0 // pred_check
    %p19 = pneg %p18
  $region19: #{run.38} parent=0 // pred_check_branch
    %21 = sbr.rel (%p19) target = $region21
  $region20: #{run.38} parent=0 // pred_region
    %22 = vst [vmem:[#allocation2] sm:$0xff] 0.0
    %23 = vst [vmem:[#allocation2 + $0x8] sm:$0xff] 0.0
    %24 = vst [vmem:[#allocation3] sm:$0xff] 0.0
    %25 = vst [vmem:[#allocation3 + $0x8] sm:$0xff] 0.0
  $region21: #{run.38} parent=0 // pred_fallthru
    _
  %v26 = vld [vmem:[%s0] sm:$0xf]
  %v27 = vld [vmem:[%s0 + $0x4] sm:$0xf]
  %v28 = vunpack.c.l.bf16 %v26
  %v29 = vunpack.c.l.bf16 %v27
  %v30 = vmul.f32 %v28, %v28
  %v31 = vmul.f32 %v29, %v29
  %vm32 = vcmask 523264
  %v33 = vsel %vm32, %v30, 0.0
  %34 = vadd.xlane.f32.xlu0 %v33
  %v35 = vpop.xlane.xlu0 %34
  %v36 = vsel %vm32, %v31, 0.0
  %37 = vadd.xlane.f32.xlu0 %v36
  %v38 = vpop.xlane.xlu0 %37
  %v39 = vrcp.pop 64.0
  %v40 = vmul.f32 %v35, %v39
  %v41 = vmul.f32 %v38, %v39
  %v42 = vadd.f32 %v40, 1e-06
  %v43 = vadd.f32 %v41, 1e-06
  %v44 = vrsqrt.pop %v42
  %v45 = vrsqrt.pop %v43
  %v46 = vmul.f32 %v28, %v44
  %v47 = vmul.f32 %v29, %v45
  %v48 = vld [vmem:[%s3] sm:$0x1]
  %v49 = vunpack.c.l.bf16 %v48
  %v50 = vadd.f32 %v49, 1.0
  %v51 = vlaneseq
  %v52 = vshrl.u32 %v51, 7
  %v53 = vsub.s32 0, %v52
  %v54 = vrot.slane %v50, %v53
  %v55 = vmul.f32 %v46, %v54
  %v56 = vmul.f32 %v47, %v54
  %v57 = vpack.c.bf16 %v56, %v55
  %v58 = vld [vmem:[#allocation2] sm:$0xff]
  %v59 = vld [vmem:[#allocation2 + $0x8] sm:$0xff]
  %v60 = vld [vmem:[%s1] sm:$0xf]
  %v61 = vld [vmem:[%s1 + $0x4] sm:$0xf]
  %v62 = vld [vmem:[%s1 + $0x8] sm:$0xf]
  %v63 = vld [vmem:[%s1 + $0xc] sm:$0xf]
  %v64 = vld [vmem:[%s1 + $0x10] sm:$0xf]
  %v65 = vld [vmem:[%s1 + $0x14] sm:$0xf]
  %v66 = vld [vmem:[%s1 + $0x18] sm:$0xf]
  %v67 = vld [vmem:[%s1 + $0x1c] sm:$0xf]
  %v76 = vunpack.c.l.b16 %v60
  %v77 = vunpack.c.l.b16 %v61
  %v78 = vunpack.c.l.b16 %v62
  %v79 = vunpack.c.l.b16 %v63
  %v80 = vunpack.c.l.b16 %v64
  %v81 = vunpack.c.l.b16 %v65
  %v82 = vunpack.c.l.b16 %v66
  %v83 = vunpack.c.l.b16 %v67
  %v84 = vpack.c.b16 %v77, %v76
  %v85 = vpack.c.b16 %v79, %v78
  %v86 = vpack.c.b16 %v81, %v80
  %v87 = vpack.c.b16 %v83, %v82
  %v93 = vsel %vm32, %v57, 0
  %95 = vmatprep.subr.bf16.mxu0 0
  %96 = vmatpush1.bf16.msra.mxu0 0
  %97 = vmatprep.subr.bf16.mxu0 0
  %98 = vmatpush1.bf16.msra.mxu0 0
  %99 = vmatprep.subr.bf16.mxu0 0
  %100 = vmatpush1.bf16.msra.mxu0 0
  %101 = vmatprep.subr.bf16.mxu0 0
  %102 = vmatpush1.bf16.msra.mxu0 0
  %103 = vmatprep.subr.bf16.mxu0 0
  %104 = vmatpush1.bf16.msra.mxu0 %v87
  %105 = vmatprep.subr.bf16.mxu0 0
  %106 = vmatpush1.bf16.msra.mxu0 %v86
  %107 = vmatprep.subr.bf16.mxu0 0
  %108 = vmatpush1.bf16.msra.mxu0 %v85
  %109 = vmatprep.subr.bf16.mxu0 0
  %110 = vmatpush1.bf16.msra.mxu0 %v84
  %111 = vmatprep.subr.bf16.mxu0 0
  %112 = vmatpush2.bf16.msra.mxu0 0
  %113 = vmatprep.subr.bf16.mxu0 0
  %114 = vmatpush2.bf16.msra.mxu0 0
  %115 = vmatprep.subr.bf16.mxu0 0
  %116 = vmatpush2.bf16.msra.mxu0 0
  %117 = vmatprep.subr.bf16.mxu0 0
  %118 = vmatpush2.bf16.msra.mxu0 0
  %119 = vmatprep.subr.bf16.mxu0 0
  %120 = vmatpush2.bf16.msra.mxu0 0
  %121 = vmatprep.subr.bf16.mxu0 0
  %122 = vmatpush2.bf16.msra.mxu0 0
  %123 = vmatprep.subr.bf16.mxu0 0
  %124 = vmatpush2.bf16.msra.mxu0 0
  %125 = vmatprep.subr.bf16.mxu0 0
  %126 = vmatpush2.bf16.msra.mxu0 0
  %127 = vmatprep.mubr.bf16.mxu0 0
  %128 = vmatmul.mubr.bf16.gmra.mxu0 %v93
  %v129 = vpop.f32.mrf.mxu0
  %v130 = vadd.f32 0.0, %v129
  %v131 = vpop.f32.mrf.mxu0
  %v132 = vpop.f32.mrf.mxu0
  %v133 = vadd.f32 0.0, %v132
  %v134 = vpop.f32.mrf.mxu0
  %135 = vdwg.mxu0
  %v136 = vadd.f32 %v58, %v130
  %v137 = vadd.f32 %v59, %v133
  %138 = vst [vmem:[#allocation2] sm:$0xff] %v136
  %139 = vst [vmem:[#allocation2 + $0x8] sm:$0xff] %v137
  %v140 = vld [vmem:[#allocation3] sm:$0xff]
  %v141 = vld [vmem:[#allocation3 + $0x8] sm:$0xff]
  %v142 = vld [vmem:[%s2] sm:$0xf]
  %v143 = vld [vmem:[%s2 + $0x4] sm:$0xf]
  %v144 = vld [vmem:[%s2 + $0x8] sm:$0xf]
  %v145 = vld [vmem:[%s2 + $0xc] sm:$0xf]
  %v146 = vld [vmem:[%s2 + $0x10] sm:$0xf]
  %v147 = vld [vmem:[%s2 + $0x14] sm:$0xf]
  %v148 = vld [vmem:[%s2 + $0x18] sm:$0xf]
  %v149 = vld [vmem:[%s2 + $0x1c] sm:$0xf]
  %v158 = vunpack.c.l.b16 %v142
  %v159 = vunpack.c.l.b16 %v143
  %v160 = vunpack.c.l.b16 %v144
  %v161 = vunpack.c.l.b16 %v145
  %v162 = vunpack.c.l.b16 %v146
  %v163 = vunpack.c.l.b16 %v147
  %v164 = vunpack.c.l.b16 %v148
  %v165 = vunpack.c.l.b16 %v149
  %v166 = vpack.c.b16 %v159, %v158
  %v167 = vpack.c.b16 %v161, %v160
  %v168 = vpack.c.b16 %v163, %v162
  %v169 = vpack.c.b16 %v165, %v164
  %174 = vmatprep.subr.bf16.mxu0 0
  %175 = vmatpush1.bf16.msra.mxu0 0
  %176 = vmatprep.subr.bf16.mxu0 0
  %177 = vmatpush1.bf16.msra.mxu0 0
  %178 = vmatprep.subr.bf16.mxu0 0
  %179 = vmatpush1.bf16.msra.mxu0 0
  %180 = vmatprep.subr.bf16.mxu0 0
  %181 = vmatpush1.bf16.msra.mxu0 0
  %182 = vmatprep.subr.bf16.mxu0 0
  %183 = vmatpush1.bf16.msra.mxu0 %v169
  %184 = vmatprep.subr.bf16.mxu0 0
  %185 = vmatpush1.bf16.msra.mxu0 %v168
  %186 = vmatprep.subr.bf16.mxu0 0
  %187 = vmatpush1.bf16.msra.mxu0 %v167
  %188 = vmatprep.subr.bf16.mxu0 0
  %189 = vmatpush1.bf16.msra.mxu0 %v166
  %190 = vmatprep.subr.bf16.mxu0 0
  %191 = vmatpush2.bf16.msra.mxu0 0
  %192 = vmatprep.subr.bf16.mxu0 0
  %193 = vmatpush2.bf16.msra.mxu0 0
  %194 = vmatprep.subr.bf16.mxu0 0
  %195 = vmatpush2.bf16.msra.mxu0 0
  %196 = vmatprep.subr.bf16.mxu0 0
  %197 = vmatpush2.bf16.msra.mxu0 0
  %198 = vmatprep.subr.bf16.mxu0 0
  %199 = vmatpush2.bf16.msra.mxu0 0
  %200 = vmatprep.subr.bf16.mxu0 0
  %201 = vmatpush2.bf16.msra.mxu0 0
  %202 = vmatprep.subr.bf16.mxu0 0
  %203 = vmatpush2.bf16.msra.mxu0 0
  %204 = vmatprep.subr.bf16.mxu0 0
  %205 = vmatpush2.bf16.msra.mxu0 0
  %206 = vmatprep.mubr.bf16.mxu0 0
  %207 = vmatmul.mubr.bf16.gmra.mxu0 %v93
  %v208 = vpop.f32.mrf.mxu0
  %v209 = vadd.f32 0.0, %v208
  %v210 = vpop.f32.mrf.mxu0
  %v211 = vpop.f32.mrf.mxu0
  %v212 = vadd.f32 0.0, %v211
  %v213 = vpop.f32.mrf.mxu0
  %214 = vdwg.mxu0
  %v215 = vadd.f32 %v140, %v209
  %v216 = vadd.f32 %v141, %v212
  %217 = vst [vmem:[#allocation3] sm:$0xff] %v215
  %218 = vst [vmem:[#allocation3 + $0x8] sm:$0xff] %v216
  // Predicated region
  $region22: #{run.38} parent=0 // pred_check
    %p219 = pneg %p18
  $region23: #{run.38} parent=0 // pred_check_branch
    %221 = sbr.rel (%p219) target = $region25
  $region24: #{run.38} parent=0 // pred_region
    %v222 = vld [vmem:[#allocation2] sm:$0xff]
    %v223 = vld [vmem:[#allocation2 + $0x8] sm:$0xff]
    %v224 = vmul.f32 %v222, 0.5
    %v225 = vmul.f32 %v223, 0.5
    %v226 = vmul.f32 %v222, 0.044715
    %v227 = vmul.f32 %v223, 0.044715
    %v228 = vmul.f32 %v226, %v222
    %v229 = vmul.f32 %v227, %v223
    %v230 = vmul.f32 %v228, %v222
    %v231 = vmul.f32 %v229, %v223
    %v232 = vadd.f32 %v222, %v230
    %v233 = vadd.f32 %v223, %v231
    %v234 = vmul.f32 %v232, 0.7978846
    %v235 = vmul.f32 %v233, 0.7978846
    %v236 = vtanh.pop %v234
    %v237 = vtanh.pop %v235
    %v238 = vadd.f32 %v236, 1.0
    %v239 = vadd.f32 %v237, 1.0
    %v240 = vmul.f32 %v224, %v238
    %v241 = vmul.f32 %v225, %v239
    %v242 = vld [vmem:[#allocation3] sm:$0xff]
    %v243 = vld [vmem:[#allocation3 + $0x8] sm:$0xff]
    %v244 = vmul.f32 %v240, %v242
    %v245 = vmul.f32 %v241, %v243
    %v246 = vpack.c.bf16 %v245, %v244
    %v248 = vunpack.c.l.b16 %v246
    %v249 = vunpack.c.h.b16 %v246
    %v250 = vpack.c.b16 %v248, %v248
    %v251 = vpack.c.b16 %v249, %v249
    %254 = vst [vmem:[%s4] sm:$0xf] %v250
    %255 = vst [vmem:[%s4 + $0x4] sm:$0xf] %v251
  $region25: #{run.38} parent=0 // pred_fallthru
    _
  // Predicated region
  $region26: #{run.38} parent=0 // pred_check
    _
  $region27: #{run.38} parent=0 // pred_check_branch
    %257 = sbr.rel (0) target = $region29
  $region28: #{run.38} parent=0 // pred_region
    _
  $region29: #{run.38} parent=0 // pred_fallthru
    _
  // Predicated region
  $region30: #{run.38} parent=0 // pred_check
    _
  $region31: #{run.38} parent=0 // pred_check_branch
    %259 = sbr.rel (0) target = $region33
  $region32: #{run.38} parent=0 // pred_region
    _
  $region33: #{run.38} parent=0 // pred_fallthru
    _

// kernel: run.39
$region0: #{run.39}
  #allocation0 [shape = 'u32[]', space=smem, size = 0x4, offset = 0x4, fixed_abs, tag = 'smem constant byte address 0x4 - core index']
  #allocation1 [shape = 'u32[144,128]{1,0:T(1,128)}', space=vmem, size = 0x12000, scoped, tag = 'internal scratch']
  #allocation2 [shape = 'f32[16,64]{1,0:T(8,128)}', space=vmem, size = 0x2000, scoped, tag = 'scratch operand']
  %s0 = inlined_call_operand.vmem [shape: bf16[16,128], index: 0, kind: input, shape index: {}]
  %s1 = inlined_call_operand.vmem [shape: bf16[128,64], index: 1, kind: input, shape index: {}]
  %s2 = inlined_call_operand.vmem [shape: bf16[16,64], index: 2, kind: input, shape index: {}]
  %s3 = inlined_call_operand.vmem [shape: bf16[16,64], index: 3, kind: output, shape index: {}]
  %s4 = sld [smem:[#allocation0]]
  $region30: #{run.39} parent=0
    _
  %s6 = ssub.s32 1, %s4
  %s7 = scalar_select 0, %s6, %s4
  // Predicated region
  $region2: #{run.39} parent=0 // pred_check
    _
  $region3: #{run.39} parent=0 // pred_check_branch
    %9 = sbr.rel (0) target = $region5
  $region4: #{run.39} parent=0 // pred_region
    _
  $region5: #{run.39} parent=0 // pred_fallthru
    _
  // Predicated region
  $region6: #{run.39} parent=0 // pred_check
    _
  $region7: #{run.39} parent=0 // pred_check_branch
    %11 = sbr.rel (0) target = $region9
  $region8: #{run.39} parent=0 // pred_region
    _
  $region9: #{run.39} parent=0 // pred_fallthru
    _
  // Predicated region
  $region10: #{run.39} parent=0 // pred_check
    _
  $region11: #{run.39} parent=0 // pred_check_branch
    %13 = sbr.rel (0) target = $region13
  $region12: #{run.39} parent=0 // pred_region
    _
  $region13: #{run.39} parent=0 // pred_fallthru
    _
  %p15 = scmp.eq.s32.totalorder 0, 0
  // Predicated region
  $region14: #{run.39} parent=0 // pred_check
    %p16 = pneg %p15
  $region15: #{run.39} parent=0 // pred_check_branch
    %18 = sbr.rel (%p16) target = $region17
  $region16: #{run.39} parent=0 // pred_region
    %vm19 = vcmask 523264
    %20 = vst.msk [vmem:[#allocation2] sm:$0xff] %vm19, 0.0
    %21 = vst.msk [vmem:[#allocation2 + $0x8] sm:$0xff] %vm19, 0.0
  $region17: #{run.39} parent=0 // pred_fallthru
    _
  %v22 = vld [vmem:[%s0] sm:$0xf]
  %v23 = vld [vmem:[%s0 + $0x4] sm:$0xf]
  %v24 = vld [vmem:[#allocation2] sm:$0xff]
  %v25 = vld [vmem:[#allocation2 + $0x8] sm:$0xff]
  %v26 = vld [vmem:[%s1] sm:$0xf]
  %v27 = vld [vmem:[%s1 + $0x4] sm:$0xf]
  %v28 = vld [vmem:[%s1 + $0x8] sm:$0xf]
  %v29 = vld [vmem:[%s1 + $0xc] sm:$0xf]
  %v30 = vld [vmem:[%s1 + $0x10] sm:$0xf]
  %v31 = vld [vmem:[%s1 + $0x14] sm:$0xf]
  %v32 = vld [vmem:[%s1 + $0x18] sm:$0xf]
  %v33 = vld [vmem:[%s1 + $0x1c] sm:$0xf]
  %v34 = vld [vmem:[%s1 + $0x20] sm:$0xf]
  %v35 = vld [vmem:[%s1 + $0x24] sm:$0xf]
  %v36 = vld [vmem:[%s1 + $0x28] sm:$0xf]
  %v37 = vld [vmem:[%s1 + $0x2c] sm:$0xf]
  %v38 = vld [vmem:[%s1 + $0x30] sm:$0xf]
  %v39 = vld [vmem:[%s1 + $0x34] sm:$0xf]
  %v40 = vld [vmem:[%s1 + $0x38] sm:$0xf]
  %v41 = vld [vmem:[%s1 + $0x3c] sm:$0xf]
  %v44 = vunpack.c.l.b16 %v22
  %v45 = vunpack.c.l.b16 %v23
  %v46 = vpack.c.b16 %v45, %v44
  %v64 = vunpack.c.l.b16 %v26
  %v65 = vunpack.c.l.b16 %v27
  %v66 = vunpack.c.l.b16 %v28
  %v67 = vunpack.c.l.b16 %v29
  %v68 = vunpack.c.l.b16 %v30
  %v69 = vunpack.c.l.b16 %v31
  %v70 = vunpack.c.l.b16 %v32
  %v71 = vunpack.c.l.b16 %v33
  %v72 = vunpack.c.l.b16 %v34
  %v73 = vunpack.c.l.b16 %v35
  %v74 = vunpack.c.l.b16 %v36
  %v75 = vunpack.c.l.b16 %v37
  %v76 = vunpack.c.l.b16 %v38
  %v77 = vunpack.c.l.b16 %v39
  %v78 = vunpack.c.l.b16 %v40
  %v79 = vunpack.c.l.b16 %v41
  %v80 = vpack.c.b16 %v65, %v64
  %v81 = vpack.c.b16 %v67, %v66
  %v82 = vpack.c.b16 %v69, %v68
  %v83 = vpack.c.b16 %v71, %v70
  %v84 = vpack.c.b16 %v73, %v72
  %v85 = vpack.c.b16 %v75, %v74
  %v86 = vpack.c.b16 %v77, %v76
  %v87 = vpack.c.b16 %v79, %v78
  %96 = vmatprep.subr.bf16.mxu0 0
  %97 = vmatpush1.bf16.msra.mxu0 %v87
  %98 = vmatprep.subr.bf16.mxu0 0
  %99 = vmatpush1.bf16.msra.mxu0 %v86
  %100 = vmatprep.subr.bf16.mxu0 0
  %101 = vmatpush1.bf16.msra.mxu0 %v85
  %102 = vmatprep.subr.bf16.mxu0 0
  %103 = vmatpush1.bf16.msra.mxu0 %v84
  %104 = vmatprep.subr.bf16.mxu0 0
  %105 = vmatpush1.bf16.msra.mxu0 %v83
  %106 = vmatprep.subr.bf16.mxu0 0
  %107 = vmatpush1.bf16.msra.mxu0 %v82
  %108 = vmatprep.subr.bf16.mxu0 0
  %109 = vmatpush1.bf16.msra.mxu0 %v81
  %110 = vmatprep.subr.bf16.mxu0 0
  %111 = vmatpush1.bf16.msra.mxu0 %v80
  %112 = vmatprep.subr.bf16.mxu0 0
  %113 = vmatpush2.bf16.msra.mxu0 0
  %114 = vmatprep.subr.bf16.mxu0 0
  %115 = vmatpush2.bf16.msra.mxu0 0
  %116 = vmatprep.subr.bf16.mxu0 0
  %117 = vmatpush2.bf16.msra.mxu0 0
  %118 = vmatprep.subr.bf16.mxu0 0
  %119 = vmatpush2.bf16.msra.mxu0 0
  %120 = vmatprep.subr.bf16.mxu0 0
  %121 = vmatpush2.bf16.msra.mxu0 0
  %122 = vmatprep.subr.bf16.mxu0 0
  %123 = vmatpush2.bf16.msra.mxu0 0
  %124 = vmatprep.subr.bf16.mxu0 0
  %125 = vmatpush2.bf16.msra.mxu0 0
  %126 = vmatprep.subr.bf16.mxu0 0
  %127 = vmatpush2.bf16.msra.mxu0 0
  %128 = vmatprep.mubr.bf16.mxu0 0
  %129 = vmatmul.mubr.bf16.gmra.mxu0 %v46
  %v130 = vpop.f32.mrf.mxu0
  %v131 = vadd.f32 0.0, %v130
  %v132 = vpop.f32.mrf.mxu0
  %v133 = vpop.f32.mrf.mxu0
  %v134 = vadd.f32 0.0, %v133
  %v135 = vpop.f32.mrf.mxu0
  %136 = vdwg.mxu0
  %v137 = vadd.f32 %v24, %v131
  %v138 = vadd.f32 %v25, %v134
  %vm139 = vcmask 523264
  %140 = vst.msk [vmem:[#allocation2] sm:$0xff] %vm139, %v137
  %141 = vst.msk [vmem:[#allocation2 + $0x8] sm:$0xff] %vm139, %v138
  // Predicated region
  $region18: #{run.39} parent=0 // pred_check
    %p142 = pneg %p15
  $region19: #{run.39} parent=0 // pred_check_branch
    %144 = sbr.rel (%p142) target = $region21
  $region20: #{run.39} parent=0 // pred_region
    %v145 = vld [vmem:[#allocation2] sm:$0xff]
    %v146 = vld [vmem:[#allocation2 + $0x8] sm:$0xff]
    %v147 = vld [vmem:[%s2] sm:$0xf]
    %v148 = vld [vmem:[%s2 + $0x4] sm:$0xf]
    %v149 = vunpack.c.l.bf16 %v147
    %v150 = vunpack.c.l.bf16 %v148
    %v151 = vadd.f32 %v145, %v149
    %v152 = vadd.f32 %v146, %v150
    %v153 = vpack.c.bf16 %v152, %v151
    %v155 = vunpack.c.l.b16 %v153
    %v156 = vunpack.c.h.b16 %v153
    %v157 = vpack.c.b16 %v155, %v155
    %v158 = vpack.c.b16 %v156, %v156
    %vm161 = vcmask 519168
    %162 = vst.msk [vmem:[%s3] sm:$0xf] %vm161, %v157
    %163 = vst.msk [vmem:[%s3 + $0x4] sm:$0xf] %vm161, %v158
  $region21: #{run.39} parent=0 // pred_fallthru
    _
  // Predicated region
  $region22: #{run.39} parent=0 // pred_check
    _
  $region23: #{run.39} parent=0 // pred_check_branch
    %165 = sbr.rel (0) target = $region25
  $region24: #{run.39} parent=0 // pred_region
    _
  $region25: #{run.39} parent=0 // pred_fallthru
    _
  // Predicated region
  $region26: #{run.39} parent=0 // pred_check
    _
  $region27: #{run.39} parent=0 // pred_check_branch
    %167 = sbr.rel (0) target = $region29
  $region28: #{run.39} parent=0 // pred_region
    _
  $region29: #{run.39} parent=0 // pred_fallthru
    _

// kernel: run.45
$region0: #{run.45}
  #allocation0 [shape = 'u32[]', space=smem, size = 0x4, offset = 0x4, fixed_abs, tag = 'smem constant byte address 0x4 - core index']
  #allocation1 [shape = 'u32[144,128]{1,0:T(1,128)}', space=vmem, size = 0x12000, scoped, tag = 'internal scratch']
  #allocation2 [shape = 'f32[16,256]{1,0:T(8,128)}', space=vmem, size = 0x4000, scoped, tag = 'scratch operand']
  %s0 = inlined_call_operand.vmem [shape: bf16[16,64], index: 0, kind: input, shape index: {}]
  %s1 = inlined_call_operand.vmem [shape: bf16[64,256], index: 1, kind: input, shape index: {}]
  %s2 = inlined_call_operand.vmem [shape: bf16[1,64], index: 2, kind: input, shape index: {}]
  %s3 = inlined_call_operand.hbm [shape: f32[16,256], index: 3, kind: output, shape index: {}]
  %s4 = sld [smem:[#allocation0]]
  $region30: #{run.45} parent=0
    _
  %s6 = ssub.s32 1, %s4
  %s7 = scalar_select 0, %s6, %s4
  $region1: #{run.45} parent=0
    #allocation3 [shape = 'u8[16384]{0}', space=vmem, size = 0x4000, scoped, tag = 'output window, operand 0, single buffered']
    #allocation4 [shape = 's32[1]{0}', space=sflag, size = 0x4, scoped, tag = 'scoped memory for run.45']
    %8 = vsyncpa [#allocation4], 0
    // Predicated region
    $region2: #{run.45} parent=1 // pred_check
      _
    $region3: #{run.45} parent=1 // pred_check_branch
      %10 = sbr.rel (0) target = $region5
    $region4: #{run.45} parent=1 // pred_region
      _
    $region5: #{run.45} parent=1 // pred_fallthru
      _
    // Predicated region
    $region6: #{run.45} parent=1 // pred_check
      _
    $region7: #{run.45} parent=1 // pred_check_branch
      %12 = sbr.rel (0) target = $region9
    $region8: #{run.45} parent=1 // pred_region
      _
    $region9: #{run.45} parent=1 // pred_fallthru
      _
    // Predicated region
    $region10: #{run.45} parent=1 // pred_check
      _
    $region11: #{run.45} parent=1 // pred_check_branch
      %14 = sbr.rel (0) target = $region13
    $region12: #{run.45} parent=1 // pred_region
      _
    $region13: #{run.45} parent=1 // pred_fallthru
      _
    %p16 = scmp.eq.s32.totalorder 0, 0
    // Predicated region
    $region14: #{run.45} parent=1 // pred_check
      %p17 = pneg %p16
    $region15: #{run.45} parent=1 // pred_check_branch
      %19 = sbr.rel (%p17) target = $region17
    $region16: #{run.45} parent=1 // pred_region
      %20 = vst [vmem:[#allocation2] sm:$0xff] 0.0
      %21 = vst [vmem:[#allocation2 + $0x8] sm:$0xff] 0.0
      %22 = vst [vmem:[#allocation2 + $0x10] sm:$0xff] 0.0
      %23 = vst [vmem:[#allocation2 + $0x18] sm:$0xff] 0.0
    $region17: #{run.45} parent=1 // pred_fallthru
      _
    %v24 = vld [vmem:[%s0] sm:$0xf]
    %v25 = vld [vmem:[%s0 + $0x4] sm:$0xf]
    %v26 = vunpack.c.l.bf16 %v24
    %v27 = vunpack.c.l.bf16 %v25
    %v28 = vmul.f32 %v26, %v26
    %v29 = vmul.f32 %v27, %v27
    %vm30 = vcmask 523264
    %v31 = vsel %vm30, %v28, 0.0
    %32 = vadd.xlane.f32.xlu0 %v31
    %v33 = vpop.xlane.xlu0 %32
    %v34 = vsel %vm30, %v29, 0.0
    %35 = vadd.xlane.f32.xlu0 %v34
    %v36 = vpop.xlane.xlu0 %35
    %v37 = vrcp.pop 64.0
    %v38 = vmul.f32 %v33, %v37
    %v39 = vmul.f32 %v36, %v37
    %v40 = vadd.f32 %v38, 1e-06
    %v41 = vadd.f32 %v39, 1e-06
    %v42 = vrsqrt.pop %v40
    %v43 = vrsqrt.pop %v41
    %v44 = vmul.f32 %v26, %v42
    %v45 = vmul.f32 %v27, %v43
    %v46 = vld [vmem:[%s2] sm:$0x1]
    %v47 = vunpack.c.l.bf16 %v46
    %v48 = vadd.f32 %v47, 1.0
    %v49 = vlaneseq
    %v50 = vshrl.u32 %v49, 7
    %v51 = vsub.s32 0, %v50
    %v52 = vrot.slane %v48, %v51
    %v53 = vmul.f32 %v44, %v52
    %v54 = vmul.f32 %v45, %v52
    %v55 = vpack.c.bf16 %v54, %v53
    %v56 = vld [vmem:[#allocation2] sm:$0xff]
    %v57 = vld [vmem:[#allocation2 + $0x8] sm:$0xff]
    %v58 = vld [vmem:[#allocation2 + $0x10] sm:$0xff]
    %v59 = vld [vmem:[#allocation2 + $0x18] sm:$0xff]
    %v60 = vld [vmem:[%s1] sm:$0xff]
    %v61 = vld [vmem:[%s1 + $0x8] sm:$0xff]
    %v62 = vld [vmem:[%s1 + $0x10] sm:$0xff]
    %v63 = vld [vmem:[%s1 + $0x18] sm:$0xff]
    %v64 = vld [vmem:[%s1 + $0x20] sm:$0xff]
    %v65 = vld [vmem:[%s1 + $0x28] sm:$0xff]
    %v66 = vld [vmem:[%s1 + $0x30] sm:$0xff]
    %v67 = vld [vmem:[%s1 + $0x38] sm:$0xff]
    %v76 = vunpack.c.l.b16 %v60
    %v77 = vunpack.c.h.b16 %v60
    %v78 = vunpack.c.l.b16 %v61
    %v79 = vunpack.c.h.b16 %v61
    %v80 = vunpack.c.l.b16 %v62
    %v81 = vunpack.c.h.b16 %v62
    %v82 = vunpack.c.l.b16 %v63
    %v83 = vunpack.c.h.b16 %v63
    %v84 = vunpack.c.l.b16 %v64
    %v85 = vunpack.c.h.b16 %v64
    %v86 = vunpack.c.l.b16 %v65
    %v87 = vunpack.c.h.b16 %v65
    %v88 = vunpack.c.l.b16 %v66
    %v89 = vunpack.c.h.b16 %v66
    %v90 = vunpack.c.l.b16 %v67
    %v91 = vunpack.c.h.b16 %v67
    %v92 = vpack.c.b16 %v78, %v76
    %v93 = vpack.c.b16 %v79, %v77
    %v94 = vpack.c.b16 %v82, %v80
    %v95 = vpack.c.b16 %v83, %v81
    %v96 = vpack.c.b16 %v86, %v84
    %v97 = vpack.c.b16 %v87, %v85
    %v98 = vpack.c.b16 %v90, %v88
    %v99 = vpack.c.b16 %v91, %v89
    %v109 = vsel %vm30, %v55, 0
    %111 = vmatprep.subr.bf16.mxu0 0
    %112 = vmatpush1.bf16.msra.mxu0 0
    %113 = vmatprep.subr.bf16.mxu0 0
    %114 = vmatpush1.bf16.msra.mxu0 0
    %115 = vmatprep.subr.bf16.mxu0 0
    %116 = vmatpush1.bf16.msra.mxu0 0
    %117 = vmatprep.subr.bf16.mxu0 0
    %118 = vmatpush1.bf16.msra.mxu0 0
    %119 = vmatprep.subr.bf16.mxu0 %v99
    %120 = vmatpush1.bf16.msra.mxu0 %v98
    %121 = vmatprep.subr.bf16.mxu0 %v97
    %122 = vmatpush1.bf16.msra.mxu0 %v96
    %123 = vmatprep.subr.bf16.mxu0 %v95
    %124 = vmatpush1.bf16.msra.mxu0 %v94
    %125 = vmatprep.subr.bf16.mxu0 %v93
    %126 = vmatpush1.bf16.msra.mxu0 %v92
    %127 = vmatprep.subr.bf16.mxu0 0
    %128 = vmatpush2.bf16.msra.mxu0 0
    %129 = vmatprep.subr.bf16.mxu0 0
    %130 = vmatpush2.bf16.msra.mxu0 0
    %131 = vmatprep.subr.bf16.mxu0 0
    %132 = vmatpush2.bf16.msra.mxu0 0
    %133 = vmatprep.subr.bf16.mxu0 0
    %134 = vmatpush2.bf16.msra.mxu0 0
    %135 = vmatprep.subr.bf16.mxu0 0
    %136 = vmatpush2.bf16.msra.mxu0 0
    %137 = vmatprep.subr.bf16.mxu0 0
    %138 = vmatpush2.bf16.msra.mxu0 0
    %139 = vmatprep.subr.bf16.mxu0 0
    %140 = vmatpush2.bf16.msra.mxu0 0
    %141 = vmatprep.subr.bf16.mxu0 0
    %142 = vmatpush2.bf16.msra.mxu0 0
    %143 = vmatprep.mubr.bf16.mxu0 0
    %144 = vmatmul.mubr.bf16.gmra.mxu0 %v109
    %v145 = vpop.f32.mrf.mxu0
    %v146 = vadd.f32 0.0, %v145
    %v147 = vpop.f32.mrf.mxu0
    %v148 = vadd.f32 0.0, %v147
    %v149 = vpop.f32.mrf.mxu0
    %v150 = vadd.f32 0.0, %v149
    %v151 = vpop.f32.mrf.mxu0
    %v152 = vadd.f32 0.0, %v151
    %153 = vdwg.mxu0
    %v154 = vadd.f32 %v56, %v146
    %v155 = vadd.f32 %v57, %v148
    %v156 = vadd.f32 %v58, %v150
    %v157 = vadd.f32 %v59, %v152
    %158 = vst [vmem:[#allocation2] sm:$0xff] %v154
    %159 = vst [vmem:[#allocation2 + $0x8] sm:$0xff] %v155
    %160 = vst [vmem:[#allocation2 + $0x10] sm:$0xff] %v156
    %161 = vst [vmem:[#allocation2 + $0x18] sm:$0xff] %v157
    // Predicated region
    $region18: #{run.45} parent=1 // pred_check
      %p162 = pneg %p16
    $region19: #{run.45} parent=1 // pred_check_branch
      %164 = sbr.rel (%p162) target = $region21
    $region20: #{run.45} parent=1 // pred_region
      %v165 = vld [vmem:[#allocation2] sm:$0xff]
      %v166 = vld [vmem:[#allocation2 + $0x8] sm:$0xff]
      %v167 = vld [vmem:[#allocation2 + $0x10] sm:$0xff]
      %v168 = vld [vmem:[#allocation2 + $0x18] sm:$0xff]
      %169 = vst [vmem:[#allocation3] sm:$0xff] %v165
      %170 = vst [vmem:[#allocation3 + $0x8] sm:$0xff] %v166
      %171 = vst [vmem:[#allocation3 + $0x10] sm:$0xff] %v167
      %172 = vst [vmem:[#allocation3 + $0x18] sm:$0xff] %v168
    $region21: #{run.45} parent=1 // pred_fallthru
      _
    // Predicated region
    $region22: #{run.45} parent=1 // pred_check
      _
    $region23: #{run.45} parent=1 // pred_check_branch
      %174 = sbr.rel (0) target = $region25
    $region24: #{run.45} parent=1 // pred_region
      %s176 = ssub.s32 512, 512
      %177 = vsyncadd [#allocation4], %s176
      %s178 = sshll.u32 [#allocation3], 4
      %s179 = int_to_ptr.vmem [resolvable:$true] %s178
      %184 = dma.vmem_to_hbm [thread:$0]  %s179, 512, %s3, [#allocation4], 256, 256, 16
    $region25: #{run.45} parent=1 // pred_fallthru
      _
    // Predicated region
    $region26: #{run.45} parent=1 // pred_check
      _
    $region27: #{run.45} parent=1 // pred_check_branch
      %186 = sbr.rel (0) target = $region29
    $region28: #{run.45} parent=1 // pred_region
      %187 = dma.done [#allocation4], 512
    $region29: #{run.45} parent=1 // pred_fallthru
      _
    %188 = vsyncpa [#allocation4], 1

</llo_original>
